<compile_context>
chip_gen: v7x
topology: tpu7x:2x2x1
jax: 0.10.0
libtpu: 0.0.40
codegen_flags: <defaults>
</compile_context>

<pallas_src>
import jax
import jax.numpy as jnp
from jax.experimental import pallas as pl
from jax.experimental.pallas import tpu as pltpu

LANES = 128


def _residual_block_kernel(xpad_ref, w1_ref, s1_ref, b1_ref,
                           w2_ref, s2_ref, b2_ref,
                           wfc1_ref, wfc2_ref,
                           out_ref,
                           pad1_scratch):
    # xpad_ref : (Nb, H+2, W+2, Cp)  zero-padded (halo + channel pad) NHWC input
    # w1_ref   : (3, 3, Cp, Cp)      conv1 weights, HWIO (channel-padded)
    # s1/b1    : (1, Cp)             folded BN1 scale / bias
    # w2_ref   : (3, 3, Cp, Cp)      conv2 weights, HWIO
    # s2/b2    : (1, Cp)             folded BN2 scale / bias
    # wfc1_ref : (Cp, Hd)            SE fc1 weight (transposed torch Linear)
    # wfc2_ref : (Hd, Cp)            SE fc2 weight
    # out_ref  : (Nb, H, W, Cp)
    # pad1_scratch : (Nb, H+2, W+2, Cp)  relu(bn1(conv1)) with zero halo
    Nb, Hp, Wp, Cp = xpad_ref.shape
    H, W = Hp - 2, Wp - 2
    M = Nb * H * W

    # Re-zero only the 1-pixel halo border (interior is fully overwritten below).
    pad1_scratch[:, 0:1, :, :] = jnp.zeros((Nb, 1, Wp, Cp), jnp.float32)
    pad1_scratch[:, H + 1:H + 2, :, :] = jnp.zeros((Nb, 1, Wp, Cp), jnp.float32)
    pad1_scratch[:, :, 0:1, :] = jnp.zeros((Nb, Hp, 1, Cp), jnp.float32)
    pad1_scratch[:, :, W + 1:W + 2, :] = jnp.zeros((Nb, Hp, 1, Cp), jnp.float32)

    s1 = s1_ref[...]
    b1 = b1_ref[...]
    s2 = s2_ref[...]
    b2 = b2_ref[...]

    # ---- conv1 (3x3, stride 1, pad 1): 9 whole-plane tap matmuls ------------
    acc1 = jnp.zeros((M, Cp), jnp.float32)
    for dh in range(3):
        for dw in range(3):
            tap = xpad_ref[:, dh:dh + H, dw:dw + W, :].reshape(M, Cp)
            acc1 += jnp.dot(tap, w1_ref[dh, dw],
                            preferred_element_type=jnp.float32)
    h1 = jnp.maximum(acc1 * s1 + b1, 0.0)                      # BN1 + ReLU
    pad1_scratch[:, 1:H + 1, 1:W + 1, :] = h1.reshape(Nb, H, W, Cp)

    # ---- conv2 (3x3, stride 1, pad 1): 9 whole-plane tap matmuls ------------
    acc2 = jnp.zeros((M, Cp), jnp.float32)
    for dh in range(3):
        for dw in range(3):
            tap = pad1_scratch[:, dh:dh + H, dw:dw + W, :].reshape(M, Cp)
            acc2 += jnp.dot(tap, w2_ref[dh, dw],
                            preferred_element_type=jnp.float32)
    h2 = acc2 * s2 + b2                                        # (M, Cp), BN2
    h2n = h2.reshape(Nb, H, W, Cp)

    # ---- SE: global average pool -> fc1 -> ReLU -> fc2 -> sigmoid -----------
    inv_hw = 1.0 / float(H * W)
    pooled = h2.reshape(Nb, H * W, Cp).sum(axis=1) * inv_hw     # (Nb, Cp)
    hid = jnp.maximum(
        jnp.dot(pooled, wfc1_ref[...], preferred_element_type=jnp.float32), 0.0)
    gate = jax.nn.sigmoid(
        jnp.dot(hid, wfc2_ref[...], preferred_element_type=jnp.float32))  # (Nb, Cp)

    # ---- channel re-scale, residual add, final ReLU (one lane-dense store) ---
    identity = xpad_ref[:, 1:H + 1, 1:W + 1, :]                # (Nb, H, W, Cp)
    out_ref[...] = jnp.maximum(h2n * gate.reshape(Nb, 1, 1, Cp) + identity, 0.0)


def residual_block_forward(x_nchw, params, nb=None):
    """x_nchw: (N, C, H, W) float32. Returns (N, C, H, W).

    stride=1 / downsample=None variant of ResidualBlock (inplanes == planes).
    """
    N, C, H, W = x_nchw.shape
    P = params["w2"].shape[-1]
    hidden = params["wfc1"].shape[-1]
    assert C == P, "identity residual requires inplanes == planes"

    def _round_up(v, m):
        return ((v + m - 1) // m) * m

    Cp = _round_up(max(C, P), LANES)       # lane-dense channel padding
    Hd = _round_up(hidden, LANES)          # lane-dense SE hidden padding
    Hp, Wp = H + 2, W + 2

    if nb is None:
        nb = 1
        for cand in (8, 4, 2):
            if N % cand == 0 and N // cand >= 2:
                nb = cand
                break
    assert N % nb == 0

    # NCHW -> NHWC, 1-px spatial halo, channel pad to 128 lanes.
    # TODO(synk): at real feature-map sizes realize the halo inside the kernel
    #             instead of materializing a padded copy in HBM.
    x_nhwc = jnp.transpose(x_nchw, (0, 2, 3, 1)).astype(jnp.float32)
    xpad = jnp.pad(x_nhwc, ((0, 0), (1, 1), (1, 1), (0, Cp - C)))

    w1 = jnp.pad(params["w1"], ((0, 0), (0, 0), (0, Cp - C), (0, Cp - P)))
    w2 = jnp.pad(params["w2"], ((0, 0), (0, 0), (0, Cp - P), (0, Cp - P)))
    s1 = jnp.pad(params["s1"], ((0, 0), (0, Cp - P)))
    b1 = jnp.pad(params["b1"], ((0, 0), (0, Cp - P)))
    s2 = jnp.pad(params["s2"], ((0, 0), (0, Cp - P)))
    b2 = jnp.pad(params["b2"], ((0, 0), (0, Cp - P)))
    wfc1 = jnp.pad(params["wfc1"], ((0, Cp - P), (0, Hd - hidden)))
    wfc2 = jnp.pad(params["wfc2"], ((0, Hd - hidden), (0, Cp - P)))

    grid_spec = pltpu.PrefetchScalarGridSpec(
        num_scalar_prefetch=0,
        grid=(N // nb,),
        in_specs=[
            pl.BlockSpec((nb, Hp, Wp, Cp), lambda b: (b, 0, 0, 0)),
            pl.BlockSpec((3, 3, Cp, Cp), lambda b: (0, 0, 0, 0)),
            pl.BlockSpec((1, Cp), lambda b: (0, 0)),
            pl.BlockSpec((1, Cp), lambda b: (0, 0)),
            pl.BlockSpec((3, 3, Cp, Cp), lambda b: (0, 0, 0, 0)),
            pl.BlockSpec((1, Cp), lambda b: (0, 0)),
            pl.BlockSpec((1, Cp), lambda b: (0, 0)),
            pl.BlockSpec((Cp, Hd), lambda b: (0, 0)),
            pl.BlockSpec((Hd, Cp), lambda b: (0, 0)),
        ],
        out_specs=pl.BlockSpec((nb, H, W, Cp), lambda b: (b, 0, 0, 0)),
        scratch_shapes=[
            pltpu.VMEM((nb, Hp, Wp, Cp), jnp.float32),  # conv1 output + zero halo
        ],
    )

    out_nhwc = pl.pallas_call(
        _residual_block_kernel,
        out_shape=jax.ShapeDtypeStruct((N, H, W, Cp), jnp.float32),
        grid_spec=grid_spec,
        compiler_params=pltpu.CompilerParams(
            dimension_semantics=("parallel",),
            vmem_limit_bytes=64 * 1024 * 1024),
    )(xpad, w1, s1, b1, w2, s2, b2, wfc1, wfc2)

    # strip channel padding, back to NCHW
    return jnp.transpose(out_nhwc[..., :P], (0, 3, 1, 2))


def _make_params(key, cin, planes, reduction=16):
    hidden = planes // reduction
    ks = jax.random.split(key, 12)
    eps = 1e-5

    w1 = 0.1 * jax.random.normal(ks[0], (3, 3, cin, planes), jnp.float32)
    w2 = 0.1 * jax.random.normal(ks[1], (3, 3, planes, planes), jnp.float32)

    g1 = 1.0 + 0.1 * jax.random.normal(ks[2], (planes,), jnp.float32)
    bt1 = 0.1 * jax.random.normal(ks[3], (planes,), jnp.float32)
    m1 = 0.1 * jax.random.normal(ks[4], (planes,), jnp.float32)
    v1 = 0.5 + jnp.abs(jax.random.normal(ks[5], (planes,), jnp.float32)) * 0.5

    g2 = 1.0 + 0.1 * jax.random.normal(ks[6], (planes,), jnp.float32)
    bt2 = 0.1 * jax.random.normal(ks[7], (planes,), jnp.float32)
    m2 = 0.1 * jax.random.normal(ks[8], (planes,), jnp.float32)
    v2 = 0.5 + jnp.abs(jax.random.normal(ks[9], (planes,), jnp.float32)) * 0.5

    s1 = g1 / jnp.sqrt(v1 + eps)
    b1 = bt1 - m1 * s1
    s2 = g2 / jnp.sqrt(v2 + eps)
    b2 = bt2 - m2 * s2

    # torch Linear weight is (out, in); store transposed (in, out) for x @ W^T
    wfc1 = 0.3 * jax.random.normal(ks[10], (planes, hidden), jnp.float32)
    wfc2 = 0.3 * jax.random.normal(ks[11], (hidden, planes), jnp.float32)

    return {
        "w1": w1, "s1": s1.reshape(1, planes), "b1": b1.reshape(1, planes),
        "w2": w2, "s2": s2.reshape(1, planes), "b2": b2.reshape(1, planes),
        "wfc1": wfc1, "wfc2": wfc2,
    }


def _reference_forward(x_nchw, params):
    """Pure-JAX reference (same folded-BN inference semantics)."""
    x = jnp.transpose(x_nchw, (0, 2, 3, 1)).astype(jnp.float32)   # NHWC
    dn = ("NHWC", "HWIO", "NHWC")
    y = jax.lax.conv_general_dilated(x, params["w1"], (1, 1), "SAME",
                                     dimension_numbers=dn)
    y = jnp.maximum(y * params["s1"] + params["b1"], 0.0)
    y = jax.lax.conv_general_dilated(y, params["w2"], (1, 1), "SAME",
                                     dimension_numbers=dn)
    y = y * params["s2"] + params["b2"]
    pooled = jnp.mean(y, axis=(1, 2))                              # (N, P)
    gate = jax.nn.sigmoid(jnp.maximum(pooled @ params["wfc1"], 0.0)
                          @ params["wfc2"])                        # (N, P)
    y = y * gate[:, None, None, :]
    y = jnp.maximum(y + x, 0.0)
    return jnp.transpose(y, (0, 3, 1, 2))


if __name__ == "__main__":
    # stride=1, downsample=None, inplanes == planes (identity residual)
    N, C, H, W = 4, 32, 8, 8
    planes = 32
    reduction = 16

    key = jax.random.PRNGKey(0)
    kx, kp = jax.random.split(key)
    x = jax.random.normal(kx, (N, C, H, W), jnp.float32)
    params = _make_params(kp, C, planes, reduction)

    out = jax.block_until_ready(residual_block_forward(x, params, nb=2))
    ref = jax.block_until_ready(_reference_forward(x, params))

    assert out.shape == (N, planes, H, W), out.shape
    assert jnp.allclose(out, ref, atol=1e-4, rtol=1e-4), \
        float(jnp.max(jnp.abs(out - ref)))
    print("KERNEL_OK")
</pallas_src>

<mosaic_0001>
module attributes {stable_mosaic.version = 11 : i64} {
  func.func @_residual_block_kernel(%arg0: i32, %arg1: memref<2x10x10x128xf32, #tpu.memory_space<vmem>>, %arg2: memref<3x3x128x128xf32, #tpu.memory_space<vmem>>, %arg3: memref<1x128xf32, #tpu.memory_space<vmem>>, %arg4: memref<1x128xf32, #tpu.memory_space<vmem>>, %arg5: memref<3x3x128x128xf32, #tpu.memory_space<vmem>>, %arg6: memref<1x128xf32, #tpu.memory_space<vmem>>, %arg7: memref<1x128xf32, #tpu.memory_space<vmem>>, %arg8: memref<128x128xf32, #tpu.memory_space<vmem>>, %arg9: memref<128x128xf32, #tpu.memory_space<vmem>>, %arg10: memref<2x8x8x128xf32, #tpu.memory_space<vmem>>, %arg11: memref<2x10x10x128xf32, #tpu.memory_space<vmem>>) attributes {dimension_semantics = [#tpu.dimension_semantics<parallel>], iteration_bounds = array<i64: 2>, scalar_prefetch = 0 : i64, scratch_operands = 1 : i64, tpu.core_type = #tpu.core_type<tc>, window_params = [{transform_indices = @transform_0, window_bounds = array<i64: 2, 10, 10, 128>}, {pipeline_mode = #tpu.pipeline_mode<synchronous>, transform_indices = @transform_1, window_bounds = array<i64: 3, 3, 128, 128>}, {pipeline_mode = #tpu.pipeline_mode<synchronous>, transform_indices = @transform_2, window_bounds = array<i64: 1, 128>}, {pipeline_mode = #tpu.pipeline_mode<synchronous>, transform_indices = @transform_3, window_bounds = array<i64: 1, 128>}, {pipeline_mode = #tpu.pipeline_mode<synchronous>, transform_indices = @transform_4, window_bounds = array<i64: 3, 3, 128, 128>}, {pipeline_mode = #tpu.pipeline_mode<synchronous>, transform_indices = @transform_5, window_bounds = array<i64: 1, 128>}, {pipeline_mode = #tpu.pipeline_mode<synchronous>, transform_indices = @transform_6, window_bounds = array<i64: 1, 128>}, {pipeline_mode = #tpu.pipeline_mode<synchronous>, transform_indices = @transform_7, window_bounds = array<i64: 128, 128>}, {pipeline_mode = #tpu.pipeline_mode<synchronous>, transform_indices = @transform_8, window_bounds = array<i64: 128, 128>}, {transform_indices = @transform_9, window_bounds = array<i64: 2, 8, 8, 128>}]} {
    %cst = arith.constant 0.000000e+00 : f32
    %0 = vector.broadcast %cst : f32 to vector<2x1x10x128xf32>
    %c0 = arith.constant 0 : index
    %c0_0 = arith.constant 0 : index
    %c0_1 = arith.constant 0 : index
    %c0_2 = arith.constant 0 : index
    %1 = vector.load %arg11[%c0, %c0_0, %c0_1, %c0_2] : memref<2x10x10x128xf32, #tpu.memory_space<vmem>>, vector<2x1x10x128xf32>
    tpu.vector_store %arg11[%c0, %c0_0, %c0_1, %c0_2], %0 {strides = array<i32>} : memref<2x10x10x128xf32, #tpu.memory_space<vmem>>, vector<2x1x10x128xf32>,
    %cst_3 = arith.constant 0.000000e+00 : f32
    %2 = vector.broadcast %cst_3 : f32 to vector<2x1x10x128xf32>
    %c0_4 = arith.constant 0 : index
    %c9 = arith.constant 9 : index
    %c0_5 = arith.constant 0 : index
    %c0_6 = arith.constant 0 : index
    %3 = vector.load %arg11[%c0_4, %c9, %c0_5, %c0_6] : memref<2x10x10x128xf32, #tpu.memory_space<vmem>>, vector<2x1x10x128xf32>
    tpu.vector_store %arg11[%c0_4, %c9, %c0_5, %c0_6], %2 {strides = array<i32>} : memref<2x10x10x128xf32, #tpu.memory_space<vmem>>, vector<2x1x10x128xf32>,
    %cst_7 = arith.constant 0.000000e+00 : f32
    %4 = vector.broadcast %cst_7 : f32 to vector<2x10x1x128xf32>
    %c0_8 = arith.constant 0 : index
    %c0_9 = arith.constant 0 : index
    %c0_10 = arith.constant 0 : index
    %c0_11 = arith.constant 0 : index
    %5 = vector.load %arg11[%c0_8, %c0_9, %c0_10, %c0_11] : memref<2x10x10x128xf32, #tpu.memory_space<vmem>>, vector<2x10x1x128xf32>
    tpu.vector_store %arg11[%c0_8, %c0_9, %c0_10, %c0_11], %4 {strides = array<i32>} : memref<2x10x10x128xf32, #tpu.memory_space<vmem>>, vector<2x10x1x128xf32>,
    %cst_12 = arith.constant 0.000000e+00 : f32
    %6 = vector.broadcast %cst_12 : f32 to vector<2x10x1x128xf32>
    %c0_13 = arith.constant 0 : index
    %c0_14 = arith.constant 0 : index
    %c9_15 = arith.constant 9 : index
    %c0_16 = arith.constant 0 : index
    %7 = vector.load %arg11[%c0_13, %c0_14, %c9_15, %c0_16] : memref<2x10x10x128xf32, #tpu.memory_space<vmem>>, vector<2x10x1x128xf32>
    tpu.vector_store %arg11[%c0_13, %c0_14, %c9_15, %c0_16], %6 {strides = array<i32>} : memref<2x10x10x128xf32, #tpu.memory_space<vmem>>, vector<2x10x1x128xf32>,
    %c0_17 = arith.constant 0 : index
    %c0_18 = arith.constant 0 : index
    %8 = vector.load %arg3[%c0_17, %c0_18] : memref<1x128xf32, #tpu.memory_space<vmem>>, vector<1x128xf32>
    %c0_19 = arith.constant 0 : index
    %c0_20 = arith.constant 0 : index
    %9 = vector.load %arg4[%c0_19, %c0_20] : memref<1x128xf32, #tpu.memory_space<vmem>>, vector<1x128xf32>
    %c0_21 = arith.constant 0 : index
    %c0_22 = arith.constant 0 : index
    %10 = vector.load %arg6[%c0_21, %c0_22] : memref<1x128xf32, #tpu.memory_space<vmem>>, vector<1x128xf32>
    %c0_23 = arith.constant 0 : index
    %c0_24 = arith.constant 0 : index
    %11 = vector.load %arg7[%c0_23, %c0_24] : memref<1x128xf32, #tpu.memory_space<vmem>>, vector<1x128xf32>
    %cst_25 = arith.constant 0.000000e+00 : f32
    %12 = vector.broadcast %cst_25 : f32 to vector<128x128xf32>
    %c0_26 = arith.constant 0 : index
    %c0_27 = arith.constant 0 : index
    %c0_28 = arith.constant 0 : index
    %c0_29 = arith.constant 0 : index
    %13 = vector.load %arg1[%c0_26, %c0_27, %c0_28, %c0_29] : memref<2x10x10x128xf32, #tpu.memory_space<vmem>>, vector<2x8x8x128xf32>
    %14 = vector.shape_cast %13 : vector<2x8x8x128xf32> to vector<128x128xf32>
    %c0_30 = arith.constant 0 : index
    %c0_31 = arith.constant 0 : index
    %c0_32 = arith.constant 0 : index
    %c0_33 = arith.constant 0 : index
    %15 = vector.load %arg2[%c0_30, %c0_31, %c0_32, %c0_33] : memref<3x3x128x128xf32, #tpu.memory_space<vmem>>, vector<1x1x128x128xf32>
    %16 = vector.shape_cast %15 : vector<1x1x128x128xf32> to vector<128x128xf32>
    %cst_34 = arith.constant dense<0.000000e+00> : vector<128x128xf32>
    %17 = tpu.matmul %14, %16, %cst_34 {dimension_numbers = #tpu.dot_dimension_numbers<[1], [0], [0], [1], [0, 0, 1, 1], [], []>} : vector<128x128xf32>, vector<128x128xf32>, vector<128x128xf32> -> vector<128x128xf32>
    %18 = arith.addf %12, %17 : vector<128x128xf32>
    %c0_35 = arith.constant 0 : index
    %c0_36 = arith.constant 0 : index
    %c1 = arith.constant 1 : index
    %c0_37 = arith.constant 0 : index
    %19 = vector.load %arg1[%c0_35, %c0_36, %c1, %c0_37] : memref<2x10x10x128xf32, #tpu.memory_space<vmem>>, vector<2x8x8x128xf32>
    %20 = vector.shape_cast %19 : vector<2x8x8x128xf32> to vector<128x128xf32>
    %c0_38 = arith.constant 0 : index
    %c1_39 = arith.constant 1 : index
    %c0_40 = arith.constant 0 : index
    %c0_41 = arith.constant 0 : index
    %21 = vector.load %arg2[%c0_38, %c1_39, %c0_40, %c0_41] : memref<3x3x128x128xf32, #tpu.memory_space<vmem>>, vector<1x1x128x128xf32>
    %22 = vector.shape_cast %21 : vector<1x1x128x128xf32> to vector<128x128xf32>
    %cst_42 = arith.constant dense<0.000000e+00> : vector<128x128xf32>
    %23 = tpu.matmul %20, %22, %cst_42 {dimension_numbers = #tpu.dot_dimension_numbers<[1], [0], [0], [1], [0, 0, 1, 1], [], []>} : vector<128x128xf32>, vector<128x128xf32>, vector<128x128xf32> -> vector<128x128xf32>
    %24 = arith.addf %18, %23 : vector<128x128xf32>
    %c0_43 = arith.constant 0 : index
    %c0_44 = arith.constant 0 : index
    %c2 = arith.constant 2 : index
    %c0_45 = arith.constant 0 : index
    %25 = vector.load %arg1[%c0_43, %c0_44, %c2, %c0_45] : memref<2x10x10x128xf32, #tpu.memory_space<vmem>>, vector<2x8x8x128xf32>
    %26 = vector.shape_cast %25 : vector<2x8x8x128xf32> to vector<128x128xf32>
    %c0_46 = arith.constant 0 : index
    %c2_47 = arith.constant 2 : index
    %c0_48 = arith.constant 0 : index
    %c0_49 = arith.constant 0 : index
    %27 = vector.load %arg2[%c0_46, %c2_47, %c0_48, %c0_49] : memref<3x3x128x128xf32, #tpu.memory_space<vmem>>, vector<1x1x128x128xf32>
    %28 = vector.shape_cast %27 : vector<1x1x128x128xf32> to vector<128x128xf32>
    %cst_50 = arith.constant dense<0.000000e+00> : vector<128x128xf32>
    %29 = tpu.matmul %26, %28, %cst_50 {dimension_numbers = #tpu.dot_dimension_numbers<[1], [0], [0], [1], [0, 0, 1, 1], [], []>} : vector<128x128xf32>, vector<128x128xf32>, vector<128x128xf32> -> vector<128x128xf32>
    %30 = arith.addf %24, %29 : vector<128x128xf32>
    %c0_51 = arith.constant 0 : index
    %c1_52 = arith.constant 1 : index
    %c0_53 = arith.constant 0 : index
    %c0_54 = arith.constant 0 : index
    %31 = vector.load %arg1[%c0_51, %c1_52, %c0_53, %c0_54] : memref<2x10x10x128xf32, #tpu.memory_space<vmem>>, vector<2x8x8x128xf32>
    %32 = vector.shape_cast %31 : vector<2x8x8x128xf32> to vector<128x128xf32>
    %c1_55 = arith.constant 1 : index
    %c0_56 = arith.constant 0 : index
    %c0_57 = arith.constant 0 : index
    %c0_58 = arith.constant 0 : index
    %33 = vector.load %arg2[%c1_55, %c0_56, %c0_57, %c0_58] : memref<3x3x128x128xf32, #tpu.memory_space<vmem>>, vector<1x1x128x128xf32>
    %34 = vector.shape_cast %33 : vector<1x1x128x128xf32> to vector<128x128xf32>
    %cst_59 = arith.constant dense<0.000000e+00> : vector<128x128xf32>
    %35 = tpu.matmul %32, %34, %cst_59 {dimension_numbers = #tpu.dot_dimension_numbers<[1], [0], [0], [1], [0, 0, 1, 1], [], []>} : vector<128x128xf32>, vector<128x128xf32>, vector<128x128xf32> -> vector<128x128xf32>
    %36 = arith.addf %30, %35 : vector<128x128xf32>
    %c0_60 = arith.constant 0 : index
    %c1_61 = arith.constant 1 : index
    %c1_62 = arith.constant 1 : index
    %c0_63 = arith.constant 0 : index
    %37 = vector.load %arg1[%c0_60, %c1_61, %c1_62, %c0_63] : memref<2x10x10x128xf32, #tpu.memory_space<vmem>>, vector<2x8x8x128xf32>
    %38 = vector.shape_cast %37 : vector<2x8x8x128xf32> to vector<128x128xf32>
    %c1_64 = arith.constant 1 : index
    %c1_65 = arith.constant 1 : index
    %c0_66 = arith.constant 0 : index
    %c0_67 = arith.constant 0 : index
    %39 = vector.load %arg2[%c1_64, %c1_65, %c0_66, %c0_67] : memref<3x3x128x128xf32, #tpu.memory_space<vmem>>, vector<1x1x128x128xf32>
    %40 = vector.shape_cast %39 : vector<1x1x128x128xf32> to vector<128x128xf32>
    %cst_68 = arith.constant dense<0.000000e+00> : vector<128x128xf32>
    %41 = tpu.matmul %38, %40, %cst_68 {dimension_numbers = #tpu.dot_dimension_numbers<[1], [0], [0], [1], [0, 0, 1, 1], [], []>} : vector<128x128xf32>, vector<128x128xf32>, vector<128x128xf32> -> vector<128x128xf32>
    %42 = arith.addf %36, %41 : vector<128x128xf32>
    %c0_69 = arith.constant 0 : index
    %c1_70 = arith.constant 1 : index
    %c2_71 = arith.constant 2 : index
    %c0_72 = arith.constant 0 : index
    %43 = vector.load %arg1[%c0_69, %c1_70, %c2_71, %c0_72] : memref<2x10x10x128xf32, #tpu.memory_space<vmem>>, vector<2x8x8x128xf32>
    %44 = vector.shape_cast %43 : vector<2x8x8x128xf32> to vector<128x128xf32>
    %c1_73 = arith.constant 1 : index
    %c2_74 = arith.constant 2 : index
    %c0_75 = arith.constant 0 : index
    %c0_76 = arith.constant 0 : index
    %45 = vector.load %arg2[%c1_73, %c2_74, %c0_75, %c0_76] : memref<3x3x128x128xf32, #tpu.memory_space<vmem>>, vector<1x1x128x128xf32>
    %46 = vector.shape_cast %45 : vector<1x1x128x128xf32> to vector<128x128xf32>
    %cst_77 = arith.constant dense<0.000000e+00> : vector<128x128xf32>
    %47 = tpu.matmul %44, %46, %cst_77 {dimension_numbers = #tpu.dot_dimension_numbers<[1], [0], [0], [1], [0, 0, 1, 1], [], []>} : vector<128x128xf32>, vector<128x128xf32>, vector<128x128xf32> -> vector<128x128xf32>
    %48 = arith.addf %42, %47 : vector<128x128xf32>
    %c0_78 = arith.constant 0 : index
    %c2_79 = arith.constant 2 : index
    %c0_80 = arith.constant 0 : index
    %c0_81 = arith.constant 0 : index
    %49 = vector.load %arg1[%c0_78, %c2_79, %c0_80, %c0_81] : memref<2x10x10x128xf32, #tpu.memory_space<vmem>>, vector<2x8x8x128xf32>
    %50 = vector.shape_cast %49 : vector<2x8x8x128xf32> to vector<128x128xf32>
    %c2_82 = arith.constant 2 : index
    %c0_83 = arith.constant 0 : index
    %c0_84 = arith.constant 0 : index
    %c0_85 = arith.constant 0 : index
    %51 = vector.load %arg2[%c2_82, %c0_83, %c0_84, %c0_85] : memref<3x3x128x128xf32, #tpu.memory_space<vmem>>, vector<1x1x128x128xf32>
    %52 = vector.shape_cast %51 : vector<1x1x128x128xf32> to vector<128x128xf32>
    %cst_86 = arith.constant dense<0.000000e+00> : vector<128x128xf32>
    %53 = tpu.matmul %50, %52, %cst_86 {dimension_numbers = #tpu.dot_dimension_numbers<[1], [0], [0], [1], [0, 0, 1, 1], [], []>} : vector<128x128xf32>, vector<128x128xf32>, vector<128x128xf32> -> vector<128x128xf32>
    %54 = arith.addf %48, %53 : vector<128x128xf32>
    %c0_87 = arith.constant 0 : index
    %c2_88 = arith.constant 2 : index
    %c1_89 = arith.constant 1 : index
    %c0_90 = arith.constant 0 : index
    %55 = vector.load %arg1[%c0_87, %c2_88, %c1_89, %c0_90] : memref<2x10x10x128xf32, #tpu.memory_space<vmem>>, vector<2x8x8x128xf32>
    %56 = vector.shape_cast %55 : vector<2x8x8x128xf32> to vector<128x128xf32>
    %c2_91 = arith.constant 2 : index
    %c1_92 = arith.constant 1 : index
    %c0_93 = arith.constant 0 : index
    %c0_94 = arith.constant 0 : index
    %57 = vector.load %arg2[%c2_91, %c1_92, %c0_93, %c0_94] : memref<3x3x128x128xf32, #tpu.memory_space<vmem>>, vector<1x1x128x128xf32>
    %58 = vector.shape_cast %57 : vector<1x1x128x128xf32> to vector<128x128xf32>
    %cst_95 = arith.constant dense<0.000000e+00> : vector<128x128xf32>
    %59 = tpu.matmul %56, %58, %cst_95 {dimension_numbers = #tpu.dot_dimension_numbers<[1], [0], [0], [1], [0, 0, 1, 1], [], []>} : vector<128x128xf32>, vector<128x128xf32>, vector<128x128xf32> -> vector<128x128xf32>
    %60 = arith.addf %54, %59 : vector<128x128xf32>
    %c0_96 = arith.constant 0 : index
    %c2_97 = arith.constant 2 : index
    %c2_98 = arith.constant 2 : index
    %c0_99 = arith.constant 0 : index
    %61 = vector.load %arg1[%c0_96, %c2_97, %c2_98, %c0_99] : memref<2x10x10x128xf32, #tpu.memory_space<vmem>>, vector<2x8x8x128xf32>
    %62 = vector.shape_cast %61 : vector<2x8x8x128xf32> to vector<128x128xf32>
    %c2_100 = arith.constant 2 : index
    %c2_101 = arith.constant 2 : index
    %c0_102 = arith.constant 0 : index
    %c0_103 = arith.constant 0 : index
    %63 = vector.load %arg2[%c2_100, %c2_101, %c0_102, %c0_103] : memref<3x3x128x128xf32, #tpu.memory_space<vmem>>, vector<1x1x128x128xf32>
    %64 = vector.shape_cast %63 : vector<1x1x128x128xf32> to vector<128x128xf32>
    %cst_104 = arith.constant dense<0.000000e+00> : vector<128x128xf32>
    %65 = tpu.matmul %62, %64, %cst_104 {dimension_numbers = #tpu.dot_dimension_numbers<[1], [0], [0], [1], [0, 0, 1, 1], [], []>} : vector<128x128xf32>, vector<128x128xf32>, vector<128x128xf32> -> vector<128x128xf32>
    %66 = arith.addf %60, %65 : vector<128x128xf32>
    %67 = vector.broadcast %8 : vector<1x128xf32> to vector<128x128xf32>
    %68 = arith.mulf %66, %67 : vector<128x128xf32>
    %69 = vector.broadcast %9 : vector<1x128xf32> to vector<128x128xf32>
    %70 = arith.addf %68, %69 : vector<128x128xf32>
    %cst_105 = arith.constant 0.000000e+00 : f32
    %71 = vector.broadcast %cst_105 : f32 to vector<128x128xf32>
    %72 = arith.maximumf %70, %71 : vector<128x128xf32>
    %73 = vector.shape_cast %72 : vector<128x128xf32> to vector<2x8x8x128xf32>
    %c0_106 = arith.constant 0 : index
    %c1_107 = arith.constant 1 : index
    %c1_108 = arith.constant 1 : index
    %c0_109 = arith.constant 0 : index
    %74 = vector.load %arg11[%c0_106, %c1_107, %c1_108, %c0_109] : memref<2x10x10x128xf32, #tpu.memory_space<vmem>>, vector<2x8x8x128xf32>
    tpu.vector_store %arg11[%c0_106, %c1_107, %c1_108, %c0_109], %73 {strides = array<i32>} : memref<2x10x10x128xf32, #tpu.memory_space<vmem>>, vector<2x8x8x128xf32>,
    %cst_110 = arith.constant 0.000000e+00 : f32
    %75 = vector.broadcast %cst_110 : f32 to vector<128x128xf32>
    %c0_111 = arith.constant 0 : index
    %c0_112 = arith.constant 0 : index
    %c0_113 = arith.constant 0 : index
    %c0_114 = arith.constant 0 : index
    %76 = vector.load %arg11[%c0_111, %c0_112, %c0_113, %c0_114] : memref<2x10x10x128xf32, #tpu.memory_space<vmem>>, vector<2x8x8x128xf32>
    %77 = vector.shape_cast %76 : vector<2x8x8x128xf32> to vector<128x128xf32>
    %c0_115 = arith.constant 0 : index
    %c0_116 = arith.constant 0 : index
    %c0_117 = arith.constant 0 : index
    %c0_118 = arith.constant 0 : index
    %78 = vector.load %arg5[%c0_115, %c0_116, %c0_117, %c0_118] : memref<3x3x128x128xf32, #tpu.memory_space<vmem>>, vector<1x1x128x128xf32>
    %79 = vector.shape_cast %78 : vector<1x1x128x128xf32> to vector<128x128xf32>
    %cst_119 = arith.constant dense<0.000000e+00> : vector<128x128xf32>
    %80 = tpu.matmul %77, %79, %cst_119 {dimension_numbers = #tpu.dot_dimension_numbers<[1], [0], [0], [1], [0, 0, 1, 1], [], []>} : vector<128x128xf32>, vector<128x128xf32>, vector<128x128xf32> -> vector<128x128xf32>
    %81 = arith.addf %75, %80 : vector<128x128xf32>
    %c0_120 = arith.constant 0 : index
    %c0_121 = arith.constant 0 : index
    %c1_122 = arith.constant 1 : index
    %c0_123 = arith.constant 0 : index
    %82 = vector.load %arg11[%c0_120, %c0_121, %c1_122, %c0_123] : memref<2x10x10x128xf32, #tpu.memory_space<vmem>>, vector<2x8x8x128xf32>
    %83 = vector.shape_cast %82 : vector<2x8x8x128xf32> to vector<128x128xf32>
    %c0_124 = arith.constant 0 : index
    %c1_125 = arith.constant 1 : index
    %c0_126 = arith.constant 0 : index
    %c0_127 = arith.constant 0 : index
    %84 = vector.load %arg5[%c0_124, %c1_125, %c0_126, %c0_127] : memref<3x3x128x128xf32, #tpu.memory_space<vmem>>, vector<1x1x128x128xf32>
    %85 = vector.shape_cast %84 : vector<1x1x128x128xf32> to vector<128x128xf32>
    %cst_128 = arith.constant dense<0.000000e+00> : vector<128x128xf32>
    %86 = tpu.matmul %83, %85, %cst_128 {dimension_numbers = #tpu.dot_dimension_numbers<[1], [0], [0], [1], [0, 0, 1, 1], [], []>} : vector<128x128xf32>, vector<128x128xf32>, vector<128x128xf32> -> vector<128x128xf32>
    %87 = arith.addf %81, %86 : vector<128x128xf32>
    %c0_129 = arith.constant 0 : index
    %c0_130 = arith.constant 0 : index
    %c2_131 = arith.constant 2 : index
    %c0_132 = arith.constant 0 : index
    %88 = vector.load %arg11[%c0_129, %c0_130, %c2_131, %c0_132] : memref<2x10x10x128xf32, #tpu.memory_space<vmem>>, vector<2x8x8x128xf32>
    %89 = vector.shape_cast %88 : vector<2x8x8x128xf32> to vector<128x128xf32>
    %c0_133 = arith.constant 0 : index
    %c2_134 = arith.constant 2 : index
    %c0_135 = arith.constant 0 : index
    %c0_136 = arith.constant 0 : index
    %90 = vector.load %arg5[%c0_133, %c2_134, %c0_135, %c0_136] : memref<3x3x128x128xf32, #tpu.memory_space<vmem>>, vector<1x1x128x128xf32>
    %91 = vector.shape_cast %90 : vector<1x1x128x128xf32> to vector<128x128xf32>
    %cst_137 = arith.constant dense<0.000000e+00> : vector<128x128xf32>
    %92 = tpu.matmul %89, %91, %cst_137 {dimension_numbers = #tpu.dot_dimension_numbers<[1], [0], [0], [1], [0, 0, 1, 1], [], []>} : vector<128x128xf32>, vector<128x128xf32>, vector<128x128xf32> -> vector<128x128xf32>
    %93 = arith.addf %87, %92 : vector<128x128xf32>
    %c0_138 = arith.constant 0 : index
    %c1_139 = arith.constant 1 : index
    %c0_140 = arith.constant 0 : index
    %c0_141 = arith.constant 0 : index
    %94 = vector.load %arg11[%c0_138, %c1_139, %c0_140, %c0_141] : memref<2x10x10x128xf32, #tpu.memory_space<vmem>>, vector<2x8x8x128xf32>
    %95 = vector.shape_cast %94 : vector<2x8x8x128xf32> to vector<128x128xf32>
    %c1_142 = arith.constant 1 : index
    %c0_143 = arith.constant 0 : index
    %c0_144 = arith.constant 0 : index
    %c0_145 = arith.constant 0 : index
    %96 = vector.load %arg5[%c1_142, %c0_143, %c0_144, %c0_145] : memref<3x3x128x128xf32, #tpu.memory_space<vmem>>, vector<1x1x128x128xf32>
    %97 = vector.shape_cast %96 : vector<1x1x128x128xf32> to vector<128x128xf32>
    %cst_146 = arith.constant dense<0.000000e+00> : vector<128x128xf32>
    %98 = tpu.matmul %95, %97, %cst_146 {dimension_numbers = #tpu.dot_dimension_numbers<[1], [0], [0], [1], [0, 0, 1, 1], [], []>} : vector<128x128xf32>, vector<128x128xf32>, vector<128x128xf32> -> vector<128x128xf32>
    %99 = arith.addf %93, %98 : vector<128x128xf32>
    %c0_147 = arith.constant 0 : index
    %c1_148 = arith.constant 1 : index
    %c1_149 = arith.constant 1 : index
    %c0_150 = arith.constant 0 : index
    %100 = vector.load %arg11[%c0_147, %c1_148, %c1_149, %c0_150] : memref<2x10x10x128xf32, #tpu.memory_space<vmem>>, vector<2x8x8x128xf32>
    %101 = vector.shape_cast %100 : vector<2x8x8x128xf32> to vector<128x128xf32>
    %c1_151 = arith.constant 1 : index
    %c1_152 = arith.constant 1 : index
    %c0_153 = arith.constant 0 : index
    %c0_154 = arith.constant 0 : index
    %102 = vector.load %arg5[%c1_151, %c1_152, %c0_153, %c0_154] : memref<3x3x128x128xf32, #tpu.memory_space<vmem>>, vector<1x1x128x128xf32>
    %103 = vector.shape_cast %102 : vector<1x1x128x128xf32> to vector<128x128xf32>
    %cst_155 = arith.constant dense<0.000000e+00> : vector<128x128xf32>
    %104 = tpu.matmul %101, %103, %cst_155 {dimension_numbers = #tpu.dot_dimension_numbers<[1], [0], [0], [1], [0, 0, 1, 1], [], []>} : vector<128x128xf32>, vector<128x128xf32>, vector<128x128xf32> -> vector<128x128xf32>
    %105 = arith.addf %99, %104 : vector<128x128xf32>
    %c0_156 = arith.constant 0 : index
    %c1_157 = arith.constant 1 : index
    %c2_158 = arith.constant 2 : index
    %c0_159 = arith.constant 0 : index
    %106 = vector.load %arg11[%c0_156, %c1_157, %c2_158, %c0_159] : memref<2x10x10x128xf32, #tpu.memory_space<vmem>>, vector<2x8x8x128xf32>
    %107 = vector.shape_cast %106 : vector<2x8x8x128xf32> to vector<128x128xf32>
    %c1_160 = arith.constant 1 : index
    %c2_161 = arith.constant 2 : index
    %c0_162 = arith.constant 0 : index
    %c0_163 = arith.constant 0 : index
    %108 = vector.load %arg5[%c1_160, %c2_161, %c0_162, %c0_163] : memref<3x3x128x128xf32, #tpu.memory_space<vmem>>, vector<1x1x128x128xf32>
    %109 = vector.shape_cast %108 : vector<1x1x128x128xf32> to vector<128x128xf32>
    %cst_164 = arith.constant dense<0.000000e+00> : vector<128x128xf32>
    %110 = tpu.matmul %107, %109, %cst_164 {dimension_numbers = #tpu.dot_dimension_numbers<[1], [0], [0], [1], [0, 0, 1, 1], [], []>} : vector<128x128xf32>, vector<128x128xf32>, vector<128x128xf32> -> vector<128x128xf32>
    %111 = arith.addf %105, %110 : vector<128x128xf32>
    %c0_165 = arith.constant 0 : index
    %c2_166 = arith.constant 2 : index
    %c0_167 = arith.constant 0 : index
    %c0_168 = arith.constant 0 : index
    %112 = vector.load %arg11[%c0_165, %c2_166, %c0_167, %c0_168] : memref<2x10x10x128xf32, #tpu.memory_space<vmem>>, vector<2x8x8x128xf32>
    %113 = vector.shape_cast %112 : vector<2x8x8x128xf32> to vector<128x128xf32>
    %c2_169 = arith.constant 2 : index
    %c0_170 = arith.constant 0 : index
    %c0_171 = arith.constant 0 : index
    %c0_172 = arith.constant 0 : index
    %114 = vector.load %arg5[%c2_169, %c0_170, %c0_171, %c0_172] : memref<3x3x128x128xf32, #tpu.memory_space<vmem>>, vector<1x1x128x128xf32>
    %115 = vector.shape_cast %114 : vector<1x1x128x128xf32> to vector<128x128xf32>
    %cst_173 = arith.constant dense<0.000000e+00> : vector<128x128xf32>
    %116 = tpu.matmul %113, %115, %cst_173 {dimension_numbers = #tpu.dot_dimension_numbers<[1], [0], [0], [1], [0, 0, 1, 1], [], []>} : vector<128x128xf32>, vector<128x128xf32>, vector<128x128xf32> -> vector<128x128xf32>
    %117 = arith.addf %111, %116 : vector<128x128xf32>
    %c0_174 = arith.constant 0 : index
    %c2_175 = arith.constant 2 : index
    %c1_176 = arith.constant 1 : index
    %c0_177 = arith.constant 0 : index
    %118 = vector.load %arg11[%c0_174, %c2_175, %c1_176, %c0_177] : memref<2x10x10x128xf32, #tpu.memory_space<vmem>>, vector<2x8x8x128xf32>
    %119 = vector.shape_cast %118 : vector<2x8x8x128xf32> to vector<128x128xf32>
    %c2_178 = arith.constant 2 : index
    %c1_179 = arith.constant 1 : index
    %c0_180 = arith.constant 0 : index
    %c0_181 = arith.constant 0 : index
    %120 = vector.load %arg5[%c2_178, %c1_179, %c0_180, %c0_181] : memref<3x3x128x128xf32, #tpu.memory_space<vmem>>, vector<1x1x128x128xf32>
    %121 = vector.shape_cast %120 : vector<1x1x128x128xf32> to vector<128x128xf32>
    %cst_182 = arith.constant dense<0.000000e+00> : vector<128x128xf32>
    %122 = tpu.matmul %119, %121, %cst_182 {dimension_numbers = #tpu.dot_dimension_numbers<[1], [0], [0], [1], [0, 0, 1, 1], [], []>} : vector<128x128xf32>, vector<128x128xf32>, vector<128x128xf32> -> vector<128x128xf32>
    %123 = arith.addf %117, %122 : vector<128x128xf32>
    %c0_183 = arith.constant 0 : index
    %c2_184 = arith.constant 2 : index
    %c2_185 = arith.constant 2 : index
    %c0_186 = arith.constant 0 : index
    %124 = vector.load %arg11[%c0_183, %c2_184, %c2_185, %c0_186] : memref<2x10x10x128xf32, #tpu.memory_space<vmem>>, vector<2x8x8x128xf32>
    %125 = vector.shape_cast %124 : vector<2x8x8x128xf32> to vector<128x128xf32>
    %c2_187 = arith.constant 2 : index
    %c2_188 = arith.constant 2 : index
    %c0_189 = arith.constant 0 : index
    %c0_190 = arith.constant 0 : index
    %126 = vector.load %arg5[%c2_187, %c2_188, %c0_189, %c0_190] : memref<3x3x128x128xf32, #tpu.memory_space<vmem>>, vector<1x1x128x128xf32>
    %127 = vector.shape_cast %126 : vector<1x1x128x128xf32> to vector<128x128xf32>
    %cst_191 = arith.constant dense<0.000000e+00> : vector<128x128xf32>
    %128 = tpu.matmul %125, %127, %cst_191 {dimension_numbers = #tpu.dot_dimension_numbers<[1], [0], [0], [1], [0, 0, 1, 1], [], []>} : vector<128x128xf32>, vector<128x128xf32>, vector<128x128xf32> -> vector<128x128xf32>
    %129 = arith.addf %123, %128 : vector<128x128xf32>
    %130 = vector.broadcast %10 : vector<1x128xf32> to vector<128x128xf32>
    %131 = arith.mulf %129, %130 : vector<128x128xf32>
    %132 = vector.broadcast %11 : vector<1x128xf32> to vector<128x128xf32>
    %133 = arith.addf %131, %132 : vector<128x128xf32>
    %134 = vector.shape_cast %133 : vector<128x128xf32> to vector<2x8x8x128xf32>
    %135 = vector.shape_cast %133 : vector<128x128xf32> to vector<2x64x128xf32>
    %cst_192 = arith.constant dense<0.000000e+00> : vector<2x128xf32>
    %136 = vector.multi_reduction <add>, %135, %cst_192 [1] : vector<2x64x128xf32> to vector<2x128xf32>
    %cst_193 = arith.constant 1.562500e-02 : f32
    %137 = vector.broadcast %cst_193 : f32 to vector<2x128xf32>
    %138 = arith.mulf %136, %137 : vector<2x128xf32>
    %c0_194 = arith.constant 0 : index
    %c0_195 = arith.constant 0 : index
    %139 = vector.load %arg8[%c0_194, %c0_195] : memref<128x128xf32, #tpu.memory_space<vmem>>, vector<128x128xf32>
    %cst_196 = arith.constant dense<0.000000e+00> : vector<2x128xf32>
    %140 = tpu.matmul %138, %139, %cst_196 {dimension_numbers = #tpu.dot_dimension_numbers<[1], [0], [0], [1], [0, 0, 1, 1], [], []>} : vector<2x128xf32>, vector<128x128xf32>, vector<2x128xf32> -> vector<2x128xf32>
    %cst_197 = arith.constant 0.000000e+00 : f32
    %141 = vector.broadcast %cst_197 : f32 to vector<2x128xf32>
    %142 = arith.maximumf %140, %141 : vector<2x128xf32>
    %c0_198 = arith.constant 0 : index
    %c0_199 = arith.constant 0 : index
    %143 = vector.load %arg9[%c0_198, %c0_199] : memref<128x128xf32, #tpu.memory_space<vmem>>, vector<128x128xf32>
    %cst_200 = arith.constant dense<0.000000e+00> : vector<2x128xf32>
    %144 = tpu.matmul %142, %143, %cst_200 {dimension_numbers = #tpu.dot_dimension_numbers<[1], [0], [0], [1], [0, 0, 1, 1], [], []>} : vector<2x128xf32>, vector<128x128xf32>, vector<2x128xf32> -> vector<2x128xf32>
    %145 = arith.negf %144 : vector<2x128xf32>
    %146 = math.exp %145 : vector<2x128xf32>
    %cst_201 = arith.constant 1.000000e+00 : f32
    %147 = vector.broadcast %cst_201 : f32 to vector<2x128xf32>
    %148 = arith.addf %147, %146 : vector<2x128xf32>
    %149 = arith.divf %147, %148 : vector<2x128xf32>
    %c0_202 = arith.constant 0 : index
    %c1_203 = arith.constant 1 : index
    %c1_204 = arith.constant 1 : index
    %c0_205 = arith.constant 0 : index
    %150 = vector.load %arg1[%c0_202, %c1_203, %c1_204, %c0_205] : memref<2x10x10x128xf32, #tpu.memory_space<vmem>>, vector<2x8x8x128xf32>
    %151 = vector.shape_cast %149 : vector<2x128xf32> to vector<2x1x1x128xf32>
    %152 = vector.broadcast %151 : vector<2x1x1x128xf32> to vector<2x8x8x128xf32>
    %153 = arith.mulf %134, %152 : vector<2x8x8x128xf32>
    %154 = arith.addf %153, %150 : vector<2x8x8x128xf32>
    %cst_206 = arith.constant 0.000000e+00 : f32
    %155 = vector.broadcast %cst_206 : f32 to vector<2x8x8x128xf32>
    %156 = arith.maximumf %154, %155 : vector<2x8x8x128xf32>
    %c0_207 = arith.constant 0 : index
    %c0_208 = arith.constant 0 : index
    %c0_209 = arith.constant 0 : index
    %c0_210 = arith.constant 0 : index
    %157 = vector.load %arg10[%c0_207, %c0_208, %c0_209, %c0_210] : memref<2x8x8x128xf32, #tpu.memory_space<vmem>>, vector<2x8x8x128xf32>
    tpu.vector_store %arg10[%c0_207, %c0_208, %c0_209, %c0_210], %156 {strides = array<i32>} : memref<2x8x8x128xf32, #tpu.memory_space<vmem>>, vector<2x8x8x128xf32>,
    return
  }
  func.func @transform_0(%arg0: i32) -> (i32, i32, i32, i32) {
    %c0_i32 = arith.constant 0 : i32
    %c0_i32_0 = arith.constant 0 : i32
    %c0_i32_1 = arith.constant 0 : i32
    %c0_i32_2 = arith.constant 0 : i32
    return %arg0, %c0_i32, %c0_i32_0, %c0_i32_1 : i32, i32, i32, i32
  }
  func.func @transform_1(%arg0: i32) -> (i32, i32, i32, i32) {
    %c0_i32 = arith.constant 0 : i32
    %c0_i32_0 = arith.constant 0 : i32
    %c0_i32_1 = arith.constant 0 : i32
    %c0_i32_2 = arith.constant 0 : i32
    %c0_i32_3 = arith.constant 0 : i32
    return %c0_i32, %c0_i32_0, %c0_i32_1, %c0_i32_2 : i32, i32, i32, i32
  }
  func.func @transform_2(%arg0: i32) -> (i32, i32) {
    %c0_i32 = arith.constant 0 : i32
    %c0_i32_0 = arith.constant 0 : i32
    %c0_i32_1 = arith.constant 0 : i32
    return %c0_i32, %c0_i32_0 : i32, i32
  }
  func.func @transform_3(%arg0: i32) -> (i32, i32) {
    %c0_i32 = arith.constant 0 : i32
    %c0_i32_0 = arith.constant 0 : i32
    %c0_i32_1 = arith.constant 0 : i32
    return %c0_i32, %c0_i32_0 : i32, i32
  }
  func.func @transform_4(%arg0: i32) -> (i32, i32, i32, i32) {
    %c0_i32 = arith.constant 0 : i32
    %c0_i32_0 = arith.constant 0 : i32
    %c0_i32_1 = arith.constant 0 : i32
    %c0_i32_2 = arith.constant 0 : i32
    %c0_i32_3 = arith.constant 0 : i32
    return %c0_i32, %c0_i32_0, %c0_i32_1, %c0_i32_2 : i32, i32, i32, i32
  }
  func.func @transform_5(%arg0: i32) -> (i32, i32) {
    %c0_i32 = arith.constant 0 : i32
    %c0_i32_0 = arith.constant 0 : i32
    %c0_i32_1 = arith.constant 0 : i32
    return %c0_i32, %c0_i32_0 : i32, i32
  }
  func.func @transform_6(%arg0: i32) -> (i32, i32) {
    %c0_i32 = arith.constant 0 : i32
    %c0_i32_0 = arith.constant 0 : i32
    %c0_i32_1 = arith.constant 0 : i32
    return %c0_i32, %c0_i32_0 : i32, i32
  }
  func.func @transform_7(%arg0: i32) -> (i32, i32) {
    %c0_i32 = arith.constant 0 : i32
    %c0_i32_0 = arith.constant 0 : i32
    %c0_i32_1 = arith.constant 0 : i32
    return %c0_i32, %c0_i32_0 : i32, i32
  }
  func.func @transform_8(%arg0: i32) -> (i32, i32) {
    %c0_i32 = arith.constant 0 : i32
    %c0_i32_0 = arith.constant 0 : i32
    %c0_i32_1 = arith.constant 0 : i32
    return %c0_i32, %c0_i32_0 : i32, i32
  }
  func.func @transform_9(%arg0: i32) -> (i32, i32, i32, i32) {
    %c0_i32 = arith.constant 0 : i32
    %c0_i32_0 = arith.constant 0 : i32
    %c0_i32_1 = arith.constant 0 : i32
    %c0_i32_2 = arith.constant 0 : i32
    return %arg0, %c0_i32, %c0_i32_0, %c0_i32_1 : i32, i32, i32, i32
  }
}

</mosaic_0001>

<llo_original>
// kernel: tpu_custom_call.1
$region0: #{tpu_custom_call.1}
  #allocation0 [shape = 'u32[]', space=smem, size = 0x4, offset = 0x4, fixed_abs, tag = 'smem constant byte address 0x4 - core index']
  #allocation1 [shape = 'u32[144,128]{1,0:T(1,128)}', space=vmem, size = 0x12000, scoped, tag = 'internal scratch']
  #allocation2 [shape = 'f32[2,10,10,128]{3,2,1,0:T(8,128)}', space=vmem, size = 0x28000, scoped, tag = 'scratch operand']
  %s0 = inlined_call_operand.hbm [shape: f32[4,10,10,128], index: 0, kind: input, shape index: {}]
  %s1 = inlined_call_operand.hbm [shape: f32[3,3,128,128], index: 1, kind: input, shape index: {}]
  %s2 = inlined_call_operand.hbm [shape: f32[1,128], index: 2, kind: input, shape index: {}]
  %s3 = inlined_call_operand.hbm [shape: f32[1,128], index: 3, kind: input, shape index: {}]
  %s4 = inlined_call_operand.hbm [shape: f32[3,3,128,128], index: 4, kind: input, shape index: {}]
  %s5 = inlined_call_operand.hbm [shape: f32[1,128], index: 5, kind: input, shape index: {}]
  %s6 = inlined_call_operand.hbm [shape: f32[1,128], index: 6, kind: input, shape index: {}]
  %s7 = inlined_call_operand.hbm [shape: f32[128,128], index: 7, kind: input, shape index: {}]
  %s8 = inlined_call_operand.hbm [shape: f32[128,128], index: 8, kind: input, shape index: {}]
  %s9 = inlined_call_operand.hbm [shape: f32[4,8,8,128], index: 9, kind: output, shape index: {}]
  %s10 = sld [smem:[#allocation0]]
  $region105: #{tpu_custom_call.1} parent=0
    _
  %s12 = ssub.s32 1, %s10
  %s13 = scalar_select 0, %s12, %s10
  $region1: #{tpu_custom_call.1} parent=0
    #allocation3 [shape = 'u8[327680]{0}', space=vmem, size = 0x50000, scoped, tag = 'input window, operand 0']
    #allocation4 [shape = 's32[2]{0}', space=sflag, size = 0x8, scoped, tag = 'scoped memory for tpu_custom_call.1']
    #allocation5 [shape = 's32[2]{0}', space=sflag, size = 0x8, scoped, tag = 'scoped memory for tpu_custom_call.1']
    #allocation6 [shape = 'u8[589824]{0}', space=vmem, size = 0x90000, scoped, tag = 'input window, operand 1, single buffered']
    #allocation7 [shape = 's32[1]{0}', space=sflag, size = 0x4, scoped, tag = 'scoped memory for tpu_custom_call.1']
    #allocation8 [shape = 'u8[512]{0}', space=vmem, size = 0x400, scoped, tag = 'input window, operand 2, single buffered']
    #allocation9 [shape = 'u8[512]{0}', space=vmem, size = 0x400, scoped, tag = 'input window, operand 3, single buffered']
    #allocation10 [shape = 's32[1]{0}', space=sflag, size = 0x4, scoped, tag = 'scoped memory for tpu_custom_call.1']
    #allocation11 [shape = 'u8[589824]{0}', space=vmem, size = 0x90000, scoped, tag = 'input window, operand 4, single buffered']
    #allocation12 [shape = 'u8[512]{0}', space=vmem, size = 0x400, scoped, tag = 'input window, operand 5, single buffered']
    #allocation13 [shape = 's32[1]{0}', space=sflag, size = 0x4, scoped, tag = 'scoped memory for tpu_custom_call.1']
    #allocation14 [shape = 'u8[512]{0}', space=vmem, size = 0x400, scoped, tag = 'input window, operand 6, single buffered']
    #allocation15 [shape = 'u8[65536]{0}', space=vmem, size = 0x10000, scoped, tag = 'input window, operand 7, single buffered']
    #allocation16 [shape = 's32[1]{0}', space=sflag, size = 0x4, scoped, tag = 'scoped memory for tpu_custom_call.1']
    #allocation17 [shape = 'u8[65536]{0}', space=vmem, size = 0x10000, scoped, tag = 'input window, operand 8, single buffered']
    #allocation18 [shape = 'u8[131072]{0}', space=vmem, size = 0x20000, scoped, tag = 'output window, operand 0']
    %14 = vsyncpa [#allocation4], 0
    %s15 = scalar_lea.sflag [#allocation4], 1
    %16 = vsyncpa %s15, 0
    %17 = vsyncpa [#allocation7], 0
    %18 = vsyncpa [#allocation10], 0
    %19 = vsyncpa [#allocation13], 0
    %20 = vsyncpa [#allocation16], 0
    %21 = vsyncpa [#allocation5], 0
    %s22 = scalar_lea.sflag [#allocation5], 1
    %23 = vsyncpa %s22, 0
    loop: start=0, step=1, limit=4
    $region2: #{tpu_custom_call.1} parent=1 // loop_pre_header
      _
    $region3: #{tpu_custom_call.1} parent=1 // loop_header
      %s25 = sphi 0, %s29
      %p26 = scmp.ge.s32.totalorder %s25, 4
      %s35 = sphi 0, %s37
      %s38 = sphi 0, %s35
      %s39 = sphi 0, %s38
      %s55 = sphi 0, %s39
      %s59 = sphi 0, %s59
      %s61 = sphi 0, %s59
      %s62 = sphi 0, %s61
      %s76 = sphi 0, %s62
      %s80 = sphi 0, %s80
      %s82 = sphi 0, %s80
      %s83 = sphi 0, %s82
      %s97 = sphi 0, %s83
      %s101 = sphi 0, %s101
      %s103 = sphi 0, %s101
      %s104 = sphi 0, %s103
      %s118 = sphi 0, %s104
      %s122 = sphi 0, %s122
      %s124 = sphi 0, %s122
      %s125 = sphi 0, %s124
      %s139 = sphi 0, %s125
      %s143 = sphi 0, %s143
      %s145 = sphi 0, %s143
      %s146 = sphi 0, %s145
      %s160 = sphi 0, %s146
      %s164 = sphi 0, %s164
      %s166 = sphi 0, %s164
      %s167 = sphi 0, %s166
      %s181 = sphi 0, %s167
      %s185 = sphi 0, %s185
      %s187 = sphi 0, %s185
      %s188 = sphi 0, %s187
      %s202 = sphi 0, %s188
      %s206 = sphi 0, %s206
      %s208 = sphi 0, %s206
      %s209 = sphi 0, %s208
      %s223 = sphi 0, %s209
      %s229 = sphi 0, %s231
      %s232 = sphi 0, %s229
      %s233 = sphi 0, %s232
      %s249 = sphi 0, %s233
    $region4: #{tpu_custom_call.1} parent=1 // loop_header_branch
      %28 = sbr.rel (%p26) target = $region8
    $region5: #{tpu_custom_call.1} parent=1 // loop_body
      %s30 = ssub.s32 %s25, 1
      %s31 = ssub.s32 %s25, 2
      %s32 = sadd.s32 %s25, 1
      %s33 = ssub.s32 %s25, %s32
      %p34 = scmp.eq.s32.totalorder %s33, 0
      %s36 = sadd.s32 %s35, 1
      %s37 = scalar_select %p34, %s35, %s36
      %p40 = pneg %p34
      %p41 = scmp.eq.s32.totalorder %s25, 1
      %p42 = por %p40, %p41
      %p43 = scmp.ne.s32.totalorder %s35, %s38
      %p44 = scmp.eq.s32.totalorder %s25, 0
      %p45 = por %p43, %p44
      %p46 = scmp.ne.s32.totalorder %s35, %s38
      %p47 = scmp.eq.s32.totalorder %s30, 1
      %p48 = por %p46, %p47
      %p49 = scmp.ne.s32.totalorder %s38, %s39
      %p50 = scmp.eq.s32.totalorder %s30, 0
      %p51 = por %p49, %p50
      %p52 = scmp.ne.s32.totalorder %s38, %s39
      %p53 = scmp.eq.s32.totalorder %s31, 1
      %p54 = por %p52, %p53
      %p56 = scmp.ne.s32.totalorder %s39, %s55
      %p57 = scmp.eq.s32.totalorder %s31, 0
      %p58 = por %p56, %p57
      %s60 = sadd.s32 %s59, 1
      %p63 = scmp.eq.s32.totalorder %s25, 1
      %p64 = scmp.ne.s32.totalorder %s59, %s61
      %p65 = scmp.eq.s32.totalorder %s25, 0
      %p66 = por %p64, %p65
      %p67 = scmp.ne.s32.totalorder %s59, %s61
      %p68 = scmp.eq.s32.totalorder %s30, 1
      %p69 = por %p67, %p68
      %p70 = scmp.ne.s32.totalorder %s61, %s62
      %p71 = scmp.eq.s32.totalorder %s30, 0
      %p72 = por %p70, %p71
      %p73 = scmp.ne.s32.totalorder %s61, %s62
      %p74 = scmp.eq.s32.totalorder %s31, 1
      %p75 = por %p73, %p74
      %p77 = scmp.ne.s32.totalorder %s62, %s76
      %p78 = scmp.eq.s32.totalorder %s31, 0
      %p79 = por %p77, %p78
      %s81 = sadd.s32 %s80, 1
      %p84 = scmp.eq.s32.totalorder %s25, 1
      %p85 = scmp.ne.s32.totalorder %s80, %s82
      %p86 = scmp.eq.s32.totalorder %s25, 0
      %p87 = por %p85, %p86
      %p88 = scmp.ne.s32.totalorder %s80, %s82
      %p89 = scmp.eq.s32.totalorder %s30, 1
      %p90 = por %p88, %p89
      %p91 = scmp.ne.s32.totalorder %s82, %s83
      %p92 = scmp.eq.s32.totalorder %s30, 0
      %p93 = por %p91, %p92
      %p94 = scmp.ne.s32.totalorder %s82, %s83
      %p95 = scmp.eq.s32.totalorder %s31, 1
      %p96 = por %p94, %p95
      %p98 = scmp.ne.s32.totalorder %s83, %s97
      %p99 = scmp.eq.s32.totalorder %s31, 0
      %p100 = por %p98, %p99
      %s102 = sadd.s32 %s101, 1
      %p105 = scmp.eq.s32.totalorder %s25, 1
      %p106 = scmp.ne.s32.totalorder %s101, %s103
      %p107 = scmp.eq.s32.totalorder %s25, 0
      %p108 = por %p106, %p107
      %p109 = scmp.ne.s32.totalorder %s101, %s103
      %p110 = scmp.eq.s32.totalorder %s30, 1
      %p111 = por %p109, %p110
      %p112 = scmp.ne.s32.totalorder %s103, %s104
      %p113 = scmp.eq.s32.totalorder %s30, 0
      %p114 = por %p112, %p113
      %p115 = scmp.ne.s32.totalorder %s103, %s104
      %p116 = scmp.eq.s32.totalorder %s31, 1
      %p117 = por %p115, %p116
      %p119 = scmp.ne.s32.totalorder %s104, %s118
      %p120 = scmp.eq.s32.totalorder %s31, 0
      %p121 = por %p119, %p120
      %s123 = sadd.s32 %s122, 1
      %p126 = scmp.eq.s32.totalorder %s25, 1
      %p127 = scmp.ne.s32.totalorder %s122, %s124
      %p128 = scmp.eq.s32.totalorder %s25, 0
      %p129 = por %p127, %p128
      %p130 = scmp.ne.s32.totalorder %s122, %s124
      %p131 = scmp.eq.s32.totalorder %s30, 1
      %p132 = por %p130, %p131
      %p133 = scmp.ne.s32.totalorder %s124, %s125
      %p134 = scmp.eq.s32.totalorder %s30, 0
      %p135 = por %p133, %p134
      %p136 = scmp.ne.s32.totalorder %s124, %s125
      %p137 = scmp.eq.s32.totalorder %s31, 1
      %p138 = por %p136, %p137
      %p140 = scmp.ne.s32.totalorder %s125, %s139
      %p141 = scmp.eq.s32.totalorder %s31, 0
      %p142 = por %p140, %p141
      %s144 = sadd.s32 %s143, 1
      %p147 = scmp.eq.s32.totalorder %s25, 1
      %p148 = scmp.ne.s32.totalorder %s143, %s145
      %p149 = scmp.eq.s32.totalorder %s25, 0
      %p150 = por %p148, %p149
      %p151 = scmp.ne.s32.totalorder %s143, %s145
      %p152 = scmp.eq.s32.totalorder %s30, 1
      %p153 = por %p151, %p152
      %p154 = scmp.ne.s32.totalorder %s145, %s146
      %p155 = scmp.eq.s32.totalorder %s30, 0
      %p156 = por %p154, %p155
      %p157 = scmp.ne.s32.totalorder %s145, %s146
      %p158 = scmp.eq.s32.totalorder %s31, 1
      %p159 = por %p157, %p158
      %p161 = scmp.ne.s32.totalorder %s146, %s160
      %p162 = scmp.eq.s32.totalorder %s31, 0
      %p163 = por %p161, %p162
      %s165 = sadd.s32 %s164, 1
      %p168 = scmp.eq.s32.totalorder %s25, 1
      %p169 = scmp.ne.s32.totalorder %s164, %s166
      %p170 = scmp.eq.s32.totalorder %s25, 0
      %p171 = por %p169, %p170
      %p172 = scmp.ne.s32.totalorder %s164, %s166
      %p173 = scmp.eq.s32.totalorder %s30, 1
      %p174 = por %p172, %p173
      %p175 = scmp.ne.s32.totalorder %s166, %s167
      %p176 = scmp.eq.s32.totalorder %s30, 0
      %p177 = por %p175, %p176
      %p178 = scmp.ne.s32.totalorder %s166, %s167
      %p179 = scmp.eq.s32.totalorder %s31, 1
      %p180 = por %p178, %p179
      %p182 = scmp.ne.s32.totalorder %s167, %s181
      %p183 = scmp.eq.s32.totalorder %s31, 0
      %p184 = por %p182, %p183
      %s186 = sadd.s32 %s185, 1
      %p189 = scmp.eq.s32.totalorder %s25, 1
      %p190 = scmp.ne.s32.totalorder %s185, %s187
      %p191 = scmp.eq.s32.totalorder %s25, 0
      %p192 = por %p190, %p191
      %p193 = scmp.ne.s32.totalorder %s185, %s187
      %p194 = scmp.eq.s32.totalorder %s30, 1
      %p195 = por %p193, %p194
      %p196 = scmp.ne.s32.totalorder %s187, %s188
      %p197 = scmp.eq.s32.totalorder %s30, 0
      %p198 = por %p196, %p197
      %p199 = scmp.ne.s32.totalorder %s187, %s188
      %p200 = scmp.eq.s32.totalorder %s31, 1
      %p201 = por %p199, %p200
      %p203 = scmp.ne.s32.totalorder %s188, %s202
      %p204 = scmp.eq.s32.totalorder %s31, 0
      %p205 = por %p203, %p204
      %s207 = sadd.s32 %s206, 1
      %p210 = scmp.eq.s32.totalorder %s25, 1
      %p211 = scmp.ne.s32.totalorder %s206, %s208
      %p212 = scmp.eq.s32.totalorder %s25, 0
      %p213 = por %p211, %p212
      %p214 = scmp.ne.s32.totalorder %s206, %s208
      %p215 = scmp.eq.s32.totalorder %s30, 1
      %p216 = por %p214, %p215
      %p217 = scmp.ne.s32.totalorder %s208, %s209
      %p218 = scmp.eq.s32.totalorder %s30, 0
      %p219 = por %p217, %p218
      %p220 = scmp.ne.s32.totalorder %s208, %s209
      %p221 = scmp.eq.s32.totalorder %s31, 1
      %p222 = por %p220, %p221
      %p224 = scmp.ne.s32.totalorder %s209, %s223
      %p225 = scmp.eq.s32.totalorder %s31, 0
      %p226 = por %p224, %p225
      %s227 = ssub.s32 %s25, %s32
      %p228 = scmp.eq.s32.totalorder %s227, 0
      %s230 = sadd.s32 %s229, 1
      %s231 = scalar_select %p228, %s229, %s230
      %p234 = pneg %p228
      %p235 = scmp.eq.s32.totalorder %s25, 1
      %p236 = por %p234, %p235
      %p237 = scmp.ne.s32.totalorder %s229, %s232
      %p238 = scmp.eq.s32.totalorder %s25, 0
      %p239 = por %p237, %p238
      %p240 = scmp.ne.s32.totalorder %s229, %s232
      %p241 = scmp.eq.s32.totalorder %s30, 1
      %p242 = por %p240, %p241
      %p243 = scmp.ne.s32.totalorder %s232, %s233
      %p244 = scmp.eq.s32.totalorder %s30, 0
      %p245 = por %p243, %p244
      %p246 = scmp.ne.s32.totalorder %s232, %s233
      %p247 = scmp.eq.s32.totalorder %s31, 1
      %p248 = por %p246, %p247
      %p250 = scmp.ne.s32.totalorder %s233, %s249
      %p251 = scmp.eq.s32.totalorder %s31, 0
      %p252 = por %p250, %p251
      %p253 = scmp.le.s32.totalorder 1, %s25
      %p254 = scmp.lt.s32.totalorder %s25, 3
      %p255 = pnand %p253, %p254
      %p256 = pneg %p255
      // Predicated region
      $region9: #{tpu_custom_call.1} parent=5 // pred_check
        _
      $region10: #{tpu_custom_call.1} parent=5 // pred_check_branch
        %258 = sbr.rel (%p255) target = $region12
      $region11: #{tpu_custom_call.1} parent=5 // pred_region
        %s259 = ssub.s32 %s25, 1
        // Predicated region
        $region13: #{tpu_custom_call.1} parent=11 // pred_check
          %p260 = pneg %p72
        $region14: #{tpu_custom_call.1} parent=11 // pred_check_branch
          %262 = sbr.rel (%p260) target = $region16
        $region15: #{tpu_custom_call.1} parent=11 // pred_region
          %s264 = ssub.s32 18432, 18432
          %265 = vsyncadd [#allocation7], %s264
          %s266 = sshll.u32 [#allocation6], 4
          %s267 = int_to_ptr.vmem [resolvable:$true] %s266
          %272 = dma.hbm_to_vmem [thread:$0]  %s1, 18432, %s267, [#allocation7], 128, 128, 8
        $region16: #{tpu_custom_call.1} parent=11 // pred_fallthru
          _
        // Predicated region
        $region17: #{tpu_custom_call.1} parent=11 // pred_check
          %p273 = pneg %p93
        $region18: #{tpu_custom_call.1} parent=11 // pred_check_branch
          %275 = sbr.rel (%p273) target = $region20
        $region19: #{tpu_custom_call.1} parent=11 // pred_region
          %s277 = ssub.s32 16, 16
          %278 = vsyncadd [#allocation7], %s277
          %s280 = sshll.u32 [#allocation8], 4
          %s281 = int_to_ptr.vmem [resolvable:$true] %s280
          %283 = dma.hbm_to_vmem [thread:$0]  %s2, 16, %s281, [#allocation7]
        $region20: #{tpu_custom_call.1} parent=11 // pred_fallthru
          _
        // Predicated region
        $region21: #{tpu_custom_call.1} parent=11 // pred_check
          %p284 = pneg %p114
        $region22: #{tpu_custom_call.1} parent=11 // pred_check_branch
          %286 = sbr.rel (%p284) target = $region24
        $region23: #{tpu_custom_call.1} parent=11 // pred_region
          %s288 = ssub.s32 16, 16
          %289 = vsyncadd [#allocation10], %s288
          %s291 = sshll.u32 [#allocation9], 4
          %s292 = int_to_ptr.vmem [resolvable:$true] %s291
          %294 = dma.hbm_to_vmem [thread:$0]  %s3, 16, %s292, [#allocation10]
        $region24: #{tpu_custom_call.1} parent=11 // pred_fallthru
          _
        // Predicated region
        $region25: #{tpu_custom_call.1} parent=11 // pred_check
          %p295 = pneg %p135
        $region26: #{tpu_custom_call.1} parent=11 // pred_check_branch
          %297 = sbr.rel (%p295) target = $region28
        $region27: #{tpu_custom_call.1} parent=11 // pred_region
          %s299 = ssub.s32 18432, 18432
          %300 = vsyncadd [#allocation10], %s299
          %s301 = sshll.u32 [#allocation11], 4
          %s302 = int_to_ptr.vmem [resolvable:$true] %s301
          %307 = dma.hbm_to_vmem [thread:$0]  %s4, 18432, %s302, [#allocation10], 128, 128, 8
        $region28: #{tpu_custom_call.1} parent=11 // pred_fallthru
          _
        // Predicated region
        $region29: #{tpu_custom_call.1} parent=11 // pred_check
          %p308 = pneg %p156
        $region30: #{tpu_custom_call.1} parent=11 // pred_check_branch
          %310 = sbr.rel (%p308) target = $region32
        $region31: #{tpu_custom_call.1} parent=11 // pred_region
          %s312 = ssub.s32 16, 16
          %313 = vsyncadd [#allocation13], %s312
          %s315 = sshll.u32 [#allocation12], 4
          %s316 = int_to_ptr.vmem [resolvable:$true] %s315
          %318 = dma.hbm_to_vmem [thread:$0]  %s5, 16, %s316, [#allocation13]
        $region32: #{tpu_custom_call.1} parent=11 // pred_fallthru
          _
        // Predicated region
        $region33: #{tpu_custom_call.1} parent=11 // pred_check
          %p319 = pneg %p177
        $region34: #{tpu_custom_call.1} parent=11 // pred_check_branch
          %321 = sbr.rel (%p319) target = $region36
        $region35: #{tpu_custom_call.1} parent=11 // pred_region
          %s323 = ssub.s32 16, 16
          %324 = vsyncadd [#allocation13], %s323
          %s326 = sshll.u32 [#allocation14], 4
          %s327 = int_to_ptr.vmem [resolvable:$true] %s326
          %329 = dma.hbm_to_vmem [thread:$0]  %s6, 16, %s327, [#allocation13]
        $region36: #{tpu_custom_call.1} parent=11 // pred_fallthru
          _
        // Predicated region
        $region37: #{tpu_custom_call.1} parent=11 // pred_check
          %p330 = pneg %p198
        $region38: #{tpu_custom_call.1} parent=11 // pred_check_branch
          %332 = sbr.rel (%p330) target = $region40
        $region39: #{tpu_custom_call.1} parent=11 // pred_region
          %s334 = ssub.s32 2048, 2048
          %335 = vsyncadd [#allocation16], %s334
          %s336 = sshll.u32 [#allocation15], 4
          %s337 = int_to_ptr.vmem [resolvable:$true] %s336
          %342 = dma.hbm_to_vmem [thread:$0]  %s7, 2048, %s337, [#allocation16], 128, 128, 8
        $region40: #{tpu_custom_call.1} parent=11 // pred_fallthru
          _
        // Predicated region
        $region41: #{tpu_custom_call.1} parent=11 // pred_check
          %p343 = pneg %p219
        $region42: #{tpu_custom_call.1} parent=11 // pred_check_branch
          %345 = sbr.rel (%p343) target = $region44
        $region43: #{tpu_custom_call.1} parent=11 // pred_region
          %s347 = ssub.s32 2048, 2048
          %348 = vsyncadd [#allocation16], %s347
          %s349 = sshll.u32 [#allocation17], 4
          %s350 = int_to_ptr.vmem [resolvable:$true] %s349
          %355 = dma.hbm_to_vmem [thread:$0]  %s8, 2048, %s350, [#allocation16], 128, 128, 8
        $region44: #{tpu_custom_call.1} parent=11 // pred_fallthru
          _
      $region12: #{tpu_custom_call.1} parent=5 // pred_fallthru
        _
      %p356 = scmp.lt.s32.totalorder %s25, 2
      // Predicated region
      $region45: #{tpu_custom_call.1} parent=5 // pred_check
        %p357 = pneg %p356
      $region46: #{tpu_custom_call.1} parent=5 // pred_check_branch
        %359 = sbr.rel (%p357) target = $region48
      $region47: #{tpu_custom_call.1} parent=5 // pred_region
        // Predicated region
        $region49: #{tpu_custom_call.1} parent=47 // pred_check
          %p360 = pneg %p45
        $region50: #{tpu_custom_call.1} parent=47 // pred_check_branch
          %362 = sbr.rel (%p360) target = $region52
        $region51: #{tpu_custom_call.1} parent=47 // pred_region
          %s363 = sand.u32 %s35, 1
          %s364 = scalar_lea.sflag [#allocation4], %s363
          %s365 = sand.u32 %s35, 1
          %s366 = smul.addr %s365, 320
          %s367 = scalar_lea.vmem [#allocation3], %s366
          %s368 = smul.u32 2, %s25
          %s370 = ssub.s32 5120, 5120
          %371 = vsyncadd %s364, %s370
          %s372 = smul.addr %s368, 20
          %s373 = smul.addr %s372, 128
          %s374 = scalar_lea.hbm %s0, %s373
          %s375 = sshll.u32 %s367, 4
          %s376 = int_to_ptr.vmem [resolvable:$true] %s375
          %381 = dma.hbm_to_vmem [thread:$0]  %s374, 5120, %s376, %s364, 128, 128, 8
        $region52: #{tpu_custom_call.1} parent=47 // pred_fallthru
          _
      $region48: #{tpu_custom_call.1} parent=5 // pred_fallthru
        _
      %p382 = scmp.le.s32.totalorder 1, %s25
      %p383 = scmp.lt.s32.totalorder %s25, 3
      %p384 = pnand %p382, %p383
      %p385 = pneg %p384
      // Predicated region
      $region53: #{tpu_custom_call.1} parent=5 // pred_check
        _
      $region54: #{tpu_custom_call.1} parent=5 // pred_check_branch
        %387 = sbr.rel (%p384) target = $region56
      $region55: #{tpu_custom_call.1} parent=5 // pred_region
        %s388 = ssub.s32 %s25, 1
        %s389 = sand.u32 %s38, 1
        %s390 = scalar_lea.sflag [#allocation4], %s389
        %s391 = sand.u32 %s38, 1
        %s392 = smul.addr %s391, 320
        %s393 = scalar_lea.vmem [#allocation3], %s392
        // Predicated region
        $region57: #{tpu_custom_call.1} parent=55 // pred_check
          %p394 = pneg %p51
        $region58: #{tpu_custom_call.1} parent=55 // pred_check_branch
          %396 = sbr.rel (%p394) target = $region60
        $region59: #{tpu_custom_call.1} parent=55 // pred_region
          %397 = dma.done %s390, 5120
        $region60: #{tpu_custom_call.1} parent=55 // pred_fallthru
          _
        // Predicated region
        $region61: #{tpu_custom_call.1} parent=55 // pred_check
          %p398 = pneg %p72
        $region62: #{tpu_custom_call.1} parent=55 // pred_check_branch
          %400 = sbr.rel (%p398) target = $region64
        $region63: #{tpu_custom_call.1} parent=55 // pred_region
          %401 = dma.done [#allocation7], 18432
        $region64: #{tpu_custom_call.1} parent=55 // pred_fallthru
          _
        // Predicated region
        $region65: #{tpu_custom_call.1} parent=55 // pred_check
          %p402 = pneg %p93
        $region66: #{tpu_custom_call.1} parent=55 // pred_check_branch
          %404 = sbr.rel (%p402) target = $region68
        $region67: #{tpu_custom_call.1} parent=55 // pred_region
          %405 = dma.done [#allocation7], 16
        $region68: #{tpu_custom_call.1} parent=55 // pred_fallthru
          _
        // Predicated region
        $region69: #{tpu_custom_call.1} parent=55 // pred_check
          %p406 = pneg %p114
        $region70: #{tpu_custom_call.1} parent=55 // pred_check_branch
          %408 = sbr.rel (%p406) target = $region72
        $region71: #{tpu_custom_call.1} parent=55 // pred_region
          %409 = dma.done [#allocation10], 16
        $region72: #{tpu_custom_call.1} parent=55 // pred_fallthru
          _
        // Predicated region
        $region73: #{tpu_custom_call.1} parent=55 // pred_check
          %p410 = pneg %p135
        $region74: #{tpu_custom_call.1} parent=55 // pred_check_branch
          %412 = sbr.rel (%p410) target = $region76
        $region75: #{tpu_custom_call.1} parent=55 // pred_region
          %413 = dma.done [#allocation10], 18432
        $region76: #{tpu_custom_call.1} parent=55 // pred_fallthru
          _
        // Predicated region
        $region77: #{tpu_custom_call.1} parent=55 // pred_check
          %p414 = pneg %p156
        $region78: #{tpu_custom_call.1} parent=55 // pred_check_branch
          %416 = sbr.rel (%p414) target = $region80
        $region79: #{tpu_custom_call.1} parent=55 // pred_region
          %417 = dma.done [#allocation13], 16
        $region80: #{tpu_custom_call.1} parent=55 // pred_fallthru
          _
        // Predicated region
        $region81: #{tpu_custom_call.1} parent=55 // pred_check
          %p418 = pneg %p177
        $region82: #{tpu_custom_call.1} parent=55 // pred_check_branch
          %420 = sbr.rel (%p418) target = $region84
        $region83: #{tpu_custom_call.1} parent=55 // pred_region
          %421 = dma.done [#allocation13], 16
        $region84: #{tpu_custom_call.1} parent=55 // pred_fallthru
          _
        // Predicated region
        $region85: #{tpu_custom_call.1} parent=55 // pred_check
          %p422 = pneg %p198
        $region86: #{tpu_custom_call.1} parent=55 // pred_check_branch
          %424 = sbr.rel (%p422) target = $region88
        $region87: #{tpu_custom_call.1} parent=55 // pred_region
          %425 = dma.done [#allocation16], 2048
        $region88: #{tpu_custom_call.1} parent=55 // pred_fallthru
          _
        // Predicated region
        $region89: #{tpu_custom_call.1} parent=55 // pred_check
          %p426 = pneg %p219
        $region90: #{tpu_custom_call.1} parent=55 // pred_check_branch
          %428 = sbr.rel (%p426) target = $region92
        $region91: #{tpu_custom_call.1} parent=55 // pred_region
          %429 = dma.done [#allocation16], 2048
        $region92: #{tpu_custom_call.1} parent=55 // pred_fallthru
          _
        %s430 = sand.u32 %s38, 1
        %s431 = scalar_lea.sflag [#allocation4], %s430
        %s432 = sand.u32 %s38, 1
        %s433 = smul.addr %s432, 320
        %s434 = scalar_lea.vmem [#allocation3], %s433
        %p435 = pneg %p51
        %p436 = pneg %p48
        %p437 = pneg %p72
        %p438 = pneg %p69
        %p439 = pneg %p93
        %p440 = pneg %p90
        %p441 = pneg %p114
        %p442 = pneg %p111
        %p443 = pneg %p135
        %p444 = pneg %p132
        %p445 = pneg %p156
        %p446 = pneg %p153
        %p447 = pneg %p177
        %p448 = pneg %p174
        %p449 = pneg %p198
        %p450 = pneg %p195
        %p451 = pneg %p219
        %p452 = pneg %p216
        %p453 = pneg %p245
        %p454 = pneg %p242
        %s455 = sand.u32 %s232, 1
        %s456 = scalar_lea.sflag [#allocation5], %s455
        %s457 = sand.u32 %s232, 1
        %s458 = smul.addr %s457, 128
        %s459 = scalar_lea.vmem [#allocation18], %s458
        %s460 = smul.u32 2, %s30
        %s461 = smul.u32 2, %s30
        %462 = vst [vmem:[#allocation2] sm:$0xff] 0.0
        %463 = vst [vmem:[#allocation2 + $0x8] sm:$0x3] 0.0
        %464 = vst [vmem:[#allocation2 + $0xa0] sm:$0xff] 0.0
        %465 = vst [vmem:[#allocation2 + $0xa8] sm:$0x3] 0.0
        %s466 = scalar_lea.vmem [#allocation2], 144
        %467 = vst [vmem:[%s466] sm:$0xff] 0.0
        %468 = vst [vmem:[%s466 + $0x8] sm:$0x3] 0.0
        %469 = vst [vmem:[%s466 + $0xa0] sm:$0xff] 0.0
        %470 = vst [vmem:[%s466 + $0xa8] sm:$0x3] 0.0
        %471 = vst [vmem:[#allocation2] sm:$0x1] 0.0
        %472 = vst [vmem:[#allocation2 + $0x10] sm:$0x1] 0.0
        %473 = vst [vmem:[#allocation2 + $0x20] sm:$0x1] 0.0
        %474 = vst [vmem:[#allocation2 + $0x30] sm:$0x1] 0.0
        %475 = vst [vmem:[#allocation2 + $0x40] sm:$0x1] 0.0
        %476 = vst [vmem:[#allocation2 + $0x50] sm:$0x1] 0.0
        %477 = vst [vmem:[#allocation2 + $0x60] sm:$0x1] 0.0
        %478 = vst [vmem:[#allocation2 + $0x70] sm:$0x1] 0.0
        %479 = vst [vmem:[#allocation2 + $0x80] sm:$0x1] 0.0
        %480 = vst [vmem:[#allocation2 + $0x90] sm:$0x1] 0.0
        %481 = vst [vmem:[#allocation2 + $0xa0] sm:$0x1] 0.0
        %482 = vst [vmem:[#allocation2 + $0xb0] sm:$0x1] 0.0
        %483 = vst [vmem:[#allocation2 + $0xc0] sm:$0x1] 0.0
        %484 = vst [vmem:[#allocation2 + $0xd0] sm:$0x1] 0.0
        %485 = vst [vmem:[#allocation2 + $0xe0] sm:$0x1] 0.0
        %486 = vst [vmem:[#allocation2 + $0xf0] sm:$0x1] 0.0
        %487 = vst [vmem:[#allocation2 + $0x100] sm:$0x1] 0.0
        %488 = vst [vmem:[#allocation2 + $0x110] sm:$0x1] 0.0
        %489 = vst [vmem:[#allocation2 + $0x120] sm:$0x1] 0.0
        %490 = vst [vmem:[#allocation2 + $0x130] sm:$0x1] 0.0
        %491 = vst [vmem:[#allocation2 + $0x9] sm:$0x1] 0.0
        %492 = vst [vmem:[#allocation2 + $0x19] sm:$0x1] 0.0
        %493 = vst [vmem:[#allocation2 + $0x29] sm:$0x1] 0.0
        %494 = vst [vmem:[#allocation2 + $0x39] sm:$0x1] 0.0
        %495 = vst [vmem:[#allocation2 + $0x49] sm:$0x1] 0.0
        %496 = vst [vmem:[#allocation2 + $0x59] sm:$0x1] 0.0
        %497 = vst [vmem:[#allocation2 + $0x69] sm:$0x1] 0.0
        %498 = vst [vmem:[#allocation2 + $0x79] sm:$0x1] 0.0
        %499 = vst [vmem:[#allocation2 + $0x89] sm:$0x1] 0.0
        %500 = vst [vmem:[#allocation2 + $0x99] sm:$0x1] 0.0
        %501 = vst [vmem:[#allocation2 + $0xa9] sm:$0x1] 0.0
        %502 = vst [vmem:[#allocation2 + $0xb9] sm:$0x1] 0.0
        %503 = vst [vmem:[#allocation2 + $0xc9] sm:$0x1] 0.0
        %504 = vst [vmem:[#allocation2 + $0xd9] sm:$0x1] 0.0
        %505 = vst [vmem:[#allocation2 + $0xe9] sm:$0x1] 0.0
        %506 = vst [vmem:[#allocation2 + $0xf9] sm:$0x1] 0.0
        %507 = vst [vmem:[#allocation2 + $0x109] sm:$0x1] 0.0
        %508 = vst [vmem:[#allocation2 + $0x119] sm:$0x1] 0.0
        %509 = vst [vmem:[#allocation2 + $0x129] sm:$0x1] 0.0
        %510 = vst [vmem:[#allocation2 + $0x139] sm:$0x1] 0.0
        %v511 = vld [vmem:[#allocation8] sm:$0x1]
        %v512 = vld [vmem:[#allocation9] sm:$0x1]
        %v513 = vld [vmem:[#allocation12] sm:$0x1]
        %v514 = vld [vmem:[#allocation14] sm:$0x1]
        %v515 = vld [vmem:[%s393] sm:$0xff]
        %v516 = vld [vmem:[%s393 + $0x10] sm:$0xff]
        %v517 = vld [vmem:[%s393 + $0x20] sm:$0xff]
        %v518 = vld [vmem:[%s393 + $0x30] sm:$0xff]
        %v519 = vld [vmem:[%s393 + $0x40] sm:$0xff]
        %v520 = vld [vmem:[%s393 + $0x50] sm:$0xff]
        %v521 = vld [vmem:[%s393 + $0x60] sm:$0xff]
        %v522 = vld [vmem:[%s393 + $0x70] sm:$0xff]
        %v523 = vld [vmem:[%s393 + $0xa0] sm:$0xff]
        %v524 = vld [vmem:[%s393 + $0xb0] sm:$0xff]
        %v525 = vld [vmem:[%s393 + $0xc0] sm:$0xff]
        %v526 = vld [vmem:[%s393 + $0xd0] sm:$0xff]
        %v527 = vld [vmem:[%s393 + $0xe0] sm:$0xff]
        %v528 = vld [vmem:[%s393 + $0xf0] sm:$0xff]
        %v529 = vld [vmem:[%s393 + $0x100] sm:$0xff]
        %v530 = vld [vmem:[%s393 + $0x110] sm:$0xff]
        %v531 = vld [vmem:[#allocation6] sm:$0xff]
        %v532 = vld [vmem:[#allocation6 + $0x8] sm:$0xff]
        %v533 = vld [vmem:[#allocation6 + $0x10] sm:$0xff]
        %v534 = vld [vmem:[#allocation6 + $0x18] sm:$0xff]
        %v535 = vld [vmem:[#allocation6 + $0x20] sm:$0xff]
        %v536 = vld [vmem:[#allocation6 + $0x28] sm:$0xff]
        %v537 = vld [vmem:[#allocation6 + $0x30] sm:$0xff]
        %v538 = vld [vmem:[#allocation6 + $0x38] sm:$0xff]
        %v539 = vld [vmem:[#allocation6 + $0x40] sm:$0xff]
        %v540 = vld [vmem:[#allocation6 + $0x48] sm:$0xff]
        %v541 = vld [vmem:[#allocation6 + $0x50] sm:$0xff]
        %v542 = vld [vmem:[#allocation6 + $0x58] sm:$0xff]
        %v543 = vld [vmem:[#allocation6 + $0x60] sm:$0xff]
        %v544 = vld [vmem:[#allocation6 + $0x68] sm:$0xff]
        %v545 = vld [vmem:[#allocation6 + $0x70] sm:$0xff]
        %v546 = vld [vmem:[#allocation6 + $0x78] sm:$0xff]
        %v547 = vld [vmem:[%s393 + $0x1] sm:$0xff]
        %v548 = vld [vmem:[%s393 + $0x11] sm:$0xff]
        %v549 = vld [vmem:[%s393 + $0x21] sm:$0xff]
        %v550 = vld [vmem:[%s393 + $0x31] sm:$0xff]
        %v551 = vld [vmem:[%s393 + $0x41] sm:$0xff]
        %v552 = vld [vmem:[%s393 + $0x51] sm:$0xff]
        %v553 = vld [vmem:[%s393 + $0x61] sm:$0xff]
        %v554 = vld [vmem:[%s393 + $0x71] sm:$0xff]
        %v555 = vld [vmem:[%s393 + $0xa1] sm:$0xff]
        %v556 = vld [vmem:[%s393 + $0xb1] sm:$0xff]
        %v557 = vld [vmem:[%s393 + $0xc1] sm:$0xff]
        %v558 = vld [vmem:[%s393 + $0xd1] sm:$0xff]
        %v559 = vld [vmem:[%s393 + $0xe1] sm:$0xff]
        %v560 = vld [vmem:[%s393 + $0xf1] sm:$0xff]
        %v561 = vld [vmem:[%s393 + $0x101] sm:$0xff]
        %v562 = vld [vmem:[%s393 + $0x111] sm:$0xff]
        %s563 = scalar_lea.vmem [#allocation6], 128
        %v564 = vld [vmem:[%s563] sm:$0xff]
        %v565 = vld [vmem:[%s563 + $0x8] sm:$0xff]
        %v566 = vld [vmem:[%s563 + $0x10] sm:$0xff]
        %v567 = vld [vmem:[%s563 + $0x18] sm:$0xff]
        %v568 = vld [vmem:[%s563 + $0x20] sm:$0xff]
        %v569 = vld [vmem:[%s563 + $0x28] sm:$0xff]
        %v570 = vld [vmem:[%s563 + $0x30] sm:$0xff]
        %v571 = vld [vmem:[%s563 + $0x38] sm:$0xff]
        %v572 = vld [vmem:[%s563 + $0x40] sm:$0xff]
        %v573 = vld [vmem:[%s563 + $0x48] sm:$0xff]
        %v574 = vld [vmem:[%s563 + $0x50] sm:$0xff]
        %v575 = vld [vmem:[%s563 + $0x58] sm:$0xff]
        %v576 = vld [vmem:[%s563 + $0x60] sm:$0xff]
        %v577 = vld [vmem:[%s563 + $0x68] sm:$0xff]
        %v578 = vld [vmem:[%s563 + $0x70] sm:$0xff]
        %v579 = vld [vmem:[%s563 + $0x78] sm:$0xff]
        %580 = vmatprep.subr.mxu0 0.0
        %581 = vmatpush1.msra.mxu0 %v564
        %582 = vmatprep.subr.mxu0 0.0
        %583 = vmatpush1.msra.mxu0 %v565
        %584 = vmatprep.subr.mxu0 0.0
        %585 = vmatpush1.msra.mxu0 %v566
        %586 = vmatprep.subr.mxu0 0.0
        %587 = vmatpush1.msra.mxu0 %v567
        %588 = vmatprep.subr.mxu0 0.0
        %589 = vmatpush1.msra.mxu0 %v568
        %590 = vmatprep.subr.mxu0 0.0
        %591 = vmatpush1.msra.mxu0 %v569
        %592 = vmatprep.subr.mxu0 0.0
        %593 = vmatpush1.msra.mxu0 %v570
        %594 = vmatprep.subr.mxu0 0.0
        %595 = vmatpush1.msra.mxu0 %v571
        %596 = vmatprep.subr.mxu0 0.0
        %597 = vmatpush1.msra.mxu0 %v572
        %598 = vmatprep.subr.mxu0 0.0
        %599 = vmatpush1.msra.mxu0 %v573
        %600 = vmatprep.subr.mxu0 0.0
        %601 = vmatpush1.msra.mxu0 %v574
        %602 = vmatprep.subr.mxu0 0.0
        %603 = vmatpush1.msra.mxu0 %v575
        %604 = vmatprep.subr.mxu0 0.0
        %605 = vmatpush1.msra.mxu0 %v576
        %606 = vmatprep.subr.mxu0 0.0
        %607 = vmatpush1.msra.mxu0 %v577
        %608 = vmatprep.subr.mxu0 0.0
        %609 = vmatpush1.msra.mxu0 %v578
        %610 = vmatprep.subr.mxu0 0.0
        %611 = vmatpush1.msra.mxu0 %v579
        %612 = vmatprep.subr.mxu0 0.0
        %613 = vmatpush1.msra.mxu0 0.0
        %614 = vmatprep.subr.mxu0 0.0
        %615 = vmatpush1.msra.mxu0 0.0
        %616 = vmatprep.subr.mxu0 0.0
        %617 = vmatpush1.msra.mxu0 0.0
        %618 = vmatprep.subr.mxu0 0.0
        %619 = vmatpush1.msra.mxu0 0.0
        %620 = vmatprep.subr.mxu0 0.0
        %621 = vmatpush1.msra.mxu0 0.0
        %622 = vmatprep.subr.mxu0 0.0
        %623 = vmatpush1.msra.mxu0 0.0
        %624 = vmatprep.subr.mxu0 0.0
        %625 = vmatpush1.msra.mxu0 0.0
        %626 = vmatprep.subr.mxu0 0.0
        %627 = vmatpush1.msra.mxu0 0.0
        %628 = vmatprep.subr.mxu0 0.0
        %629 = vmatpush1.msra.mxu0 0.0
        %630 = vmatprep.subr.mxu0 0.0
        %631 = vmatpush1.msra.mxu0 0.0
        %632 = vmatprep.subr.mxu0 0.0
        %633 = vmatpush1.msra.mxu0 0.0
        %634 = vmatprep.subr.mxu0 0.0
        %635 = vmatpush1.msra.mxu0 0.0
        %636 = vmatprep.subr.mxu0 0.0
        %637 = vmatpush1.msra.mxu0 0.0
        %638 = vmatprep.subr.mxu0 0.0
        %639 = vmatpush1.msra.mxu0 0.0
        %640 = vmatprep.subr.mxu0 0.0
        %641 = vmatpush1.msra.mxu0 0.0
        %642 = vmatprep.subr.mxu0 0.0
        %643 = vmatpush1.msra.mxu0 0.0
        %644 = vmatprep.mubr.f32.mxu0 0.0
        %645 = vmatmul.mubr.f32.gmra.mrb[0].mxu0 %v547
        %v646 = vpop.f32.mrb[0].mxu0
        %v647 = vadd.f32 0.0, %v646
        %v648 = vpop.f32.mrb[0].mxu0
        %649 = vmatprep.mubr.f32.mxu0 0.0
        %650 = vmatmul.mubr.f32.gmra.mrb[0].mxu0 %v548
        %v651 = vpop.f32.mrb[0].mxu0
        %v652 = vadd.f32 0.0, %v651
        %v653 = vpop.f32.mrb[0].mxu0
        %654 = vmatprep.mubr.f32.mxu0 0.0
        %655 = vmatmul.mubr.f32.gmra.mrb[0].mxu0 %v549
        %v656 = vpop.f32.mrb[0].mxu0
        %v657 = vadd.f32 0.0, %v656
        %v658 = vpop.f32.mrb[0].mxu0
        %659 = vmatprep.mubr.f32.mxu0 0.0
        %660 = vmatmul.mubr.f32.gmra.mrb[0].mxu0 %v550
        %v661 = vpop.f32.mrb[0].mxu0
        %v662 = vadd.f32 0.0, %v661
        %v663 = vpop.f32.mrb[0].mxu0
        %664 = vmatprep.mubr.f32.mxu0 0.0
        %665 = vmatmul.mubr.f32.gmra.mrb[0].mxu0 %v551
        %v666 = vpop.f32.mrb[0].mxu0
        %v667 = vadd.f32 0.0, %v666
        %v668 = vpop.f32.mrb[0].mxu0
        %669 = vmatprep.mubr.f32.mxu0 0.0
        %670 = vmatmul.mubr.f32.gmra.mrb[0].mxu0 %v552
        %v671 = vpop.f32.mrb[0].mxu0
        %v672 = vadd.f32 0.0, %v671
        %v673 = vpop.f32.mrb[0].mxu0
        %674 = vmatprep.mubr.f32.mxu0 0.0
        %675 = vmatmul.mubr.f32.gmra.mrb[0].mxu0 %v553
        %v676 = vpop.f32.mrb[0].mxu0
        %v677 = vadd.f32 0.0, %v676
        %v678 = vpop.f32.mrb[0].mxu0
        %679 = vmatprep.mubr.f32.mxu0 0.0
        %680 = vmatmul.mubr.f32.gmra.mrb[0].mxu0 %v554
        %v681 = vpop.f32.mrb[0].mxu0
        %v682 = vadd.f32 0.0, %v681
        %v683 = vpop.f32.mrb[0].mxu0
        %684 = vmatprep.mubr.f32.mxu0 0.0
        %685 = vmatmul.mubr.f32.gmra.mrb[0].mxu0 %v555
        %v686 = vpop.f32.mrb[0].mxu0
        %v687 = vadd.f32 0.0, %v686
        %v688 = vpop.f32.mrb[0].mxu0
        %689 = vmatprep.mubr.f32.mxu0 0.0
        %690 = vmatmul.mubr.f32.gmra.mrb[0].mxu0 %v556
        %v691 = vpop.f32.mrb[0].mxu0
        %v692 = vadd.f32 0.0, %v691
        %v693 = vpop.f32.mrb[0].mxu0
        %694 = vmatprep.mubr.f32.mxu0 0.0
        %695 = vmatmul.mubr.f32.gmra.mrb[0].mxu0 %v557
        %v696 = vpop.f32.mrb[0].mxu0
        %v697 = vadd.f32 0.0, %v696
        %v698 = vpop.f32.mrb[0].mxu0
        %699 = vmatprep.mubr.f32.mxu0 0.0
        %700 = vmatmul.mubr.f32.gmra.mrb[0].mxu0 %v558
        %v701 = vpop.f32.mrb[0].mxu0
        %v702 = vadd.f32 0.0, %v701
        %v703 = vpop.f32.mrb[0].mxu0
        %704 = vmatprep.mubr.f32.mxu0 0.0
        %705 = vmatmul.mubr.f32.gmra.mrb[0].mxu0 %v559
        %v706 = vpop.f32.mrb[0].mxu0
        %v707 = vadd.f32 0.0, %v706
        %v708 = vpop.f32.mrb[0].mxu0
        %709 = vmatprep.mubr.f32.mxu0 0.0
        %710 = vmatmul.mubr.f32.gmra.mrb[0].mxu0 %v560
        %v711 = vpop.f32.mrb[0].mxu0
        %v712 = vadd.f32 0.0, %v711
        %v713 = vpop.f32.mrb[0].mxu0
        %714 = vmatprep.mubr.f32.mxu0 0.0
        %715 = vmatmul.mubr.f32.gmra.mrb[0].mxu0 %v561
        %v716 = vpop.f32.mrb[0].mxu0
        %v717 = vadd.f32 0.0, %v716
        %v718 = vpop.f32.mrb[0].mxu0
        %719 = vmatprep.mubr.f32.mxu0 0.0
        %720 = vmatmul.mubr.f32.gmra.mrb[0].mxu0 %v562
        %v721 = vpop.f32.mrb[0].mxu0
        %v722 = vadd.f32 0.0, %v721
        %v723 = vpop.f32.mrb[0].mxu0
        %724 = vdwg.mxu0
        %725 = vmatprep.subr.mxu0 0.0
        %726 = vmatpush1.msra.mxu0 %v531
        %727 = vmatprep.subr.mxu0 0.0
        %728 = vmatpush1.msra.mxu0 %v532
        %729 = vmatprep.subr.mxu0 0.0
        %730 = vmatpush1.msra.mxu0 %v533
        %731 = vmatprep.subr.mxu0 0.0
        %732 = vmatpush1.msra.mxu0 %v534
        %733 = vmatprep.subr.mxu0 0.0
        %734 = vmatpush1.msra.mxu0 %v535
        %735 = vmatprep.subr.mxu0 0.0
        %736 = vmatpush1.msra.mxu0 %v536
        %737 = vmatprep.subr.mxu0 0.0
        %738 = vmatpush1.msra.mxu0 %v537
        %739 = vmatprep.subr.mxu0 0.0
        %740 = vmatpush1.msra.mxu0 %v538
        %741 = vmatprep.subr.mxu0 0.0
        %742 = vmatpush1.msra.mxu0 %v539
        %743 = vmatprep.subr.mxu0 0.0
        %744 = vmatpush1.msra.mxu0 %v540
        %745 = vmatprep.subr.mxu0 0.0
        %746 = vmatpush1.msra.mxu0 %v541
        %747 = vmatprep.subr.mxu0 0.0
        %748 = vmatpush1.msra.mxu0 %v542
        %749 = vmatprep.subr.mxu0 0.0
        %750 = vmatpush1.msra.mxu0 %v543
        %751 = vmatprep.subr.mxu0 0.0
        %752 = vmatpush1.msra.mxu0 %v544
        %753 = vmatprep.subr.mxu0 0.0
        %754 = vmatpush1.msra.mxu0 %v545
        %755 = vmatprep.subr.mxu0 0.0
        %756 = vmatpush1.msra.mxu0 %v546
        %757 = vmatprep.subr.mxu0 0.0
        %758 = vmatpush1.msra.mxu0 0.0
        %759 = vmatprep.subr.mxu0 0.0
        %760 = vmatpush1.msra.mxu0 0.0
        %761 = vmatprep.subr.mxu0 0.0
        %762 = vmatpush1.msra.mxu0 0.0
        %763 = vmatprep.subr.mxu0 0.0
        %764 = vmatpush1.msra.mxu0 0.0
        %765 = vmatprep.subr.mxu0 0.0
        %766 = vmatpush1.msra.mxu0 0.0
        %767 = vmatprep.subr.mxu0 0.0
        %768 = vmatpush1.msra.mxu0 0.0
        %769 = vmatprep.subr.mxu0 0.0
        %770 = vmatpush1.msra.mxu0 0.0
        %771 = vmatprep.subr.mxu0 0.0
        %772 = vmatpush1.msra.mxu0 0.0
        %773 = vmatprep.subr.mxu0 0.0
        %774 = vmatpush1.msra.mxu0 0.0
        %775 = vmatprep.subr.mxu0 0.0
        %776 = vmatpush1.msra.mxu0 0.0
        %777 = vmatprep.subr.mxu0 0.0
        %778 = vmatpush1.msra.mxu0 0.0
        %779 = vmatprep.subr.mxu0 0.0
        %780 = vmatpush1.msra.mxu0 0.0
        %781 = vmatprep.subr.mxu0 0.0
        %782 = vmatpush1.msra.mxu0 0.0
        %783 = vmatprep.subr.mxu0 0.0
        %784 = vmatpush1.msra.mxu0 0.0
        %785 = vmatprep.subr.mxu0 0.0
        %786 = vmatpush1.msra.mxu0 0.0
        %787 = vmatprep.subr.mxu0 0.0
        %788 = vmatpush1.msra.mxu0 0.0
        %789 = vmatprep.mubr.f32.mxu0 0.0
        %790 = vmatmul.mubr.f32.gmra.mrb[0].mxu0 %v515
        %v791 = vpop.f32.mrb[0].mxu0
        %v792 = vadd.f32 %v647, %v791
        %v793 = vpop.f32.mrb[0].mxu0
        %794 = vmatprep.mubr.f32.mxu0 0.0
        %795 = vmatmul.mubr.f32.gmra.mrb[0].mxu0 %v516
        %v796 = vpop.f32.mrb[0].mxu0
        %v797 = vadd.f32 %v652, %v796
        %v798 = vpop.f32.mrb[0].mxu0
        %799 = vmatprep.mubr.f32.mxu0 0.0
        %800 = vmatmul.mubr.f32.gmra.mrb[0].mxu0 %v517
        %v801 = vpop.f32.mrb[0].mxu0
        %v802 = vadd.f32 %v657, %v801
        %v803 = vpop.f32.mrb[0].mxu0
        %804 = vmatprep.mubr.f32.mxu0 0.0
        %805 = vmatmul.mubr.f32.gmra.mrb[0].mxu0 %v518
        %v806 = vpop.f32.mrb[0].mxu0
        %v807 = vadd.f32 %v662, %v806
        %v808 = vpop.f32.mrb[0].mxu0
        %809 = vmatprep.mubr.f32.mxu0 0.0
        %810 = vmatmul.mubr.f32.gmra.mrb[0].mxu0 %v519
        %v811 = vpop.f32.mrb[0].mxu0
        %v812 = vadd.f32 %v667, %v811
        %v813 = vpop.f32.mrb[0].mxu0
        %814 = vmatprep.mubr.f32.mxu0 0.0
        %815 = vmatmul.mubr.f32.gmra.mrb[0].mxu0 %v520
        %v816 = vpop.f32.mrb[0].mxu0
        %v817 = vadd.f32 %v672, %v816
        %v818 = vpop.f32.mrb[0].mxu0
        %819 = vmatprep.mubr.f32.mxu0 0.0
        %820 = vmatmul.mubr.f32.gmra.mrb[0].mxu0 %v521
        %v821 = vpop.f32.mrb[0].mxu0
        %v822 = vadd.f32 %v677, %v821
        %v823 = vpop.f32.mrb[0].mxu0
        %824 = vmatprep.mubr.f32.mxu0 0.0
        %825 = vmatmul.mubr.f32.gmra.mrb[0].mxu0 %v522
        %v826 = vpop.f32.mrb[0].mxu0
        %v827 = vadd.f32 %v682, %v826
        %v828 = vpop.f32.mrb[0].mxu0
        %829 = vmatprep.mubr.f32.mxu0 0.0
        %830 = vmatmul.mubr.f32.gmra.mrb[0].mxu0 %v523
        %v831 = vpop.f32.mrb[0].mxu0
        %v832 = vadd.f32 %v687, %v831
        %v833 = vpop.f32.mrb[0].mxu0
        %834 = vmatprep.mubr.f32.mxu0 0.0
        %835 = vmatmul.mubr.f32.gmra.mrb[0].mxu0 %v524
        %v836 = vpop.f32.mrb[0].mxu0
        %v837 = vadd.f32 %v692, %v836
        %v838 = vpop.f32.mrb[0].mxu0
        %839 = vmatprep.mubr.f32.mxu0 0.0
        %840 = vmatmul.mubr.f32.gmra.mrb[0].mxu0 %v525
        %v841 = vpop.f32.mrb[0].mxu0
        %v842 = vadd.f32 %v697, %v841
        %v843 = vpop.f32.mrb[0].mxu0
        %844 = vmatprep.mubr.f32.mxu0 0.0
        %845 = vmatmul.mubr.f32.gmra.mrb[0].mxu0 %v526
        %v846 = vpop.f32.mrb[0].mxu0
        %v847 = vadd.f32 %v702, %v846
        %v848 = vpop.f32.mrb[0].mxu0
        %849 = vmatprep.mubr.f32.mxu0 0.0
        %850 = vmatmul.mubr.f32.gmra.mrb[0].mxu0 %v527
        %v851 = vpop.f32.mrb[0].mxu0
        %v852 = vadd.f32 %v707, %v851
        %v853 = vpop.f32.mrb[0].mxu0
        %854 = vmatprep.mubr.f32.mxu0 0.0
        %855 = vmatmul.mubr.f32.gmra.mrb[0].mxu0 %v528
        %v856 = vpop.f32.mrb[0].mxu0
        %v857 = vadd.f32 %v712, %v856
        %v858 = vpop.f32.mrb[0].mxu0
        %859 = vmatprep.mubr.f32.mxu0 0.0
        %860 = vmatmul.mubr.f32.gmra.mrb[0].mxu0 %v529
        %v861 = vpop.f32.mrb[0].mxu0
        %v862 = vadd.f32 %v717, %v861
        %v863 = vpop.f32.mrb[0].mxu0
        %864 = vmatprep.mubr.f32.mxu0 0.0
        %865 = vmatmul.mubr.f32.gmra.mrb[0].mxu0 %v530
        %v866 = vpop.f32.mrb[0].mxu0
        %v867 = vadd.f32 %v722, %v866
        %v868 = vpop.f32.mrb[0].mxu0
        %869 = vdwg.mxu0
        %v870 = vld [vmem:[%s393 + $0x2] sm:$0xff]
        %v871 = vld [vmem:[%s393 + $0x12] sm:$0xff]
        %v872 = vld [vmem:[%s393 + $0x22] sm:$0xff]
        %v873 = vld [vmem:[%s393 + $0x32] sm:$0xff]
        %v874 = vld [vmem:[%s393 + $0x42] sm:$0xff]
        %v875 = vld [vmem:[%s393 + $0x52] sm:$0xff]
        %v876 = vld [vmem:[%s393 + $0x62] sm:$0xff]
        %v877 = vld [vmem:[%s393 + $0x72] sm:$0xff]
        %v878 = vld [vmem:[%s393 + $0xa2] sm:$0xff]
        %v879 = vld [vmem:[%s393 + $0xb2] sm:$0xff]
        %v880 = vld [vmem:[%s393 + $0xc2] sm:$0xff]
        %v881 = vld [vmem:[%s393 + $0xd2] sm:$0xff]
        %v882 = vld [vmem:[%s393 + $0xe2] sm:$0xff]
        %v883 = vld [vmem:[%s393 + $0xf2] sm:$0xff]
        %v884 = vld [vmem:[%s393 + $0x102] sm:$0xff]
        %v885 = vld [vmem:[%s393 + $0x112] sm:$0xff]
        %s886 = scalar_lea.vmem [#allocation6], 256
        %v887 = vld [vmem:[%s886] sm:$0xff]
        %v888 = vld [vmem:[%s886 + $0x8] sm:$0xff]
        %v889 = vld [vmem:[%s886 + $0x10] sm:$0xff]
        %v890 = vld [vmem:[%s886 + $0x18] sm:$0xff]
        %v891 = vld [vmem:[%s886 + $0x20] sm:$0xff]
        %v892 = vld [vmem:[%s886 + $0x28] sm:$0xff]
        %v893 = vld [vmem:[%s886 + $0x30] sm:$0xff]
        %v894 = vld [vmem:[%s886 + $0x38] sm:$0xff]
        %v895 = vld [vmem:[%s886 + $0x40] sm:$0xff]
        %v896 = vld [vmem:[%s886 + $0x48] sm:$0xff]
        %v897 = vld [vmem:[%s886 + $0x50] sm:$0xff]
        %v898 = vld [vmem:[%s886 + $0x58] sm:$0xff]
        %v899 = vld [vmem:[%s886 + $0x60] sm:$0xff]
        %v900 = vld [vmem:[%s886 + $0x68] sm:$0xff]
        %v901 = vld [vmem:[%s886 + $0x70] sm:$0xff]
        %v902 = vld [vmem:[%s886 + $0x78] sm:$0xff]
        %903 = vmatprep.subr.mxu0 0.0
        %904 = vmatpush1.msra.mxu0 %v887
        %905 = vmatprep.subr.mxu0 0.0
        %906 = vmatpush1.msra.mxu0 %v888
        %907 = vmatprep.subr.mxu0 0.0
        %908 = vmatpush1.msra.mxu0 %v889
        %909 = vmatprep.subr.mxu0 0.0
        %910 = vmatpush1.msra.mxu0 %v890
        %911 = vmatprep.subr.mxu0 0.0
        %912 = vmatpush1.msra.mxu0 %v891
        %913 = vmatprep.subr.mxu0 0.0
        %914 = vmatpush1.msra.mxu0 %v892
        %915 = vmatprep.subr.mxu0 0.0
        %916 = vmatpush1.msra.mxu0 %v893
        %917 = vmatprep.subr.mxu0 0.0
        %918 = vmatpush1.msra.mxu0 %v894
        %919 = vmatprep.subr.mxu0 0.0
        %920 = vmatpush1.msra.mxu0 %v895
        %921 = vmatprep.subr.mxu0 0.0
        %922 = vmatpush1.msra.mxu0 %v896
        %923 = vmatprep.subr.mxu0 0.0
        %924 = vmatpush1.msra.mxu0 %v897
        %925 = vmatprep.subr.mxu0 0.0
        %926 = vmatpush1.msra.mxu0 %v898
        %927 = vmatprep.subr.mxu0 0.0
        %928 = vmatpush1.msra.mxu0 %v899
        %929 = vmatprep.subr.mxu0 0.0
        %930 = vmatpush1.msra.mxu0 %v900
        %931 = vmatprep.subr.mxu0 0.0
        %932 = vmatpush1.msra.mxu0 %v901
        %933 = vmatprep.subr.mxu0 0.0
        %934 = vmatpush1.msra.mxu0 %v902
        %935 = vmatprep.subr.mxu0 0.0
        %936 = vmatpush1.msra.mxu0 0.0
        %937 = vmatprep.subr.mxu0 0.0
        %938 = vmatpush1.msra.mxu0 0.0
        %939 = vmatprep.subr.mxu0 0.0
        %940 = vmatpush1.msra.mxu0 0.0
        %941 = vmatprep.subr.mxu0 0.0
        %942 = vmatpush1.msra.mxu0 0.0
        %943 = vmatprep.subr.mxu0 0.0
        %944 = vmatpush1.msra.mxu0 0.0
        %945 = vmatprep.subr.mxu0 0.0
        %946 = vmatpush1.msra.mxu0 0.0
        %947 = vmatprep.subr.mxu0 0.0
        %948 = vmatpush1.msra.mxu0 0.0
        %949 = vmatprep.subr.mxu0 0.0
        %950 = vmatpush1.msra.mxu0 0.0
        %951 = vmatprep.subr.mxu0 0.0
        %952 = vmatpush1.msra.mxu0 0.0
        %953 = vmatprep.subr.mxu0 0.0
        %954 = vmatpush1.msra.mxu0 0.0
        %955 = vmatprep.subr.mxu0 0.0
        %956 = vmatpush1.msra.mxu0 0.0
        %957 = vmatprep.subr.mxu0 0.0
        %958 = vmatpush1.msra.mxu0 0.0
        %959 = vmatprep.subr.mxu0 0.0
        %960 = vmatpush1.msra.mxu0 0.0
        %961 = vmatprep.subr.mxu0 0.0
        %962 = vmatpush1.msra.mxu0 0.0
        %963 = vmatprep.subr.mxu0 0.0
        %964 = vmatpush1.msra.mxu0 0.0
        %965 = vmatprep.subr.mxu0 0.0
        %966 = vmatpush1.msra.mxu0 0.0
        %967 = vmatprep.mubr.f32.mxu0 0.0
        %968 = vmatmul.mubr.f32.gmra.mrb[0].mxu0 %v870
        %v969 = vpop.f32.mrb[0].mxu0
        %v970 = vadd.f32 0.0, %v969
        %v971 = vpop.f32.mrb[0].mxu0
        %972 = vmatprep.mubr.f32.mxu0 0.0
        %973 = vmatmul.mubr.f32.gmra.mrb[0].mxu0 %v871
        %v974 = vpop.f32.mrb[0].mxu0
        %v975 = vadd.f32 0.0, %v974
        %v976 = vpop.f32.mrb[0].mxu0
        %977 = vmatprep.mubr.f32.mxu0 0.0
        %978 = vmatmul.mubr.f32.gmra.mrb[0].mxu0 %v872
        %v979 = vpop.f32.mrb[0].mxu0
        %v980 = vadd.f32 0.0, %v979
        %v981 = vpop.f32.mrb[0].mxu0
        %982 = vmatprep.mubr.f32.mxu0 0.0
        %983 = vmatmul.mubr.f32.gmra.mrb[0].mxu0 %v873
        %v984 = vpop.f32.mrb[0].mxu0
        %v985 = vadd.f32 0.0, %v984
        %v986 = vpop.f32.mrb[0].mxu0
        %987 = vmatprep.mubr.f32.mxu0 0.0
        %988 = vmatmul.mubr.f32.gmra.mrb[0].mxu0 %v874
        %v989 = vpop.f32.mrb[0].mxu0
        %v990 = vadd.f32 0.0, %v989
        %v991 = vpop.f32.mrb[0].mxu0
        %992 = vmatprep.mubr.f32.mxu0 0.0
        %993 = vmatmul.mubr.f32.gmra.mrb[0].mxu0 %v875
        %v994 = vpop.f32.mrb[0].mxu0
        %v995 = vadd.f32 0.0, %v994
        %v996 = vpop.f32.mrb[0].mxu0
        %997 = vmatprep.mubr.f32.mxu0 0.0
        %998 = vmatmul.mubr.f32.gmra.mrb[0].mxu0 %v876
        %v999 = vpop.f32.mrb[0].mxu0
        %v1000 = vadd.f32 0.0, %v999
        %v1001 = vpop.f32.mrb[0].mxu0
        %1002 = vmatprep.mubr.f32.mxu0 0.0
        %1003 = vmatmul.mubr.f32.gmra.mrb[0].mxu0 %v877
        %v1004 = vpop.f32.mrb[0].mxu0
        %v1005 = vadd.f32 0.0, %v1004
        %v1006 = vpop.f32.mrb[0].mxu0
        %1007 = vmatprep.mubr.f32.mxu0 0.0
        %1008 = vmatmul.mubr.f32.gmra.mrb[0].mxu0 %v878
        %v1009 = vpop.f32.mrb[0].mxu0
        %v1010 = vadd.f32 0.0, %v1009
        %v1011 = vpop.f32.mrb[0].mxu0
        %1012 = vmatprep.mubr.f32.mxu0 0.0
        %1013 = vmatmul.mubr.f32.gmra.mrb[0].mxu0 %v879
        %v1014 = vpop.f32.mrb[0].mxu0
        %v1015 = vadd.f32 0.0, %v1014
        %v1016 = vpop.f32.mrb[0].mxu0
        %1017 = vmatprep.mubr.f32.mxu0 0.0
        %1018 = vmatmul.mubr.f32.gmra.mrb[0].mxu0 %v880
        %v1019 = vpop.f32.mrb[0].mxu0
        %v1020 = vadd.f32 0.0, %v1019
        %v1021 = vpop.f32.mrb[0].mxu0
        %1022 = vmatprep.mubr.f32.mxu0 0.0
        %1023 = vmatmul.mubr.f32.gmra.mrb[0].mxu0 %v881
        %v1024 = vpop.f32.mrb[0].mxu0
        %v1025 = vadd.f32 0.0, %v1024
        %v1026 = vpop.f32.mrb[0].mxu0
        %1027 = vmatprep.mubr.f32.mxu0 0.0
        %1028 = vmatmul.mubr.f32.gmra.mrb[0].mxu0 %v882
        %v1029 = vpop.f32.mrb[0].mxu0
        %v1030 = vadd.f32 0.0, %v1029
        %v1031 = vpop.f32.mrb[0].mxu0
        %1032 = vmatprep.mubr.f32.mxu0 0.0
        %1033 = vmatmul.mubr.f32.gmra.mrb[0].mxu0 %v883
        %v1034 = vpop.f32.mrb[0].mxu0
        %v1035 = vadd.f32 0.0, %v1034
        %v1036 = vpop.f32.mrb[0].mxu0
        %1037 = vmatprep.mubr.f32.mxu0 0.0
        %1038 = vmatmul.mubr.f32.gmra.mrb[0].mxu0 %v884
        %v1039 = vpop.f32.mrb[0].mxu0
        %v1040 = vadd.f32 0.0, %v1039
        %v1041 = vpop.f32.mrb[0].mxu0
        %1042 = vmatprep.mubr.f32.mxu0 0.0
        %1043 = vmatmul.mubr.f32.gmra.mrb[0].mxu0 %v885
        %v1044 = vpop.f32.mrb[0].mxu0
        %v1045 = vadd.f32 0.0, %v1044
        %v1046 = vpop.f32.mrb[0].mxu0
        %1047 = vdwg.mxu0
        %v1048 = vadd.f32 %v792, %v970
        %v1049 = vadd.f32 %v797, %v975
        %v1050 = vadd.f32 %v802, %v980
        %v1051 = vadd.f32 %v807, %v985
        %v1052 = vadd.f32 %v812, %v990
        %v1053 = vadd.f32 %v817, %v995
        %v1054 = vadd.f32 %v822, %v1000
        %v1055 = vadd.f32 %v827, %v1005
        %v1056 = vadd.f32 %v832, %v1010
        %v1057 = vadd.f32 %v837, %v1015
        %v1058 = vadd.f32 %v842, %v1020
        %v1059 = vadd.f32 %v847, %v1025
        %v1060 = vadd.f32 %v852, %v1030
        %v1061 = vadd.f32 %v857, %v1035
        %v1062 = vadd.f32 %v862, %v1040
        %v1063 = vadd.f32 %v867, %v1045
        %s1064 = scalar_lea.vmem %s393, 16 [#allocation3]
        %v1065 = vld [vmem:[%s1064] sm:$0xff]
        %v1066 = vld [vmem:[%s1064 + $0x10] sm:$0xff]
        %v1067 = vld [vmem:[%s1064 + $0x20] sm:$0xff]
        %v1068 = vld [vmem:[%s1064 + $0x30] sm:$0xff]
        %v1069 = vld [vmem:[%s1064 + $0x40] sm:$0xff]
        %v1070 = vld [vmem:[%s1064 + $0x50] sm:$0xff]
        %v1071 = vld [vmem:[%s1064 + $0x60] sm:$0xff]
        %v1072 = vld [vmem:[%s1064 + $0x70] sm:$0xff]
        %v1073 = vld [vmem:[%s1064 + $0xa0] sm:$0xff]
        %v1074 = vld [vmem:[%s1064 + $0xb0] sm:$0xff]
        %v1075 = vld [vmem:[%s1064 + $0xc0] sm:$0xff]
        %v1076 = vld [vmem:[%s1064 + $0xd0] sm:$0xff]
        %v1077 = vld [vmem:[%s1064 + $0xe0] sm:$0xff]
        %v1078 = vld [vmem:[%s1064 + $0xf0] sm:$0xff]
        %v1079 = vld [vmem:[%s1064 + $0x100] sm:$0xff]
        %v1080 = vld [vmem:[%s1064 + $0x110] sm:$0xff]
        %s1081 = scalar_lea.vmem [#allocation6], 384
        %v1082 = vld [vmem:[%s1081] sm:$0xff]
        %v1083 = vld [vmem:[%s1081 + $0x8] sm:$0xff]
        %v1084 = vld [vmem:[%s1081 + $0x10] sm:$0xff]
        %v1085 = vld [vmem:[%s1081 + $0x18] sm:$0xff]
        %v1086 = vld [vmem:[%s1081 + $0x20] sm:$0xff]
        %v1087 = vld [vmem:[%s1081 + $0x28] sm:$0xff]
        %v1088 = vld [vmem:[%s1081 + $0x30] sm:$0xff]
        %v1089 = vld [vmem:[%s1081 + $0x38] sm:$0xff]
        %v1090 = vld [vmem:[%s1081 + $0x40] sm:$0xff]
        %v1091 = vld [vmem:[%s1081 + $0x48] sm:$0xff]
        %v1092 = vld [vmem:[%s1081 + $0x50] sm:$0xff]
        %v1093 = vld [vmem:[%s1081 + $0x58] sm:$0xff]
        %v1094 = vld [vmem:[%s1081 + $0x60] sm:$0xff]
        %v1095 = vld [vmem:[%s1081 + $0x68] sm:$0xff]
        %v1096 = vld [vmem:[%s1081 + $0x70] sm:$0xff]
        %v1097 = vld [vmem:[%s1081 + $0x78] sm:$0xff]
        %1098 = vmatprep.subr.mxu0 0.0
        %1099 = vmatpush1.msra.mxu0 %v1082
        %1100 = vmatprep.subr.mxu0 0.0
        %1101 = vmatpush1.msra.mxu0 %v1083
        %1102 = vmatprep.subr.mxu0 0.0
        %1103 = vmatpush1.msra.mxu0 %v1084
        %1104 = vmatprep.subr.mxu0 0.0
        %1105 = vmatpush1.msra.mxu0 %v1085
        %1106 = vmatprep.subr.mxu0 0.0
        %1107 = vmatpush1.msra.mxu0 %v1086
        %1108 = vmatprep.subr.mxu0 0.0
        %1109 = vmatpush1.msra.mxu0 %v1087
        %1110 = vmatprep.subr.mxu0 0.0
        %1111 = vmatpush1.msra.mxu0 %v1088
        %1112 = vmatprep.subr.mxu0 0.0
        %1113 = vmatpush1.msra.mxu0 %v1089
        %1114 = vmatprep.subr.mxu0 0.0
        %1115 = vmatpush1.msra.mxu0 %v1090
        %1116 = vmatprep.subr.mxu0 0.0
        %1117 = vmatpush1.msra.mxu0 %v1091
        %1118 = vmatprep.subr.mxu0 0.0
        %1119 = vmatpush1.msra.mxu0 %v1092
        %1120 = vmatprep.subr.mxu0 0.0
        %1121 = vmatpush1.msra.mxu0 %v1093
        %1122 = vmatprep.subr.mxu0 0.0
        %1123 = vmatpush1.msra.mxu0 %v1094
        %1124 = vmatprep.subr.mxu0 0.0
        %1125 = vmatpush1.msra.mxu0 %v1095
        %1126 = vmatprep.subr.mxu0 0.0
        %1127 = vmatpush1.msra.mxu0 %v1096
        %1128 = vmatprep.subr.mxu0 0.0
        %1129 = vmatpush1.msra.mxu0 %v1097
        %1130 = vmatprep.subr.mxu0 0.0
        %1131 = vmatpush1.msra.mxu0 0.0
        %1132 = vmatprep.subr.mxu0 0.0
        %1133 = vmatpush1.msra.mxu0 0.0
        %1134 = vmatprep.subr.mxu0 0.0
        %1135 = vmatpush1.msra.mxu0 0.0
        %1136 = vmatprep.subr.mxu0 0.0
        %1137 = vmatpush1.msra.mxu0 0.0
        %1138 = vmatprep.subr.mxu0 0.0
        %1139 = vmatpush1.msra.mxu0 0.0
        %1140 = vmatprep.subr.mxu0 0.0
        %1141 = vmatpush1.msra.mxu0 0.0
        %1142 = vmatprep.subr.mxu0 0.0
        %1143 = vmatpush1.msra.mxu0 0.0
        %1144 = vmatprep.subr.mxu0 0.0
        %1145 = vmatpush1.msra.mxu0 0.0
        %1146 = vmatprep.subr.mxu0 0.0
        %1147 = vmatpush1.msra.mxu0 0.0
        %1148 = vmatprep.subr.mxu0 0.0
        %1149 = vmatpush1.msra.mxu0 0.0
        %1150 = vmatprep.subr.mxu0 0.0
        %1151 = vmatpush1.msra.mxu0 0.0
        %1152 = vmatprep.subr.mxu0 0.0
        %1153 = vmatpush1.msra.mxu0 0.0
        %1154 = vmatprep.subr.mxu0 0.0
        %1155 = vmatpush1.msra.mxu0 0.0
        %1156 = vmatprep.subr.mxu0 0.0
        %1157 = vmatpush1.msra.mxu0 0.0
        %1158 = vmatprep.subr.mxu0 0.0
        %1159 = vmatpush1.msra.mxu0 0.0
        %1160 = vmatprep.subr.mxu0 0.0
        %1161 = vmatpush1.msra.mxu0 0.0
        %1162 = vmatprep.mubr.f32.mxu0 0.0
        %1163 = vmatmul.mubr.f32.gmra.mrb[0].mxu0 %v1065
        %v1164 = vpop.f32.mrb[0].mxu0
        %v1165 = vadd.f32 0.0, %v1164
        %v1166 = vpop.f32.mrb[0].mxu0
        %1167 = vmatprep.mubr.f32.mxu0 0.0
        %1168 = vmatmul.mubr.f32.gmra.mrb[0].mxu0 %v1066
        %v1169 = vpop.f32.mrb[0].mxu0
        %v1170 = vadd.f32 0.0, %v1169
        %v1171 = vpop.f32.mrb[0].mxu0
        %1172 = vmatprep.mubr.f32.mxu0 0.0
        %1173 = vmatmul.mubr.f32.gmra.mrb[0].mxu0 %v1067
        %v1174 = vpop.f32.mrb[0].mxu0
        %v1175 = vadd.f32 0.0, %v1174
        %v1176 = vpop.f32.mrb[0].mxu0
        %1177 = vmatprep.mubr.f32.mxu0 0.0
        %1178 = vmatmul.mubr.f32.gmra.mrb[0].mxu0 %v1068
        %v1179 = vpop.f32.mrb[0].mxu0
        %v1180 = vadd.f32 0.0, %v1179
        %v1181 = vpop.f32.mrb[0].mxu0
        %1182 = vmatprep.mubr.f32.mxu0 0.0
        %1183 = vmatmul.mubr.f32.gmra.mrb[0].mxu0 %v1069
        %v1184 = vpop.f32.mrb[0].mxu0
        %v1185 = vadd.f32 0.0, %v1184
        %v1186 = vpop.f32.mrb[0].mxu0
        %1187 = vmatprep.mubr.f32.mxu0 0.0
        %1188 = vmatmul.mubr.f32.gmra.mrb[0].mxu0 %v1070
        %v1189 = vpop.f32.mrb[0].mxu0
        %v1190 = vadd.f32 0.0, %v1189
        %v1191 = vpop.f32.mrb[0].mxu0
        %1192 = vmatprep.mubr.f32.mxu0 0.0
        %1193 = vmatmul.mubr.f32.gmra.mrb[0].mxu0 %v1071
        %v1194 = vpop.f32.mrb[0].mxu0
        %v1195 = vadd.f32 0.0, %v1194
        %v1196 = vpop.f32.mrb[0].mxu0
        %1197 = vmatprep.mubr.f32.mxu0 0.0
        %1198 = vmatmul.mubr.f32.gmra.mrb[0].mxu0 %v1072
        %v1199 = vpop.f32.mrb[0].mxu0
        %v1200 = vadd.f32 0.0, %v1199
        %v1201 = vpop.f32.mrb[0].mxu0
        %1202 = vmatprep.mubr.f32.mxu0 0.0
        %1203 = vmatmul.mubr.f32.gmra.mrb[0].mxu0 %v1073
        %v1204 = vpop.f32.mrb[0].mxu0
        %v1205 = vadd.f32 0.0, %v1204
        %v1206 = vpop.f32.mrb[0].mxu0
        %1207 = vmatprep.mubr.f32.mxu0 0.0
        %1208 = vmatmul.mubr.f32.gmra.mrb[0].mxu0 %v1074
        %v1209 = vpop.f32.mrb[0].mxu0
        %v1210 = vadd.f32 0.0, %v1209
        %v1211 = vpop.f32.mrb[0].mxu0
        %1212 = vmatprep.mubr.f32.mxu0 0.0
        %1213 = vmatmul.mubr.f32.gmra.mrb[0].mxu0 %v1075
        %v1214 = vpop.f32.mrb[0].mxu0
        %v1215 = vadd.f32 0.0, %v1214
        %v1216 = vpop.f32.mrb[0].mxu0
        %1217 = vmatprep.mubr.f32.mxu0 0.0
        %1218 = vmatmul.mubr.f32.gmra.mrb[0].mxu0 %v1076
        %v1219 = vpop.f32.mrb[0].mxu0
        %v1220 = vadd.f32 0.0, %v1219
        %v1221 = vpop.f32.mrb[0].mxu0
        %1222 = vmatprep.mubr.f32.mxu0 0.0
        %1223 = vmatmul.mubr.f32.gmra.mrb[0].mxu0 %v1077
        %v1224 = vpop.f32.mrb[0].mxu0
        %v1225 = vadd.f32 0.0, %v1224
        %v1226 = vpop.f32.mrb[0].mxu0
        %1227 = vmatprep.mubr.f32.mxu0 0.0
        %1228 = vmatmul.mubr.f32.gmra.mrb[0].mxu0 %v1078
        %v1229 = vpop.f32.mrb[0].mxu0
        %v1230 = vadd.f32 0.0, %v1229
        %v1231 = vpop.f32.mrb[0].mxu0
        %1232 = vmatprep.mubr.f32.mxu0 0.0
        %1233 = vmatmul.mubr.f32.gmra.mrb[0].mxu0 %v1079
        %v1234 = vpop.f32.mrb[0].mxu0
        %v1235 = vadd.f32 0.0, %v1234
        %v1236 = vpop.f32.mrb[0].mxu0
        %1237 = vmatprep.mubr.f32.mxu0 0.0
        %1238 = vmatmul.mubr.f32.gmra.mrb[0].mxu0 %v1080
        %v1239 = vpop.f32.mrb[0].mxu0
        %v1240 = vadd.f32 0.0, %v1239
        %v1241 = vpop.f32.mrb[0].mxu0
        %1242 = vdwg.mxu0
        %v1243 = vadd.f32 %v1048, %v1165
        %v1244 = vadd.f32 %v1049, %v1170
        %v1245 = vadd.f32 %v1050, %v1175
        %v1246 = vadd.f32 %v1051, %v1180
        %v1247 = vadd.f32 %v1052, %v1185
        %v1248 = vadd.f32 %v1053, %v1190
        %v1249 = vadd.f32 %v1054, %v1195
        %v1250 = vadd.f32 %v1055, %v1200
        %v1251 = vadd.f32 %v1056, %v1205
        %v1252 = vadd.f32 %v1057, %v1210
        %v1253 = vadd.f32 %v1058, %v1215
        %v1254 = vadd.f32 %v1059, %v1220
        %v1255 = vadd.f32 %v1060, %v1225
        %v1256 = vadd.f32 %v1061, %v1230
        %v1257 = vadd.f32 %v1062, %v1235
        %v1258 = vadd.f32 %v1063, %v1240
        %v1259 = vld [vmem:[%s1064 + $0x1] sm:$0xff]
        %v1260 = vld [vmem:[%s1064 + $0x11] sm:$0xff]
        %v1261 = vld [vmem:[%s1064 + $0x21] sm:$0xff]
        %v1262 = vld [vmem:[%s1064 + $0x31] sm:$0xff]
        %v1263 = vld [vmem:[%s1064 + $0x41] sm:$0xff]
        %v1264 = vld [vmem:[%s1064 + $0x51] sm:$0xff]
        %v1265 = vld [vmem:[%s1064 + $0x61] sm:$0xff]
        %v1266 = vld [vmem:[%s1064 + $0x71] sm:$0xff]
        %v1267 = vld [vmem:[%s1064 + $0xa1] sm:$0xff]
        %v1268 = vld [vmem:[%s1064 + $0xb1] sm:$0xff]
        %v1269 = vld [vmem:[%s1064 + $0xc1] sm:$0xff]
        %v1270 = vld [vmem:[%s1064 + $0xd1] sm:$0xff]
        %v1271 = vld [vmem:[%s1064 + $0xe1] sm:$0xff]
        %v1272 = vld [vmem:[%s1064 + $0xf1] sm:$0xff]
        %v1273 = vld [vmem:[%s1064 + $0x101] sm:$0xff]
        %v1274 = vld [vmem:[%s1064 + $0x111] sm:$0xff]
        %s1275 = scalar_lea.vmem [#allocation6], 512
        %v1276 = vld [vmem:[%s1275] sm:$0xff]
        %v1277 = vld [vmem:[%s1275 + $0x8] sm:$0xff]
        %v1278 = vld [vmem:[%s1275 + $0x10] sm:$0xff]
        %v1279 = vld [vmem:[%s1275 + $0x18] sm:$0xff]
        %v1280 = vld [vmem:[%s1275 + $0x20] sm:$0xff]
        %v1281 = vld [vmem:[%s1275 + $0x28] sm:$0xff]
        %v1282 = vld [vmem:[%s1275 + $0x30] sm:$0xff]
        %v1283 = vld [vmem:[%s1275 + $0x38] sm:$0xff]
        %v1284 = vld [vmem:[%s1275 + $0x40] sm:$0xff]
        %v1285 = vld [vmem:[%s1275 + $0x48] sm:$0xff]
        %v1286 = vld [vmem:[%s1275 + $0x50] sm:$0xff]
        %v1287 = vld [vmem:[%s1275 + $0x58] sm:$0xff]
        %v1288 = vld [vmem:[%s1275 + $0x60] sm:$0xff]
        %v1289 = vld [vmem:[%s1275 + $0x68] sm:$0xff]
        %v1290 = vld [vmem:[%s1275 + $0x70] sm:$0xff]
        %v1291 = vld [vmem:[%s1275 + $0x78] sm:$0xff]
        %1292 = vmatprep.subr.mxu0 0.0
        %1293 = vmatpush1.msra.mxu0 %v1276
        %1294 = vmatprep.subr.mxu0 0.0
        %1295 = vmatpush1.msra.mxu0 %v1277
        %1296 = vmatprep.subr.mxu0 0.0
        %1297 = vmatpush1.msra.mxu0 %v1278
        %1298 = vmatprep.subr.mxu0 0.0
        %1299 = vmatpush1.msra.mxu0 %v1279
        %1300 = vmatprep.subr.mxu0 0.0
        %1301 = vmatpush1.msra.mxu0 %v1280
        %1302 = vmatprep.subr.mxu0 0.0
        %1303 = vmatpush1.msra.mxu0 %v1281
        %1304 = vmatprep.subr.mxu0 0.0
        %1305 = vmatpush1.msra.mxu0 %v1282
        %1306 = vmatprep.subr.mxu0 0.0
        %1307 = vmatpush1.msra.mxu0 %v1283
        %1308 = vmatprep.subr.mxu0 0.0
        %1309 = vmatpush1.msra.mxu0 %v1284
        %1310 = vmatprep.subr.mxu0 0.0
        %1311 = vmatpush1.msra.mxu0 %v1285
        %1312 = vmatprep.subr.mxu0 0.0
        %1313 = vmatpush1.msra.mxu0 %v1286
        %1314 = vmatprep.subr.mxu0 0.0
        %1315 = vmatpush1.msra.mxu0 %v1287
        %1316 = vmatprep.subr.mxu0 0.0
        %1317 = vmatpush1.msra.mxu0 %v1288
        %1318 = vmatprep.subr.mxu0 0.0
        %1319 = vmatpush1.msra.mxu0 %v1289
        %1320 = vmatprep.subr.mxu0 0.0
        %1321 = vmatpush1.msra.mxu0 %v1290
        %1322 = vmatprep.subr.mxu0 0.0
        %1323 = vmatpush1.msra.mxu0 %v1291
        %1324 = vmatprep.subr.mxu0 0.0
        %1325 = vmatpush1.msra.mxu0 0.0
        %1326 = vmatprep.subr.mxu0 0.0
        %1327 = vmatpush1.msra.mxu0 0.0
        %1328 = vmatprep.subr.mxu0 0.0
        %1329 = vmatpush1.msra.mxu0 0.0
        %1330 = vmatprep.subr.mxu0 0.0
        %1331 = vmatpush1.msra.mxu0 0.0
        %1332 = vmatprep.subr.mxu0 0.0
        %1333 = vmatpush1.msra.mxu0 0.0
        %1334 = vmatprep.subr.mxu0 0.0
        %1335 = vmatpush1.msra.mxu0 0.0
        %1336 = vmatprep.subr.mxu0 0.0
        %1337 = vmatpush1.msra.mxu0 0.0
        %1338 = vmatprep.subr.mxu0 0.0
        %1339 = vmatpush1.msra.mxu0 0.0
        %1340 = vmatprep.subr.mxu0 0.0
        %1341 = vmatpush1.msra.mxu0 0.0
        %1342 = vmatprep.subr.mxu0 0.0
        %1343 = vmatpush1.msra.mxu0 0.0
        %1344 = vmatprep.subr.mxu0 0.0
        %1345 = vmatpush1.msra.mxu0 0.0
        %1346 = vmatprep.subr.mxu0 0.0
        %1347 = vmatpush1.msra.mxu0 0.0
        %1348 = vmatprep.subr.mxu0 0.0
        %1349 = vmatpush1.msra.mxu0 0.0
        %1350 = vmatprep.subr.mxu0 0.0
        %1351 = vmatpush1.msra.mxu0 0.0
        %1352 = vmatprep.subr.mxu0 0.0
        %1353 = vmatpush1.msra.mxu0 0.0
        %1354 = vmatprep.subr.mxu0 0.0
        %1355 = vmatpush1.msra.mxu0 0.0
        %1356 = vmatprep.mubr.f32.mxu0 0.0
        %1357 = vmatmul.mubr.f32.gmra.mrb[0].mxu0 %v1259
        %v1358 = vpop.f32.mrb[0].mxu0
        %v1359 = vadd.f32 0.0, %v1358
        %v1360 = vpop.f32.mrb[0].mxu0
        %1361 = vmatprep.mubr.f32.mxu0 0.0
        %1362 = vmatmul.mubr.f32.gmra.mrb[0].mxu0 %v1260
        %v1363 = vpop.f32.mrb[0].mxu0
        %v1364 = vadd.f32 0.0, %v1363
        %v1365 = vpop.f32.mrb[0].mxu0
        %1366 = vmatprep.mubr.f32.mxu0 0.0
        %1367 = vmatmul.mubr.f32.gmra.mrb[0].mxu0 %v1261
        %v1368 = vpop.f32.mrb[0].mxu0
        %v1369 = vadd.f32 0.0, %v1368
        %v1370 = vpop.f32.mrb[0].mxu0
        %1371 = vmatprep.mubr.f32.mxu0 0.0
        %1372 = vmatmul.mubr.f32.gmra.mrb[0].mxu0 %v1262
        %v1373 = vpop.f32.mrb[0].mxu0
        %v1374 = vadd.f32 0.0, %v1373
        %v1375 = vpop.f32.mrb[0].mxu0
        %1376 = vmatprep.mubr.f32.mxu0 0.0
        %1377 = vmatmul.mubr.f32.gmra.mrb[0].mxu0 %v1263
        %v1378 = vpop.f32.mrb[0].mxu0
        %v1379 = vadd.f32 0.0, %v1378
        %v1380 = vpop.f32.mrb[0].mxu0
        %1381 = vmatprep.mubr.f32.mxu0 0.0
        %1382 = vmatmul.mubr.f32.gmra.mrb[0].mxu0 %v1264
        %v1383 = vpop.f32.mrb[0].mxu0
        %v1384 = vadd.f32 0.0, %v1383
        %v1385 = vpop.f32.mrb[0].mxu0
        %1386 = vmatprep.mubr.f32.mxu0 0.0
        %1387 = vmatmul.mubr.f32.gmra.mrb[0].mxu0 %v1265
        %v1388 = vpop.f32.mrb[0].mxu0
        %v1389 = vadd.f32 0.0, %v1388
        %v1390 = vpop.f32.mrb[0].mxu0
        %1391 = vmatprep.mubr.f32.mxu0 0.0
        %1392 = vmatmul.mubr.f32.gmra.mrb[0].mxu0 %v1266
        %v1393 = vpop.f32.mrb[0].mxu0
        %v1394 = vadd.f32 0.0, %v1393
        %v1395 = vpop.f32.mrb[0].mxu0
        %1396 = vmatprep.mubr.f32.mxu0 0.0
        %1397 = vmatmul.mubr.f32.gmra.mrb[0].mxu0 %v1267
        %v1398 = vpop.f32.mrb[0].mxu0
        %v1399 = vadd.f32 0.0, %v1398
        %v1400 = vpop.f32.mrb[0].mxu0
        %1401 = vmatprep.mubr.f32.mxu0 0.0
        %1402 = vmatmul.mubr.f32.gmra.mrb[0].mxu0 %v1268
        %v1403 = vpop.f32.mrb[0].mxu0
        %v1404 = vadd.f32 0.0, %v1403
        %v1405 = vpop.f32.mrb[0].mxu0
        %1406 = vmatprep.mubr.f32.mxu0 0.0
        %1407 = vmatmul.mubr.f32.gmra.mrb[0].mxu0 %v1269
        %v1408 = vpop.f32.mrb[0].mxu0
        %v1409 = vadd.f32 0.0, %v1408
        %v1410 = vpop.f32.mrb[0].mxu0
        %1411 = vmatprep.mubr.f32.mxu0 0.0
        %1412 = vmatmul.mubr.f32.gmra.mrb[0].mxu0 %v1270
        %v1413 = vpop.f32.mrb[0].mxu0
        %v1414 = vadd.f32 0.0, %v1413
        %v1415 = vpop.f32.mrb[0].mxu0
        %1416 = vmatprep.mubr.f32.mxu0 0.0
        %1417 = vmatmul.mubr.f32.gmra.mrb[0].mxu0 %v1271
        %v1418 = vpop.f32.mrb[0].mxu0
        %v1419 = vadd.f32 0.0, %v1418
        %v1420 = vpop.f32.mrb[0].mxu0
        %1421 = vmatprep.mubr.f32.mxu0 0.0
        %1422 = vmatmul.mubr.f32.gmra.mrb[0].mxu0 %v1272
        %v1423 = vpop.f32.mrb[0].mxu0
        %v1424 = vadd.f32 0.0, %v1423
        %v1425 = vpop.f32.mrb[0].mxu0
        %1426 = vmatprep.mubr.f32.mxu0 0.0
        %1427 = vmatmul.mubr.f32.gmra.mrb[0].mxu0 %v1273
        %v1428 = vpop.f32.mrb[0].mxu0
        %v1429 = vadd.f32 0.0, %v1428
        %v1430 = vpop.f32.mrb[0].mxu0
        %1431 = vmatprep.mubr.f32.mxu0 0.0
        %1432 = vmatmul.mubr.f32.gmra.mrb[0].mxu0 %v1274
        %v1433 = vpop.f32.mrb[0].mxu0
        %v1434 = vadd.f32 0.0, %v1433
        %v1435 = vpop.f32.mrb[0].mxu0
        %1436 = vdwg.mxu0
        %v1437 = vadd.f32 %v1243, %v1359
        %v1438 = vadd.f32 %v1244, %v1364
        %v1439 = vadd.f32 %v1245, %v1369
        %v1440 = vadd.f32 %v1246, %v1374
        %v1441 = vadd.f32 %v1247, %v1379
        %v1442 = vadd.f32 %v1248, %v1384
        %v1443 = vadd.f32 %v1249, %v1389
        %v1444 = vadd.f32 %v1250, %v1394
        %v1445 = vadd.f32 %v1251, %v1399
        %v1446 = vadd.f32 %v1252, %v1404
        %v1447 = vadd.f32 %v1253, %v1409
        %v1448 = vadd.f32 %v1254, %v1414
        %v1449 = vadd.f32 %v1255, %v1419
        %v1450 = vadd.f32 %v1256, %v1424
        %v1451 = vadd.f32 %v1257, %v1429
        %v1452 = vadd.f32 %v1258, %v1434
        %v1453 = vld [vmem:[%s1064 + $0x2] sm:$0xff]
        %v1454 = vld [vmem:[%s1064 + $0x12] sm:$0xff]
        %v1455 = vld [vmem:[%s1064 + $0x22] sm:$0xff]
        %v1456 = vld [vmem:[%s1064 + $0x32] sm:$0xff]
        %v1457 = vld [vmem:[%s1064 + $0x42] sm:$0xff]
        %v1458 = vld [vmem:[%s1064 + $0x52] sm:$0xff]
        %v1459 = vld [vmem:[%s1064 + $0x62] sm:$0xff]
        %v1460 = vld [vmem:[%s1064 + $0x72] sm:$0xff]
        %v1461 = vld [vmem:[%s1064 + $0xa2] sm:$0xff]
        %v1462 = vld [vmem:[%s1064 + $0xb2] sm:$0xff]
        %v1463 = vld [vmem:[%s1064 + $0xc2] sm:$0xff]
        %v1464 = vld [vmem:[%s1064 + $0xd2] sm:$0xff]
        %v1465 = vld [vmem:[%s1064 + $0xe2] sm:$0xff]
        %v1466 = vld [vmem:[%s1064 + $0xf2] sm:$0xff]
        %v1467 = vld [vmem:[%s1064 + $0x102] sm:$0xff]
        %v1468 = vld [vmem:[%s1064 + $0x112] sm:$0xff]
        %s1469 = scalar_lea.vmem [#allocation6], 640
        %v1470 = vld [vmem:[%s1469] sm:$0xff]
        %v1471 = vld [vmem:[%s1469 + $0x8] sm:$0xff]
        %v1472 = vld [vmem:[%s1469 + $0x10] sm:$0xff]
        %v1473 = vld [vmem:[%s1469 + $0x18] sm:$0xff]
        %v1474 = vld [vmem:[%s1469 + $0x20] sm:$0xff]
        %v1475 = vld [vmem:[%s1469 + $0x28] sm:$0xff]
        %v1476 = vld [vmem:[%s1469 + $0x30] sm:$0xff]
        %v1477 = vld [vmem:[%s1469 + $0x38] sm:$0xff]
        %v1478 = vld [vmem:[%s1469 + $0x40] sm:$0xff]
        %v1479 = vld [vmem:[%s1469 + $0x48] sm:$0xff]
        %v1480 = vld [vmem:[%s1469 + $0x50] sm:$0xff]
        %v1481 = vld [vmem:[%s1469 + $0x58] sm:$0xff]
        %v1482 = vld [vmem:[%s1469 + $0x60] sm:$0xff]
        %v1483 = vld [vmem:[%s1469 + $0x68] sm:$0xff]
        %v1484 = vld [vmem:[%s1469 + $0x70] sm:$0xff]
        %v1485 = vld [vmem:[%s1469 + $0x78] sm:$0xff]
        %1486 = vmatprep.subr.mxu0 0.0
        %1487 = vmatpush1.msra.mxu0 %v1470
        %1488 = vmatprep.subr.mxu0 0.0
        %1489 = vmatpush1.msra.mxu0 %v1471
        %1490 = vmatprep.subr.mxu0 0.0
        %1491 = vmatpush1.msra.mxu0 %v1472
        %1492 = vmatprep.subr.mxu0 0.0
        %1493 = vmatpush1.msra.mxu0 %v1473
        %1494 = vmatprep.subr.mxu0 0.0
        %1495 = vmatpush1.msra.mxu0 %v1474
        %1496 = vmatprep.subr.mxu0 0.0
        %1497 = vmatpush1.msra.mxu0 %v1475
        %1498 = vmatprep.subr.mxu0 0.0
        %1499 = vmatpush1.msra.mxu0 %v1476
        %1500 = vmatprep.subr.mxu0 0.0
        %1501 = vmatpush1.msra.mxu0 %v1477
        %1502 = vmatprep.subr.mxu0 0.0
        %1503 = vmatpush1.msra.mxu0 %v1478
        %1504 = vmatprep.subr.mxu0 0.0
        %1505 = vmatpush1.msra.mxu0 %v1479
        %1506 = vmatprep.subr.mxu0 0.0
        %1507 = vmatpush1.msra.mxu0 %v1480
        %1508 = vmatprep.subr.mxu0 0.0
        %1509 = vmatpush1.msra.mxu0 %v1481
        %1510 = vmatprep.subr.mxu0 0.0
        %1511 = vmatpush1.msra.mxu0 %v1482
        %1512 = vmatprep.subr.mxu0 0.0
        %1513 = vmatpush1.msra.mxu0 %v1483
        %1514 = vmatprep.subr.mxu0 0.0
        %1515 = vmatpush1.msra.mxu0 %v1484
        %1516 = vmatprep.subr.mxu0 0.0
        %1517 = vmatpush1.msra.mxu0 %v1485
        %1518 = vmatprep.subr.mxu0 0.0
        %1519 = vmatpush1.msra.mxu0 0.0
        %1520 = vmatprep.subr.mxu0 0.0
        %1521 = vmatpush1.msra.mxu0 0.0
        %1522 = vmatprep.subr.mxu0 0.0
        %1523 = vmatpush1.msra.mxu0 0.0
        %1524 = vmatprep.subr.mxu0 0.0
        %1525 = vmatpush1.msra.mxu0 0.0
        %1526 = vmatprep.subr.mxu0 0.0
        %1527 = vmatpush1.msra.mxu0 0.0
        %1528 = vmatprep.subr.mxu0 0.0
        %1529 = vmatpush1.msra.mxu0 0.0
        %1530 = vmatprep.subr.mxu0 0.0
        %1531 = vmatpush1.msra.mxu0 0.0
        %1532 = vmatprep.subr.mxu0 0.0
        %1533 = vmatpush1.msra.mxu0 0.0
        %1534 = vmatprep.subr.mxu0 0.0
        %1535 = vmatpush1.msra.mxu0 0.0
        %1536 = vmatprep.subr.mxu0 0.0
        %1537 = vmatpush1.msra.mxu0 0.0
        %1538 = vmatprep.subr.mxu0 0.0
        %1539 = vmatpush1.msra.mxu0 0.0
        %1540 = vmatprep.subr.mxu0 0.0
        %1541 = vmatpush1.msra.mxu0 0.0
        %1542 = vmatprep.subr.mxu0 0.0
        %1543 = vmatpush1.msra.mxu0 0.0
        %1544 = vmatprep.subr.mxu0 0.0
        %1545 = vmatpush1.msra.mxu0 0.0
        %1546 = vmatprep.subr.mxu0 0.0
        %1547 = vmatpush1.msra.mxu0 0.0
        %1548 = vmatprep.subr.mxu0 0.0
        %1549 = vmatpush1.msra.mxu0 0.0
        %1550 = vmatprep.mubr.f32.mxu0 0.0
        %1551 = vmatmul.mubr.f32.gmra.mrb[0].mxu0 %v1453
        %v1552 = vpop.f32.mrb[0].mxu0
        %v1553 = vadd.f32 0.0, %v1552
        %v1554 = vpop.f32.mrb[0].mxu0
        %1555 = vmatprep.mubr.f32.mxu0 0.0
        %1556 = vmatmul.mubr.f32.gmra.mrb[0].mxu0 %v1454
        %v1557 = vpop.f32.mrb[0].mxu0
        %v1558 = vadd.f32 0.0, %v1557
        %v1559 = vpop.f32.mrb[0].mxu0
        %1560 = vmatprep.mubr.f32.mxu0 0.0
        %1561 = vmatmul.mubr.f32.gmra.mrb[0].mxu0 %v1455
        %v1562 = vpop.f32.mrb[0].mxu0
        %v1563 = vadd.f32 0.0, %v1562
        %v1564 = vpop.f32.mrb[0].mxu0
        %1565 = vmatprep.mubr.f32.mxu0 0.0
        %1566 = vmatmul.mubr.f32.gmra.mrb[0].mxu0 %v1456
        %v1567 = vpop.f32.mrb[0].mxu0
        %v1568 = vadd.f32 0.0, %v1567
        %v1569 = vpop.f32.mrb[0].mxu0
        %1570 = vmatprep.mubr.f32.mxu0 0.0
        %1571 = vmatmul.mubr.f32.gmra.mrb[0].mxu0 %v1457
        %v1572 = vpop.f32.mrb[0].mxu0
        %v1573 = vadd.f32 0.0, %v1572
        %v1574 = vpop.f32.mrb[0].mxu0
        %1575 = vmatprep.mubr.f32.mxu0 0.0
        %1576 = vmatmul.mubr.f32.gmra.mrb[0].mxu0 %v1458
        %v1577 = vpop.f32.mrb[0].mxu0
        %v1578 = vadd.f32 0.0, %v1577
        %v1579 = vpop.f32.mrb[0].mxu0
        %1580 = vmatprep.mubr.f32.mxu0 0.0
        %1581 = vmatmul.mubr.f32.gmra.mrb[0].mxu0 %v1459
        %v1582 = vpop.f32.mrb[0].mxu0
        %v1583 = vadd.f32 0.0, %v1582
        %v1584 = vpop.f32.mrb[0].mxu0
        %1585 = vmatprep.mubr.f32.mxu0 0.0
        %1586 = vmatmul.mubr.f32.gmra.mrb[0].mxu0 %v1460
        %v1587 = vpop.f32.mrb[0].mxu0
        %v1588 = vadd.f32 0.0, %v1587
        %v1589 = vpop.f32.mrb[0].mxu0
        %1590 = vmatprep.mubr.f32.mxu0 0.0
        %1591 = vmatmul.mubr.f32.gmra.mrb[0].mxu0 %v1461
        %v1592 = vpop.f32.mrb[0].mxu0
        %v1593 = vadd.f32 0.0, %v1592
        %v1594 = vpop.f32.mrb[0].mxu0
        %1595 = vmatprep.mubr.f32.mxu0 0.0
        %1596 = vmatmul.mubr.f32.gmra.mrb[0].mxu0 %v1462
        %v1597 = vpop.f32.mrb[0].mxu0
        %v1598 = vadd.f32 0.0, %v1597
        %v1599 = vpop.f32.mrb[0].mxu0
        %1600 = vmatprep.mubr.f32.mxu0 0.0
        %1601 = vmatmul.mubr.f32.gmra.mrb[0].mxu0 %v1463
        %v1602 = vpop.f32.mrb[0].mxu0
        %v1603 = vadd.f32 0.0, %v1602
        %v1604 = vpop.f32.mrb[0].mxu0
        %1605 = vmatprep.mubr.f32.mxu0 0.0
        %1606 = vmatmul.mubr.f32.gmra.mrb[0].mxu0 %v1464
        %v1607 = vpop.f32.mrb[0].mxu0
        %v1608 = vadd.f32 0.0, %v1607
        %v1609 = vpop.f32.mrb[0].mxu0
        %1610 = vmatprep.mubr.f32.mxu0 0.0
        %1611 = vmatmul.mubr.f32.gmra.mrb[0].mxu0 %v1465
        %v1612 = vpop.f32.mrb[0].mxu0
        %v1613 = vadd.f32 0.0, %v1612
        %v1614 = vpop.f32.mrb[0].mxu0
        %1615 = vmatprep.mubr.f32.mxu0 0.0
        %1616 = vmatmul.mubr.f32.gmra.mrb[0].mxu0 %v1466
        %v1617 = vpop.f32.mrb[0].mxu0
        %v1618 = vadd.f32 0.0, %v1617
        %v1619 = vpop.f32.mrb[0].mxu0
        %1620 = vmatprep.mubr.f32.mxu0 0.0
        %1621 = vmatmul.mubr.f32.gmra.mrb[0].mxu0 %v1467
        %v1622 = vpop.f32.mrb[0].mxu0
        %v1623 = vadd.f32 0.0, %v1622
        %v1624 = vpop.f32.mrb[0].mxu0
        %1625 = vmatprep.mubr.f32.mxu0 0.0
        %1626 = vmatmul.mubr.f32.gmra.mrb[0].mxu0 %v1468
        %v1627 = vpop.f32.mrb[0].mxu0
        %v1628 = vadd.f32 0.0, %v1627
        %v1629 = vpop.f32.mrb[0].mxu0
        %1630 = vdwg.mxu0
        %v1631 = vadd.f32 %v1437, %v1553
        %v1632 = vadd.f32 %v1438, %v1558
        %v1633 = vadd.f32 %v1439, %v1563
        %v1634 = vadd.f32 %v1440, %v1568
        %v1635 = vadd.f32 %v1441, %v1573
        %v1636 = vadd.f32 %v1442, %v1578
        %v1637 = vadd.f32 %v1443, %v1583
        %v1638 = vadd.f32 %v1444, %v1588
        %v1639 = vadd.f32 %v1445, %v1593
        %v1640 = vadd.f32 %v1446, %v1598
        %v1641 = vadd.f32 %v1447, %v1603
        %v1642 = vadd.f32 %v1448, %v1608
        %v1643 = vadd.f32 %v1449, %v1613
        %v1644 = vadd.f32 %v1450, %v1618
        %v1645 = vadd.f32 %v1451, %v1623
        %v1646 = vadd.f32 %v1452, %v1628
        %s1647 = scalar_lea.vmem %s393, 32 [#allocation3]
        %v1648 = vld [vmem:[%s1647] sm:$0xff]
        %v1649 = vld [vmem:[%s1647 + $0x10] sm:$0xff]
        %v1650 = vld [vmem:[%s1647 + $0x20] sm:$0xff]
        %v1651 = vld [vmem:[%s1647 + $0x30] sm:$0xff]
        %v1652 = vld [vmem:[%s1647 + $0x40] sm:$0xff]
        %v1653 = vld [vmem:[%s1647 + $0x50] sm:$0xff]
        %v1654 = vld [vmem:[%s1647 + $0x60] sm:$0xff]
        %v1655 = vld [vmem:[%s1647 + $0x70] sm:$0xff]
        %v1656 = vld [vmem:[%s1647 + $0xa0] sm:$0xff]
        %v1657 = vld [vmem:[%s1647 + $0xb0] sm:$0xff]
        %v1658 = vld [vmem:[%s1647 + $0xc0] sm:$0xff]
        %v1659 = vld [vmem:[%s1647 + $0xd0] sm:$0xff]
        %v1660 = vld [vmem:[%s1647 + $0xe0] sm:$0xff]
        %v1661 = vld [vmem:[%s1647 + $0xf0] sm:$0xff]
        %v1662 = vld [vmem:[%s1647 + $0x100] sm:$0xff]
        %v1663 = vld [vmem:[%s1647 + $0x110] sm:$0xff]
        %s1664 = scalar_lea.vmem [#allocation6], 768
        %v1665 = vld [vmem:[%s1664] sm:$0xff]
        %v1666 = vld [vmem:[%s1664 + $0x8] sm:$0xff]
        %v1667 = vld [vmem:[%s1664 + $0x10] sm:$0xff]
        %v1668 = vld [vmem:[%s1664 + $0x18] sm:$0xff]
        %v1669 = vld [vmem:[%s1664 + $0x20] sm:$0xff]
        %v1670 = vld [vmem:[%s1664 + $0x28] sm:$0xff]
        %v1671 = vld [vmem:[%s1664 + $0x30] sm:$0xff]
        %v1672 = vld [vmem:[%s1664 + $0x38] sm:$0xff]
        %v1673 = vld [vmem:[%s1664 + $0x40] sm:$0xff]
        %v1674 = vld [vmem:[%s1664 + $0x48] sm:$0xff]
        %v1675 = vld [vmem:[%s1664 + $0x50] sm:$0xff]
        %v1676 = vld [vmem:[%s1664 + $0x58] sm:$0xff]
        %v1677 = vld [vmem:[%s1664 + $0x60] sm:$0xff]
        %v1678 = vld [vmem:[%s1664 + $0x68] sm:$0xff]
        %v1679 = vld [vmem:[%s1664 + $0x70] sm:$0xff]
        %v1680 = vld [vmem:[%s1664 + $0x78] sm:$0xff]
        %1681 = vmatprep.subr.mxu0 0.0
        %1682 = vmatpush1.msra.mxu0 %v1665
        %1683 = vmatprep.subr.mxu0 0.0
        %1684 = vmatpush1.msra.mxu0 %v1666
        %1685 = vmatprep.subr.mxu0 0.0
        %1686 = vmatpush1.msra.mxu0 %v1667
        %1687 = vmatprep.subr.mxu0 0.0
        %1688 = vmatpush1.msra.mxu0 %v1668
        %1689 = vmatprep.subr.mxu0 0.0
        %1690 = vmatpush1.msra.mxu0 %v1669
        %1691 = vmatprep.subr.mxu0 0.0
        %1692 = vmatpush1.msra.mxu0 %v1670
        %1693 = vmatprep.subr.mxu0 0.0
        %1694 = vmatpush1.msra.mxu0 %v1671
        %1695 = vmatprep.subr.mxu0 0.0
        %1696 = vmatpush1.msra.mxu0 %v1672
        %1697 = vmatprep.subr.mxu0 0.0
        %1698 = vmatpush1.msra.mxu0 %v1673
        %1699 = vmatprep.subr.mxu0 0.0
        %1700 = vmatpush1.msra.mxu0 %v1674
        %1701 = vmatprep.subr.mxu0 0.0
        %1702 = vmatpush1.msra.mxu0 %v1675
        %1703 = vmatprep.subr.mxu0 0.0
        %1704 = vmatpush1.msra.mxu0 %v1676
        %1705 = vmatprep.subr.mxu0 0.0
        %1706 = vmatpush1.msra.mxu0 %v1677
        %1707 = vmatprep.subr.mxu0 0.0
        %1708 = vmatpush1.msra.mxu0 %v1678
        %1709 = vmatprep.subr.mxu0 0.0
        %1710 = vmatpush1.msra.mxu0 %v1679
        %1711 = vmatprep.subr.mxu0 0.0
        %1712 = vmatpush1.msra.mxu0 %v1680
        %1713 = vmatprep.subr.mxu0 0.0
        %1714 = vmatpush1.msra.mxu0 0.0
        %1715 = vmatprep.subr.mxu0 0.0
        %1716 = vmatpush1.msra.mxu0 0.0
        %1717 = vmatprep.subr.mxu0 0.0
        %1718 = vmatpush1.msra.mxu0 0.0
        %1719 = vmatprep.subr.mxu0 0.0
        %1720 = vmatpush1.msra.mxu0 0.0
        %1721 = vmatprep.subr.mxu0 0.0
        %1722 = vmatpush1.msra.mxu0 0.0
        %1723 = vmatprep.subr.mxu0 0.0
        %1724 = vmatpush1.msra.mxu0 0.0
        %1725 = vmatprep.subr.mxu0 0.0
        %1726 = vmatpush1.msra.mxu0 0.0
        %1727 = vmatprep.subr.mxu0 0.0
        %1728 = vmatpush1.msra.mxu0 0.0
        %1729 = vmatprep.subr.mxu0 0.0
        %1730 = vmatpush1.msra.mxu0 0.0
        %1731 = vmatprep.subr.mxu0 0.0
        %1732 = vmatpush1.msra.mxu0 0.0
        %1733 = vmatprep.subr.mxu0 0.0
        %1734 = vmatpush1.msra.mxu0 0.0
        %1735 = vmatprep.subr.mxu0 0.0
        %1736 = vmatpush1.msra.mxu0 0.0
        %1737 = vmatprep.subr.mxu0 0.0
        %1738 = vmatpush1.msra.mxu0 0.0
        %1739 = vmatprep.subr.mxu0 0.0
        %1740 = vmatpush1.msra.mxu0 0.0
        %1741 = vmatprep.subr.mxu0 0.0
        %1742 = vmatpush1.msra.mxu0 0.0
        %1743 = vmatprep.subr.mxu0 0.0
        %1744 = vmatpush1.msra.mxu0 0.0
        %1745 = vmatprep.mubr.f32.mxu0 0.0
        %1746 = vmatmul.mubr.f32.gmra.mrb[0].mxu0 %v1648
        %v1747 = vpop.f32.mrb[0].mxu0
        %v1748 = vadd.f32 0.0, %v1747
        %v1749 = vpop.f32.mrb[0].mxu0
        %1750 = vmatprep.mubr.f32.mxu0 0.0
        %1751 = vmatmul.mubr.f32.gmra.mrb[0].mxu0 %v1649
        %v1752 = vpop.f32.mrb[0].mxu0
        %v1753 = vadd.f32 0.0, %v1752
        %v1754 = vpop.f32.mrb[0].mxu0
        %1755 = vmatprep.mubr.f32.mxu0 0.0
        %1756 = vmatmul.mubr.f32.gmra.mrb[0].mxu0 %v1650
        %v1757 = vpop.f32.mrb[0].mxu0
        %v1758 = vadd.f32 0.0, %v1757
        %v1759 = vpop.f32.mrb[0].mxu0
        %1760 = vmatprep.mubr.f32.mxu0 0.0
        %1761 = vmatmul.mubr.f32.gmra.mrb[0].mxu0 %v1651
        %v1762 = vpop.f32.mrb[0].mxu0
        %v1763 = vadd.f32 0.0, %v1762
        %v1764 = vpop.f32.mrb[0].mxu0
        %1765 = vmatprep.mubr.f32.mxu0 0.0
        %1766 = vmatmul.mubr.f32.gmra.mrb[0].mxu0 %v1652
        %v1767 = vpop.f32.mrb[0].mxu0
        %v1768 = vadd.f32 0.0, %v1767
        %v1769 = vpop.f32.mrb[0].mxu0
        %1770 = vmatprep.mubr.f32.mxu0 0.0
        %1771 = vmatmul.mubr.f32.gmra.mrb[0].mxu0 %v1653
        %v1772 = vpop.f32.mrb[0].mxu0
        %v1773 = vadd.f32 0.0, %v1772
        %v1774 = vpop.f32.mrb[0].mxu0
        %1775 = vmatprep.mubr.f32.mxu0 0.0
        %1776 = vmatmul.mubr.f32.gmra.mrb[0].mxu0 %v1654
        %v1777 = vpop.f32.mrb[0].mxu0
        %v1778 = vadd.f32 0.0, %v1777
        %v1779 = vpop.f32.mrb[0].mxu0
        %1780 = vmatprep.mubr.f32.mxu0 0.0
        %1781 = vmatmul.mubr.f32.gmra.mrb[0].mxu0 %v1655
        %v1782 = vpop.f32.mrb[0].mxu0
        %v1783 = vadd.f32 0.0, %v1782
        %v1784 = vpop.f32.mrb[0].mxu0
        %1785 = vmatprep.mubr.f32.mxu0 0.0
        %1786 = vmatmul.mubr.f32.gmra.mrb[0].mxu0 %v1656
        %v1787 = vpop.f32.mrb[0].mxu0
        %v1788 = vadd.f32 0.0, %v1787
        %v1789 = vpop.f32.mrb[0].mxu0
        %1790 = vmatprep.mubr.f32.mxu0 0.0
        %1791 = vmatmul.mubr.f32.gmra.mrb[0].mxu0 %v1657
        %v1792 = vpop.f32.mrb[0].mxu0
        %v1793 = vadd.f32 0.0, %v1792
        %v1794 = vpop.f32.mrb[0].mxu0
        %1795 = vmatprep.mubr.f32.mxu0 0.0
        %1796 = vmatmul.mubr.f32.gmra.mrb[0].mxu0 %v1658
        %v1797 = vpop.f32.mrb[0].mxu0
        %v1798 = vadd.f32 0.0, %v1797
        %v1799 = vpop.f32.mrb[0].mxu0
        %1800 = vmatprep.mubr.f32.mxu0 0.0
        %1801 = vmatmul.mubr.f32.gmra.mrb[0].mxu0 %v1659
        %v1802 = vpop.f32.mrb[0].mxu0
        %v1803 = vadd.f32 0.0, %v1802
        %v1804 = vpop.f32.mrb[0].mxu0
        %1805 = vmatprep.mubr.f32.mxu0 0.0
        %1806 = vmatmul.mubr.f32.gmra.mrb[0].mxu0 %v1660
        %v1807 = vpop.f32.mrb[0].mxu0
        %v1808 = vadd.f32 0.0, %v1807
        %v1809 = vpop.f32.mrb[0].mxu0
        %1810 = vmatprep.mubr.f32.mxu0 0.0
        %1811 = vmatmul.mubr.f32.gmra.mrb[0].mxu0 %v1661
        %v1812 = vpop.f32.mrb[0].mxu0
        %v1813 = vadd.f32 0.0, %v1812
        %v1814 = vpop.f32.mrb[0].mxu0
        %1815 = vmatprep.mubr.f32.mxu0 0.0
        %1816 = vmatmul.mubr.f32.gmra.mrb[0].mxu0 %v1662
        %v1817 = vpop.f32.mrb[0].mxu0
        %v1818 = vadd.f32 0.0, %v1817
        %v1819 = vpop.f32.mrb[0].mxu0
        %1820 = vmatprep.mubr.f32.mxu0 0.0
        %1821 = vmatmul.mubr.f32.gmra.mrb[0].mxu0 %v1663
        %v1822 = vpop.f32.mrb[0].mxu0
        %v1823 = vadd.f32 0.0, %v1822
        %v1824 = vpop.f32.mrb[0].mxu0
        %1825 = vdwg.mxu0
        %v1826 = vadd.f32 %v1631, %v1748
        %v1827 = vadd.f32 %v1632, %v1753
        %v1828 = vadd.f32 %v1633, %v1758
        %v1829 = vadd.f32 %v1634, %v1763
        %v1830 = vadd.f32 %v1635, %v1768
        %v1831 = vadd.f32 %v1636, %v1773
        %v1832 = vadd.f32 %v1637, %v1778
        %v1833 = vadd.f32 %v1638, %v1783
        %v1834 = vadd.f32 %v1639, %v1788
        %v1835 = vadd.f32 %v1640, %v1793
        %v1836 = vadd.f32 %v1641, %v1798
        %v1837 = vadd.f32 %v1642, %v1803
        %v1838 = vadd.f32 %v1643, %v1808
        %v1839 = vadd.f32 %v1644, %v1813
        %v1840 = vadd.f32 %v1645, %v1818
        %v1841 = vadd.f32 %v1646, %v1823
        %v1842 = vld [vmem:[%s1647 + $0x1] sm:$0xff]
        %v1843 = vld [vmem:[%s1647 + $0x11] sm:$0xff]
        %v1844 = vld [vmem:[%s1647 + $0x21] sm:$0xff]
        %v1845 = vld [vmem:[%s1647 + $0x31] sm:$0xff]
        %v1846 = vld [vmem:[%s1647 + $0x41] sm:$0xff]
        %v1847 = vld [vmem:[%s1647 + $0x51] sm:$0xff]
        %v1848 = vld [vmem:[%s1647 + $0x61] sm:$0xff]
        %v1849 = vld [vmem:[%s1647 + $0x71] sm:$0xff]
        %v1850 = vld [vmem:[%s1647 + $0xa1] sm:$0xff]
        %v1851 = vld [vmem:[%s1647 + $0xb1] sm:$0xff]
        %v1852 = vld [vmem:[%s1647 + $0xc1] sm:$0xff]
        %v1853 = vld [vmem:[%s1647 + $0xd1] sm:$0xff]
        %v1854 = vld [vmem:[%s1647 + $0xe1] sm:$0xff]
        %v1855 = vld [vmem:[%s1647 + $0xf1] sm:$0xff]
        %v1856 = vld [vmem:[%s1647 + $0x101] sm:$0xff]
        %v1857 = vld [vmem:[%s1647 + $0x111] sm:$0xff]
        %s1858 = scalar_lea.vmem [#allocation6], 896
        %v1859 = vld [vmem:[%s1858] sm:$0xff]
        %v1860 = vld [vmem:[%s1858 + $0x8] sm:$0xff]
        %v1861 = vld [vmem:[%s1858 + $0x10] sm:$0xff]
        %v1862 = vld [vmem:[%s1858 + $0x18] sm:$0xff]
        %v1863 = vld [vmem:[%s1858 + $0x20] sm:$0xff]
        %v1864 = vld [vmem:[%s1858 + $0x28] sm:$0xff]
        %v1865 = vld [vmem:[%s1858 + $0x30] sm:$0xff]
        %v1866 = vld [vmem:[%s1858 + $0x38] sm:$0xff]
        %v1867 = vld [vmem:[%s1858 + $0x40] sm:$0xff]
        %v1868 = vld [vmem:[%s1858 + $0x48] sm:$0xff]
        %v1869 = vld [vmem:[%s1858 + $0x50] sm:$0xff]
        %v1870 = vld [vmem:[%s1858 + $0x58] sm:$0xff]
        %v1871 = vld [vmem:[%s1858 + $0x60] sm:$0xff]
        %v1872 = vld [vmem:[%s1858 + $0x68] sm:$0xff]
        %v1873 = vld [vmem:[%s1858 + $0x70] sm:$0xff]
        %v1874 = vld [vmem:[%s1858 + $0x78] sm:$0xff]
        %1875 = vmatprep.subr.mxu0 0.0
        %1876 = vmatpush1.msra.mxu0 %v1859
        %1877 = vmatprep.subr.mxu0 0.0
        %1878 = vmatpush1.msra.mxu0 %v1860
        %1879 = vmatprep.subr.mxu0 0.0
        %1880 = vmatpush1.msra.mxu0 %v1861
        %1881 = vmatprep.subr.mxu0 0.0
        %1882 = vmatpush1.msra.mxu0 %v1862
        %1883 = vmatprep.subr.mxu0 0.0
        %1884 = vmatpush1.msra.mxu0 %v1863
        %1885 = vmatprep.subr.mxu0 0.0
        %1886 = vmatpush1.msra.mxu0 %v1864
        %1887 = vmatprep.subr.mxu0 0.0
        %1888 = vmatpush1.msra.mxu0 %v1865
        %1889 = vmatprep.subr.mxu0 0.0
        %1890 = vmatpush1.msra.mxu0 %v1866
        %1891 = vmatprep.subr.mxu0 0.0
        %1892 = vmatpush1.msra.mxu0 %v1867
        %1893 = vmatprep.subr.mxu0 0.0
        %1894 = vmatpush1.msra.mxu0 %v1868
        %1895 = vmatprep.subr.mxu0 0.0
        %1896 = vmatpush1.msra.mxu0 %v1869
        %1897 = vmatprep.subr.mxu0 0.0
        %1898 = vmatpush1.msra.mxu0 %v1870
        %1899 = vmatprep.subr.mxu0 0.0
        %1900 = vmatpush1.msra.mxu0 %v1871
        %1901 = vmatprep.subr.mxu0 0.0
        %1902 = vmatpush1.msra.mxu0 %v1872
        %1903 = vmatprep.subr.mxu0 0.0
        %1904 = vmatpush1.msra.mxu0 %v1873
        %1905 = vmatprep.subr.mxu0 0.0
        %1906 = vmatpush1.msra.mxu0 %v1874
        %1907 = vmatprep.subr.mxu0 0.0
        %1908 = vmatpush1.msra.mxu0 0.0
        %1909 = vmatprep.subr.mxu0 0.0
        %1910 = vmatpush1.msra.mxu0 0.0
        %1911 = vmatprep.subr.mxu0 0.0
        %1912 = vmatpush1.msra.mxu0 0.0
        %1913 = vmatprep.subr.mxu0 0.0
        %1914 = vmatpush1.msra.mxu0 0.0
        %1915 = vmatprep.subr.mxu0 0.0
        %1916 = vmatpush1.msra.mxu0 0.0
        %1917 = vmatprep.subr.mxu0 0.0
        %1918 = vmatpush1.msra.mxu0 0.0
        %1919 = vmatprep.subr.mxu0 0.0
        %1920 = vmatpush1.msra.mxu0 0.0
        %1921 = vmatprep.subr.mxu0 0.0
        %1922 = vmatpush1.msra.mxu0 0.0
        %1923 = vmatprep.subr.mxu0 0.0
        %1924 = vmatpush1.msra.mxu0 0.0
        %1925 = vmatprep.subr.mxu0 0.0
        %1926 = vmatpush1.msra.mxu0 0.0
        %1927 = vmatprep.subr.mxu0 0.0
        %1928 = vmatpush1.msra.mxu0 0.0
        %1929 = vmatprep.subr.mxu0 0.0
        %1930 = vmatpush1.msra.mxu0 0.0
        %1931 = vmatprep.subr.mxu0 0.0
        %1932 = vmatpush1.msra.mxu0 0.0
        %1933 = vmatprep.subr.mxu0 0.0
        %1934 = vmatpush1.msra.mxu0 0.0
        %1935 = vmatprep.subr.mxu0 0.0
        %1936 = vmatpush1.msra.mxu0 0.0
        %1937 = vmatprep.subr.mxu0 0.0
        %1938 = vmatpush1.msra.mxu0 0.0
        %1939 = vmatprep.mubr.f32.mxu0 0.0
        %1940 = vmatmul.mubr.f32.gmra.mrb[0].mxu0 %v1842
        %v1941 = vpop.f32.mrb[0].mxu0
        %v1942 = vadd.f32 0.0, %v1941
        %v1943 = vpop.f32.mrb[0].mxu0
        %1944 = vmatprep.mubr.f32.mxu0 0.0
        %1945 = vmatmul.mubr.f32.gmra.mrb[0].mxu0 %v1843
        %v1946 = vpop.f32.mrb[0].mxu0
        %v1947 = vadd.f32 0.0, %v1946
        %v1948 = vpop.f32.mrb[0].mxu0
        %1949 = vmatprep.mubr.f32.mxu0 0.0
        %1950 = vmatmul.mubr.f32.gmra.mrb[0].mxu0 %v1844
        %v1951 = vpop.f32.mrb[0].mxu0
        %v1952 = vadd.f32 0.0, %v1951
        %v1953 = vpop.f32.mrb[0].mxu0
        %1954 = vmatprep.mubr.f32.mxu0 0.0
        %1955 = vmatmul.mubr.f32.gmra.mrb[0].mxu0 %v1845
        %v1956 = vpop.f32.mrb[0].mxu0
        %v1957 = vadd.f32 0.0, %v1956
        %v1958 = vpop.f32.mrb[0].mxu0
        %1959 = vmatprep.mubr.f32.mxu0 0.0
        %1960 = vmatmul.mubr.f32.gmra.mrb[0].mxu0 %v1846
        %v1961 = vpop.f32.mrb[0].mxu0
        %v1962 = vadd.f32 0.0, %v1961
        %v1963 = vpop.f32.mrb[0].mxu0
        %1964 = vmatprep.mubr.f32.mxu0 0.0
        %1965 = vmatmul.mubr.f32.gmra.mrb[0].mxu0 %v1847
        %v1966 = vpop.f32.mrb[0].mxu0
        %v1967 = vadd.f32 0.0, %v1966
        %v1968 = vpop.f32.mrb[0].mxu0
        %1969 = vmatprep.mubr.f32.mxu0 0.0
        %1970 = vmatmul.mubr.f32.gmra.mrb[0].mxu0 %v1848
        %v1971 = vpop.f32.mrb[0].mxu0
        %v1972 = vadd.f32 0.0, %v1971
        %v1973 = vpop.f32.mrb[0].mxu0
        %1974 = vmatprep.mubr.f32.mxu0 0.0
        %1975 = vmatmul.mubr.f32.gmra.mrb[0].mxu0 %v1849
        %v1976 = vpop.f32.mrb[0].mxu0
        %v1977 = vadd.f32 0.0, %v1976
        %v1978 = vpop.f32.mrb[0].mxu0
        %1979 = vmatprep.mubr.f32.mxu0 0.0
        %1980 = vmatmul.mubr.f32.gmra.mrb[0].mxu0 %v1850
        %v1981 = vpop.f32.mrb[0].mxu0
        %v1982 = vadd.f32 0.0, %v1981
        %v1983 = vpop.f32.mrb[0].mxu0
        %1984 = vmatprep.mubr.f32.mxu0 0.0
        %1985 = vmatmul.mubr.f32.gmra.mrb[0].mxu0 %v1851
        %v1986 = vpop.f32.mrb[0].mxu0
        %v1987 = vadd.f32 0.0, %v1986
        %v1988 = vpop.f32.mrb[0].mxu0
        %1989 = vmatprep.mubr.f32.mxu0 0.0
        %1990 = vmatmul.mubr.f32.gmra.mrb[0].mxu0 %v1852
        %v1991 = vpop.f32.mrb[0].mxu0
        %v1992 = vadd.f32 0.0, %v1991
        %v1993 = vpop.f32.mrb[0].mxu0
        %1994 = vmatprep.mubr.f32.mxu0 0.0
        %1995 = vmatmul.mubr.f32.gmra.mrb[0].mxu0 %v1853
        %v1996 = vpop.f32.mrb[0].mxu0
        %v1997 = vadd.f32 0.0, %v1996
        %v1998 = vpop.f32.mrb[0].mxu0
        %1999 = vmatprep.mubr.f32.mxu0 0.0
        %2000 = vmatmul.mubr.f32.gmra.mrb[0].mxu0 %v1854
        %v2001 = vpop.f32.mrb[0].mxu0
        %v2002 = vadd.f32 0.0, %v2001
        %v2003 = vpop.f32.mrb[0].mxu0
        %2004 = vmatprep.mubr.f32.mxu0 0.0
        %2005 = vmatmul.mubr.f32.gmra.mrb[0].mxu0 %v1855
        %v2006 = vpop.f32.mrb[0].mxu0
        %v2007 = vadd.f32 0.0, %v2006
        %v2008 = vpop.f32.mrb[0].mxu0
        %2009 = vmatprep.mubr.f32.mxu0 0.0
        %2010 = vmatmul.mubr.f32.gmra.mrb[0].mxu0 %v1856
        %v2011 = vpop.f32.mrb[0].mxu0
        %v2012 = vadd.f32 0.0, %v2011
        %v2013 = vpop.f32.mrb[0].mxu0
        %2014 = vmatprep.mubr.f32.mxu0 0.0
        %2015 = vmatmul.mubr.f32.gmra.mrb[0].mxu0 %v1857
        %v2016 = vpop.f32.mrb[0].mxu0
        %v2017 = vadd.f32 0.0, %v2016
        %v2018 = vpop.f32.mrb[0].mxu0
        %2019 = vdwg.mxu0
        %v2020 = vadd.f32 %v1826, %v1942
        %v2021 = vadd.f32 %v1827, %v1947
        %v2022 = vadd.f32 %v1828, %v1952
        %v2023 = vadd.f32 %v1829, %v1957
        %v2024 = vadd.f32 %v1830, %v1962
        %v2025 = vadd.f32 %v1831, %v1967
        %v2026 = vadd.f32 %v1832, %v1972
        %v2027 = vadd.f32 %v1833, %v1977
        %v2028 = vadd.f32 %v1834, %v1982
        %v2029 = vadd.f32 %v1835, %v1987
        %v2030 = vadd.f32 %v1836, %v1992
        %v2031 = vadd.f32 %v1837, %v1997
        %v2032 = vadd.f32 %v1838, %v2002
        %v2033 = vadd.f32 %v1839, %v2007
        %v2034 = vadd.f32 %v1840, %v2012
        %v2035 = vadd.f32 %v1841, %v2017
        %v2036 = vld [vmem:[%s1647 + $0x2] sm:$0xff]
        %v2037 = vld [vmem:[%s1647 + $0x12] sm:$0xff]
        %v2038 = vld [vmem:[%s1647 + $0x22] sm:$0xff]
        %v2039 = vld [vmem:[%s1647 + $0x32] sm:$0xff]
        %v2040 = vld [vmem:[%s1647 + $0x42] sm:$0xff]
        %v2041 = vld [vmem:[%s1647 + $0x52] sm:$0xff]
        %v2042 = vld [vmem:[%s1647 + $0x62] sm:$0xff]
        %v2043 = vld [vmem:[%s1647 + $0x72] sm:$0xff]
        %v2044 = vld [vmem:[%s1647 + $0xa2] sm:$0xff]
        %v2045 = vld [vmem:[%s1647 + $0xb2] sm:$0xff]
        %v2046 = vld [vmem:[%s1647 + $0xc2] sm:$0xff]
        %v2047 = vld [vmem:[%s1647 + $0xd2] sm:$0xff]
        %v2048 = vld [vmem:[%s1647 + $0xe2] sm:$0xff]
        %v2049 = vld [vmem:[%s1647 + $0xf2] sm:$0xff]
        %v2050 = vld [vmem:[%s1647 + $0x102] sm:$0xff]
        %v2051 = vld [vmem:[%s1647 + $0x112] sm:$0xff]
        %s2052 = scalar_lea.vmem [#allocation6], 1024
        %v2053 = vld [vmem:[%s2052] sm:$0xff]
        %v2054 = vld [vmem:[%s2052 + $0x8] sm:$0xff]
        %v2055 = vld [vmem:[%s2052 + $0x10] sm:$0xff]
        %v2056 = vld [vmem:[%s2052 + $0x18] sm:$0xff]
        %v2057 = vld [vmem:[%s2052 + $0x20] sm:$0xff]
        %v2058 = vld [vmem:[%s2052 + $0x28] sm:$0xff]
        %v2059 = vld [vmem:[%s2052 + $0x30] sm:$0xff]
        %v2060 = vld [vmem:[%s2052 + $0x38] sm:$0xff]
        %v2061 = vld [vmem:[%s2052 + $0x40] sm:$0xff]
        %v2062 = vld [vmem:[%s2052 + $0x48] sm:$0xff]
        %v2063 = vld [vmem:[%s2052 + $0x50] sm:$0xff]
        %v2064 = vld [vmem:[%s2052 + $0x58] sm:$0xff]
        %v2065 = vld [vmem:[%s2052 + $0x60] sm:$0xff]
        %v2066 = vld [vmem:[%s2052 + $0x68] sm:$0xff]
        %v2067 = vld [vmem:[%s2052 + $0x70] sm:$0xff]
        %v2068 = vld [vmem:[%s2052 + $0x78] sm:$0xff]
        %2069 = vmatprep.subr.mxu0 0.0
        %2070 = vmatpush1.msra.mxu0 %v2053
        %2071 = vmatprep.subr.mxu0 0.0
        %2072 = vmatpush1.msra.mxu0 %v2054
        %2073 = vmatprep.subr.mxu0 0.0
        %2074 = vmatpush1.msra.mxu0 %v2055
        %2075 = vmatprep.subr.mxu0 0.0
        %2076 = vmatpush1.msra.mxu0 %v2056
        %2077 = vmatprep.subr.mxu0 0.0
        %2078 = vmatpush1.msra.mxu0 %v2057
        %2079 = vmatprep.subr.mxu0 0.0
        %2080 = vmatpush1.msra.mxu0 %v2058
        %2081 = vmatprep.subr.mxu0 0.0
        %2082 = vmatpush1.msra.mxu0 %v2059
        %2083 = vmatprep.subr.mxu0 0.0
        %2084 = vmatpush1.msra.mxu0 %v2060
        %2085 = vmatprep.subr.mxu0 0.0
        %2086 = vmatpush1.msra.mxu0 %v2061
        %2087 = vmatprep.subr.mxu0 0.0
        %2088 = vmatpush1.msra.mxu0 %v2062
        %2089 = vmatprep.subr.mxu0 0.0
        %2090 = vmatpush1.msra.mxu0 %v2063
        %2091 = vmatprep.subr.mxu0 0.0
        %2092 = vmatpush1.msra.mxu0 %v2064
        %2093 = vmatprep.subr.mxu0 0.0
        %2094 = vmatpush1.msra.mxu0 %v2065
        %2095 = vmatprep.subr.mxu0 0.0
        %2096 = vmatpush1.msra.mxu0 %v2066
        %2097 = vmatprep.subr.mxu0 0.0
        %2098 = vmatpush1.msra.mxu0 %v2067
        %2099 = vmatprep.subr.mxu0 0.0
        %2100 = vmatpush1.msra.mxu0 %v2068
        %2101 = vmatprep.subr.mxu0 0.0
        %2102 = vmatpush1.msra.mxu0 0.0
        %2103 = vmatprep.subr.mxu0 0.0
        %2104 = vmatpush1.msra.mxu0 0.0
        %2105 = vmatprep.subr.mxu0 0.0
        %2106 = vmatpush1.msra.mxu0 0.0
        %2107 = vmatprep.subr.mxu0 0.0
        %2108 = vmatpush1.msra.mxu0 0.0
        %2109 = vmatprep.subr.mxu0 0.0
        %2110 = vmatpush1.msra.mxu0 0.0
        %2111 = vmatprep.subr.mxu0 0.0
        %2112 = vmatpush1.msra.mxu0 0.0
        %2113 = vmatprep.subr.mxu0 0.0
        %2114 = vmatpush1.msra.mxu0 0.0
        %2115 = vmatprep.subr.mxu0 0.0
        %2116 = vmatpush1.msra.mxu0 0.0
        %2117 = vmatprep.subr.mxu0 0.0
        %2118 = vmatpush1.msra.mxu0 0.0
        %2119 = vmatprep.subr.mxu0 0.0
        %2120 = vmatpush1.msra.mxu0 0.0
        %2121 = vmatprep.subr.mxu0 0.0
        %2122 = vmatpush1.msra.mxu0 0.0
        %2123 = vmatprep.subr.mxu0 0.0
        %2124 = vmatpush1.msra.mxu0 0.0
        %2125 = vmatprep.subr.mxu0 0.0
        %2126 = vmatpush1.msra.mxu0 0.0
        %2127 = vmatprep.subr.mxu0 0.0
        %2128 = vmatpush1.msra.mxu0 0.0
        %2129 = vmatprep.subr.mxu0 0.0
        %2130 = vmatpush1.msra.mxu0 0.0
        %2131 = vmatprep.subr.mxu0 0.0
        %2132 = vmatpush1.msra.mxu0 0.0
        %2133 = vmatprep.mubr.f32.mxu0 0.0
        %2134 = vmatmul.mubr.f32.gmra.mrb[0].mxu0 %v2036
        %v2135 = vpop.f32.mrb[0].mxu0
        %v2136 = vadd.f32 0.0, %v2135
        %v2137 = vpop.f32.mrb[0].mxu0
        %2138 = vmatprep.mubr.f32.mxu0 0.0
        %2139 = vmatmul.mubr.f32.gmra.mrb[0].mxu0 %v2037
        %v2140 = vpop.f32.mrb[0].mxu0
        %v2141 = vadd.f32 0.0, %v2140
        %v2142 = vpop.f32.mrb[0].mxu0
        %2143 = vmatprep.mubr.f32.mxu0 0.0
        %2144 = vmatmul.mubr.f32.gmra.mrb[0].mxu0 %v2038
        %v2145 = vpop.f32.mrb[0].mxu0
        %v2146 = vadd.f32 0.0, %v2145
        %v2147 = vpop.f32.mrb[0].mxu0
        %2148 = vmatprep.mubr.f32.mxu0 0.0
        %2149 = vmatmul.mubr.f32.gmra.mrb[0].mxu0 %v2039
        %v2150 = vpop.f32.mrb[0].mxu0
        %v2151 = vadd.f32 0.0, %v2150
        %v2152 = vpop.f32.mrb[0].mxu0
        %2153 = vmatprep.mubr.f32.mxu0 0.0
        %2154 = vmatmul.mubr.f32.gmra.mrb[0].mxu0 %v2040
        %v2155 = vpop.f32.mrb[0].mxu0
        %v2156 = vadd.f32 0.0, %v2155
        %v2157 = vpop.f32.mrb[0].mxu0
        %2158 = vmatprep.mubr.f32.mxu0 0.0
        %2159 = vmatmul.mubr.f32.gmra.mrb[0].mxu0 %v2041
        %v2160 = vpop.f32.mrb[0].mxu0
        %v2161 = vadd.f32 0.0, %v2160
        %v2162 = vpop.f32.mrb[0].mxu0
        %2163 = vmatprep.mubr.f32.mxu0 0.0
        %2164 = vmatmul.mubr.f32.gmra.mrb[0].mxu0 %v2042
        %v2165 = vpop.f32.mrb[0].mxu0
        %v2166 = vadd.f32 0.0, %v2165
        %v2167 = vpop.f32.mrb[0].mxu0
        %2168 = vmatprep.mubr.f32.mxu0 0.0
        %2169 = vmatmul.mubr.f32.gmra.mrb[0].mxu0 %v2043
        %v2170 = vpop.f32.mrb[0].mxu0
        %v2171 = vadd.f32 0.0, %v2170
        %v2172 = vpop.f32.mrb[0].mxu0
        %2173 = vmatprep.mubr.f32.mxu0 0.0
        %2174 = vmatmul.mubr.f32.gmra.mrb[0].mxu0 %v2044
        %v2175 = vpop.f32.mrb[0].mxu0
        %v2176 = vadd.f32 0.0, %v2175
        %v2177 = vpop.f32.mrb[0].mxu0
        %2178 = vmatprep.mubr.f32.mxu0 0.0
        %2179 = vmatmul.mubr.f32.gmra.mrb[0].mxu0 %v2045
        %v2180 = vpop.f32.mrb[0].mxu0
        %v2181 = vadd.f32 0.0, %v2180
        %v2182 = vpop.f32.mrb[0].mxu0
        %2183 = vmatprep.mubr.f32.mxu0 0.0
        %2184 = vmatmul.mubr.f32.gmra.mrb[0].mxu0 %v2046
        %v2185 = vpop.f32.mrb[0].mxu0
        %v2186 = vadd.f32 0.0, %v2185
        %v2187 = vpop.f32.mrb[0].mxu0
        %2188 = vmatprep.mubr.f32.mxu0 0.0
        %2189 = vmatmul.mubr.f32.gmra.mrb[0].mxu0 %v2047
        %v2190 = vpop.f32.mrb[0].mxu0
        %v2191 = vadd.f32 0.0, %v2190
        %v2192 = vpop.f32.mrb[0].mxu0
        %2193 = vmatprep.mubr.f32.mxu0 0.0
        %2194 = vmatmul.mubr.f32.gmra.mrb[0].mxu0 %v2048
        %v2195 = vpop.f32.mrb[0].mxu0
        %v2196 = vadd.f32 0.0, %v2195
        %v2197 = vpop.f32.mrb[0].mxu0
        %2198 = vmatprep.mubr.f32.mxu0 0.0
        %2199 = vmatmul.mubr.f32.gmra.mrb[0].mxu0 %v2049
        %v2200 = vpop.f32.mrb[0].mxu0
        %v2201 = vadd.f32 0.0, %v2200
        %v2202 = vpop.f32.mrb[0].mxu0
        %2203 = vmatprep.mubr.f32.mxu0 0.0
        %2204 = vmatmul.mubr.f32.gmra.mrb[0].mxu0 %v2050
        %v2205 = vpop.f32.mrb[0].mxu0
        %v2206 = vadd.f32 0.0, %v2205
        %v2207 = vpop.f32.mrb[0].mxu0
        %2208 = vmatprep.mubr.f32.mxu0 0.0
        %2209 = vmatmul.mubr.f32.gmra.mrb[0].mxu0 %v2051
        %v2210 = vpop.f32.mrb[0].mxu0
        %v2211 = vadd.f32 0.0, %v2210
        %v2212 = vpop.f32.mrb[0].mxu0
        %2213 = vdwg.mxu0
        %v2214 = vadd.f32 %v2020, %v2136
        %v2215 = vadd.f32 %v2021, %v2141
        %v2216 = vadd.f32 %v2022, %v2146
        %v2217 = vadd.f32 %v2023, %v2151
        %v2218 = vadd.f32 %v2024, %v2156
        %v2219 = vadd.f32 %v2025, %v2161
        %v2220 = vadd.f32 %v2026, %v2166
        %v2221 = vadd.f32 %v2027, %v2171
        %v2222 = vadd.f32 %v2028, %v2176
        %v2223 = vadd.f32 %v2029, %v2181
        %v2224 = vadd.f32 %v2030, %v2186
        %v2225 = vadd.f32 %v2031, %v2191
        %v2226 = vadd.f32 %v2032, %v2196
        %v2227 = vadd.f32 %v2033, %v2201
        %v2228 = vadd.f32 %v2034, %v2206
        %v2229 = vadd.f32 %v2035, %v2211
        %v2231 = vlaneseq
        %v2232 = vshrl.u32 %v2231, 7
        %v2233 = vsub.s32 0, %v2232
        %v2234 = vrot.slane %v511, %v2233
        %v2236 = vmul.f32 %v2214, %v2234
        %v2237 = vmul.f32 %v2215, %v2234
        %v2238 = vmul.f32 %v2216, %v2234
        %v2239 = vmul.f32 %v2217, %v2234
        %v2240 = vmul.f32 %v2218, %v2234
        %v2241 = vmul.f32 %v2219, %v2234
        %v2242 = vmul.f32 %v2220, %v2234
        %v2243 = vmul.f32 %v2221, %v2234
        %v2244 = vmul.f32 %v2222, %v2234
        %v2245 = vmul.f32 %v2223, %v2234
        %v2246 = vmul.f32 %v2224, %v2234
        %v2247 = vmul.f32 %v2225, %v2234
        %v2248 = vmul.f32 %v2226, %v2234
        %v2249 = vmul.f32 %v2227, %v2234
        %v2250 = vmul.f32 %v2228, %v2234
        %v2251 = vmul.f32 %v2229, %v2234
        %v2253 = vlaneseq
        %v2254 = vshrl.u32 %v2253, 7
        %v2255 = vsub.s32 0, %v2254
        %v2256 = vrot.slane %v512, %v2255
        %v2258 = vadd.f32 %v2236, %v2256
        %v2259 = vadd.f32 %v2237, %v2256
        %v2260 = vadd.f32 %v2238, %v2256
        %v2261 = vadd.f32 %v2239, %v2256
        %v2262 = vadd.f32 %v2240, %v2256
        %v2263 = vadd.f32 %v2241, %v2256
        %v2264 = vadd.f32 %v2242, %v2256
        %v2265 = vadd.f32 %v2243, %v2256
        %v2266 = vadd.f32 %v2244, %v2256
        %v2267 = vadd.f32 %v2245, %v2256
        %v2268 = vadd.f32 %v2246, %v2256
        %v2269 = vadd.f32 %v2247, %v2256
        %v2270 = vadd.f32 %v2248, %v2256
        %v2271 = vadd.f32 %v2249, %v2256
        %v2272 = vadd.f32 %v2250, %v2256
        %v2273 = vadd.f32 %v2251, %v2256
        %v2274 = vmax.f32 %v2258, 0.0
        %v2275 = vmax.f32 %v2259, 0.0
        %v2276 = vmax.f32 %v2260, 0.0
        %v2277 = vmax.f32 %v2261, 0.0
        %v2278 = vmax.f32 %v2262, 0.0
        %v2279 = vmax.f32 %v2263, 0.0
        %v2280 = vmax.f32 %v2264, 0.0
        %v2281 = vmax.f32 %v2265, 0.0
        %v2282 = vmax.f32 %v2266, 0.0
        %v2283 = vmax.f32 %v2267, 0.0
        %v2284 = vmax.f32 %v2268, 0.0
        %v2285 = vmax.f32 %v2269, 0.0
        %v2286 = vmax.f32 %v2270, 0.0
        %v2287 = vmax.f32 %v2271, 0.0
        %v2288 = vmax.f32 %v2272, 0.0
        %v2289 = vmax.f32 %v2273, 0.0
        %s2290 = scalar_lea.vmem [#allocation2], 16
        %2291 = vst [vmem:[%s2290 + $0x1] sm:$0xff] %v2274
        %2292 = vst [vmem:[%s2290 + $0x11] sm:$0xff] %v2275
        %2293 = vst [vmem:[%s2290 + $0x21] sm:$0xff] %v2276
        %2294 = vst [vmem:[%s2290 + $0x31] sm:$0xff] %v2277
        %2295 = vst [vmem:[%s2290 + $0x41] sm:$0xff] %v2278
        %2296 = vst [vmem:[%s2290 + $0x51] sm:$0xff] %v2279
        %2297 = vst [vmem:[%s2290 + $0x61] sm:$0xff] %v2280
        %2298 = vst [vmem:[%s2290 + $0x71] sm:$0xff] %v2281
        %2299 = vst [vmem:[%s2290 + $0xa1] sm:$0xff] %v2282
        %2300 = vst [vmem:[%s2290 + $0xb1] sm:$0xff] %v2283
        %2301 = vst [vmem:[%s2290 + $0xc1] sm:$0xff] %v2284
        %2302 = vst [vmem:[%s2290 + $0xd1] sm:$0xff] %v2285
        %2303 = vst [vmem:[%s2290 + $0xe1] sm:$0xff] %v2286
        %2304 = vst [vmem:[%s2290 + $0xf1] sm:$0xff] %v2287
        %2305 = vst [vmem:[%s2290 + $0x101] sm:$0xff] %v2288
        %2306 = vst [vmem:[%s2290 + $0x111] sm:$0xff] %v2289
        %v2307 = vld [vmem:[#allocation2] sm:$0xff]
        %v2308 = vld [vmem:[#allocation2 + $0x10] sm:$0xff]
        %v2309 = vld [vmem:[#allocation2 + $0x20] sm:$0xff]
        %v2310 = vld [vmem:[#allocation2 + $0x30] sm:$0xff]
        %v2311 = vld [vmem:[#allocation2 + $0x40] sm:$0xff]
        %v2312 = vld [vmem:[#allocation2 + $0x50] sm:$0xff]
        %v2313 = vld [vmem:[#allocation2 + $0x60] sm:$0xff]
        %v2314 = vld [vmem:[#allocation2 + $0x70] sm:$0xff]
        %v2315 = vld [vmem:[#allocation2 + $0xa0] sm:$0xff]
        %v2316 = vld [vmem:[#allocation2 + $0xb0] sm:$0xff]
        %v2317 = vld [vmem:[#allocation2 + $0xc0] sm:$0xff]
        %v2318 = vld [vmem:[#allocation2 + $0xd0] sm:$0xff]
        %v2319 = vld [vmem:[#allocation2 + $0xe0] sm:$0xff]
        %v2320 = vld [vmem:[#allocation2 + $0xf0] sm:$0xff]
        %v2321 = vld [vmem:[#allocation2 + $0x100] sm:$0xff]
        %v2322 = vld [vmem:[#allocation2 + $0x110] sm:$0xff]
        %v2323 = vld [vmem:[#allocation11] sm:$0xff]
        %v2324 = vld [vmem:[#allocation11 + $0x8] sm:$0xff]
        %v2325 = vld [vmem:[#allocation11 + $0x10] sm:$0xff]
        %v2326 = vld [vmem:[#allocation11 + $0x18] sm:$0xff]
        %v2327 = vld [vmem:[#allocation11 + $0x20] sm:$0xff]
        %v2328 = vld [vmem:[#allocation11 + $0x28] sm:$0xff]
        %v2329 = vld [vmem:[#allocation11 + $0x30] sm:$0xff]
        %v2330 = vld [vmem:[#allocation11 + $0x38] sm:$0xff]
        %v2331 = vld [vmem:[#allocation11 + $0x40] sm:$0xff]
        %v2332 = vld [vmem:[#allocation11 + $0x48] sm:$0xff]
        %v2333 = vld [vmem:[#allocation11 + $0x50] sm:$0xff]
        %v2334 = vld [vmem:[#allocation11 + $0x58] sm:$0xff]
        %v2335 = vld [vmem:[#allocation11 + $0x60] sm:$0xff]
        %v2336 = vld [vmem:[#allocation11 + $0x68] sm:$0xff]
        %v2337 = vld [vmem:[#allocation11 + $0x70] sm:$0xff]
        %v2338 = vld [vmem:[#allocation11 + $0x78] sm:$0xff]
        %v2339 = vld [vmem:[#allocation2 + $0x1] sm:$0xff]
        %v2340 = vld [vmem:[#allocation2 + $0x11] sm:$0xff]
        %v2341 = vld [vmem:[#allocation2 + $0x21] sm:$0xff]
        %v2342 = vld [vmem:[#allocation2 + $0x31] sm:$0xff]
        %v2343 = vld [vmem:[#allocation2 + $0x41] sm:$0xff]
        %v2344 = vld [vmem:[#allocation2 + $0x51] sm:$0xff]
        %v2345 = vld [vmem:[#allocation2 + $0x61] sm:$0xff]
        %v2346 = vld [vmem:[#allocation2 + $0x71] sm:$0xff]
        %v2347 = vld [vmem:[#allocation2 + $0xa1] sm:$0xff]
        %v2348 = vld [vmem:[#allocation2 + $0xb1] sm:$0xff]
        %v2349 = vld [vmem:[#allocation2 + $0xc1] sm:$0xff]
        %v2350 = vld [vmem:[#allocation2 + $0xd1] sm:$0xff]
        %v2351 = vld [vmem:[#allocation2 + $0xe1] sm:$0xff]
        %v2352 = vld [vmem:[#allocation2 + $0xf1] sm:$0xff]
        %v2353 = vld [vmem:[#allocation2 + $0x101] sm:$0xff]
        %v2354 = vld [vmem:[#allocation2 + $0x111] sm:$0xff]
        %s2355 = scalar_lea.vmem [#allocation11], 128
        %v2356 = vld [vmem:[%s2355] sm:$0xff]
        %v2357 = vld [vmem:[%s2355 + $0x8] sm:$0xff]
        %v2358 = vld [vmem:[%s2355 + $0x10] sm:$0xff]
        %v2359 = vld [vmem:[%s2355 + $0x18] sm:$0xff]
        %v2360 = vld [vmem:[%s2355 + $0x20] sm:$0xff]
        %v2361 = vld [vmem:[%s2355 + $0x28] sm:$0xff]
        %v2362 = vld [vmem:[%s2355 + $0x30] sm:$0xff]
        %v2363 = vld [vmem:[%s2355 + $0x38] sm:$0xff]
        %v2364 = vld [vmem:[%s2355 + $0x40] sm:$0xff]
        %v2365 = vld [vmem:[%s2355 + $0x48] sm:$0xff]
        %v2366 = vld [vmem:[%s2355 + $0x50] sm:$0xff]
        %v2367 = vld [vmem:[%s2355 + $0x58] sm:$0xff]
        %v2368 = vld [vmem:[%s2355 + $0x60] sm:$0xff]
        %v2369 = vld [vmem:[%s2355 + $0x68] sm:$0xff]
        %v2370 = vld [vmem:[%s2355 + $0x70] sm:$0xff]
        %v2371 = vld [vmem:[%s2355 + $0x78] sm:$0xff]
        %2372 = vmatprep.subr.mxu0 0.0
        %2373 = vmatpush1.msra.mxu0 %v2356
        %2374 = vmatprep.subr.mxu0 0.0
        %2375 = vmatpush1.msra.mxu0 %v2357
        %2376 = vmatprep.subr.mxu0 0.0
        %2377 = vmatpush1.msra.mxu0 %v2358
        %2378 = vmatprep.subr.mxu0 0.0
        %2379 = vmatpush1.msra.mxu0 %v2359
        %2380 = vmatprep.subr.mxu0 0.0
        %2381 = vmatpush1.msra.mxu0 %v2360
        %2382 = vmatprep.subr.mxu0 0.0
        %2383 = vmatpush1.msra.mxu0 %v2361
        %2384 = vmatprep.subr.mxu0 0.0
        %2385 = vmatpush1.msra.mxu0 %v2362
        %2386 = vmatprep.subr.mxu0 0.0
        %2387 = vmatpush1.msra.mxu0 %v2363
        %2388 = vmatprep.subr.mxu0 0.0
        %2389 = vmatpush1.msra.mxu0 %v2364
        %2390 = vmatprep.subr.mxu0 0.0
        %2391 = vmatpush1.msra.mxu0 %v2365
        %2392 = vmatprep.subr.mxu0 0.0
        %2393 = vmatpush1.msra.mxu0 %v2366
        %2394 = vmatprep.subr.mxu0 0.0
        %2395 = vmatpush1.msra.mxu0 %v2367
        %2396 = vmatprep.subr.mxu0 0.0
        %2397 = vmatpush1.msra.mxu0 %v2368
        %2398 = vmatprep.subr.mxu0 0.0
        %2399 = vmatpush1.msra.mxu0 %v2369
        %2400 = vmatprep.subr.mxu0 0.0
        %2401 = vmatpush1.msra.mxu0 %v2370
        %2402 = vmatprep.subr.mxu0 0.0
        %2403 = vmatpush1.msra.mxu0 %v2371
        %2404 = vmatprep.subr.mxu0 0.0
        %2405 = vmatpush1.msra.mxu0 0.0
        %2406 = vmatprep.subr.mxu0 0.0
        %2407 = vmatpush1.msra.mxu0 0.0
        %2408 = vmatprep.subr.mxu0 0.0
        %2409 = vmatpush1.msra.mxu0 0.0
        %2410 = vmatprep.subr.mxu0 0.0
        %2411 = vmatpush1.msra.mxu0 0.0
        %2412 = vmatprep.subr.mxu0 0.0
        %2413 = vmatpush1.msra.mxu0 0.0
        %2414 = vmatprep.subr.mxu0 0.0
        %2415 = vmatpush1.msra.mxu0 0.0
        %2416 = vmatprep.subr.mxu0 0.0
        %2417 = vmatpush1.msra.mxu0 0.0
        %2418 = vmatprep.subr.mxu0 0.0
        %2419 = vmatpush1.msra.mxu0 0.0
        %2420 = vmatprep.subr.mxu0 0.0
        %2421 = vmatpush1.msra.mxu0 0.0
        %2422 = vmatprep.subr.mxu0 0.0
        %2423 = vmatpush1.msra.mxu0 0.0
        %2424 = vmatprep.subr.mxu0 0.0
        %2425 = vmatpush1.msra.mxu0 0.0
        %2426 = vmatprep.subr.mxu0 0.0
        %2427 = vmatpush1.msra.mxu0 0.0
        %2428 = vmatprep.subr.mxu0 0.0
        %2429 = vmatpush1.msra.mxu0 0.0
        %2430 = vmatprep.subr.mxu0 0.0
        %2431 = vmatpush1.msra.mxu0 0.0
        %2432 = vmatprep.subr.mxu0 0.0
        %2433 = vmatpush1.msra.mxu0 0.0
        %2434 = vmatprep.subr.mxu0 0.0
        %2435 = vmatpush1.msra.mxu0 0.0
        %2436 = vmatprep.mubr.f32.mxu0 0.0
        %2437 = vmatmul.mubr.f32.gmra.mrb[0].mxu0 %v2339
        %v2438 = vpop.f32.mrb[0].mxu0
        %v2439 = vadd.f32 0.0, %v2438
        %v2440 = vpop.f32.mrb[0].mxu0
        %2441 = vmatprep.mubr.f32.mxu0 0.0
        %2442 = vmatmul.mubr.f32.gmra.mrb[0].mxu0 %v2340
        %v2443 = vpop.f32.mrb[0].mxu0
        %v2444 = vadd.f32 0.0, %v2443
        %v2445 = vpop.f32.mrb[0].mxu0
        %2446 = vmatprep.mubr.f32.mxu0 0.0
        %2447 = vmatmul.mubr.f32.gmra.mrb[0].mxu0 %v2341
        %v2448 = vpop.f32.mrb[0].mxu0
        %v2449 = vadd.f32 0.0, %v2448
        %v2450 = vpop.f32.mrb[0].mxu0
        %2451 = vmatprep.mubr.f32.mxu0 0.0
        %2452 = vmatmul.mubr.f32.gmra.mrb[0].mxu0 %v2342
        %v2453 = vpop.f32.mrb[0].mxu0
        %v2454 = vadd.f32 0.0, %v2453
        %v2455 = vpop.f32.mrb[0].mxu0
        %2456 = vmatprep.mubr.f32.mxu0 0.0
        %2457 = vmatmul.mubr.f32.gmra.mrb[0].mxu0 %v2343
        %v2458 = vpop.f32.mrb[0].mxu0
        %v2459 = vadd.f32 0.0, %v2458
        %v2460 = vpop.f32.mrb[0].mxu0
        %2461 = vmatprep.mubr.f32.mxu0 0.0
        %2462 = vmatmul.mubr.f32.gmra.mrb[0].mxu0 %v2344
        %v2463 = vpop.f32.mrb[0].mxu0
        %v2464 = vadd.f32 0.0, %v2463
        %v2465 = vpop.f32.mrb[0].mxu0
        %2466 = vmatprep.mubr.f32.mxu0 0.0
        %2467 = vmatmul.mubr.f32.gmra.mrb[0].mxu0 %v2345
        %v2468 = vpop.f32.mrb[0].mxu0
        %v2469 = vadd.f32 0.0, %v2468
        %v2470 = vpop.f32.mrb[0].mxu0
        %2471 = vmatprep.mubr.f32.mxu0 0.0
        %2472 = vmatmul.mubr.f32.gmra.mrb[0].mxu0 %v2346
        %v2473 = vpop.f32.mrb[0].mxu0
        %v2474 = vadd.f32 0.0, %v2473
        %v2475 = vpop.f32.mrb[0].mxu0
        %2476 = vmatprep.mubr.f32.mxu0 0.0
        %2477 = vmatmul.mubr.f32.gmra.mrb[0].mxu0 %v2347
        %v2478 = vpop.f32.mrb[0].mxu0
        %v2479 = vadd.f32 0.0, %v2478
        %v2480 = vpop.f32.mrb[0].mxu0
        %2481 = vmatprep.mubr.f32.mxu0 0.0
        %2482 = vmatmul.mubr.f32.gmra.mrb[0].mxu0 %v2348
        %v2483 = vpop.f32.mrb[0].mxu0
        %v2484 = vadd.f32 0.0, %v2483
        %v2485 = vpop.f32.mrb[0].mxu0
        %2486 = vmatprep.mubr.f32.mxu0 0.0
        %2487 = vmatmul.mubr.f32.gmra.mrb[0].mxu0 %v2349
        %v2488 = vpop.f32.mrb[0].mxu0
        %v2489 = vadd.f32 0.0, %v2488
        %v2490 = vpop.f32.mrb[0].mxu0
        %2491 = vmatprep.mubr.f32.mxu0 0.0
        %2492 = vmatmul.mubr.f32.gmra.mrb[0].mxu0 %v2350
        %v2493 = vpop.f32.mrb[0].mxu0
        %v2494 = vadd.f32 0.0, %v2493
        %v2495 = vpop.f32.mrb[0].mxu0
        %2496 = vmatprep.mubr.f32.mxu0 0.0
        %2497 = vmatmul.mubr.f32.gmra.mrb[0].mxu0 %v2351
        %v2498 = vpop.f32.mrb[0].mxu0
        %v2499 = vadd.f32 0.0, %v2498
        %v2500 = vpop.f32.mrb[0].mxu0
        %2501 = vmatprep.mubr.f32.mxu0 0.0
        %2502 = vmatmul.mubr.f32.gmra.mrb[0].mxu0 %v2352
        %v2503 = vpop.f32.mrb[0].mxu0
        %v2504 = vadd.f32 0.0, %v2503
        %v2505 = vpop.f32.mrb[0].mxu0
        %2506 = vmatprep.mubr.f32.mxu0 0.0
        %2507 = vmatmul.mubr.f32.gmra.mrb[0].mxu0 %v2353
        %v2508 = vpop.f32.mrb[0].mxu0
        %v2509 = vadd.f32 0.0, %v2508
        %v2510 = vpop.f32.mrb[0].mxu0
        %2511 = vmatprep.mubr.f32.mxu0 0.0
        %2512 = vmatmul.mubr.f32.gmra.mrb[0].mxu0 %v2354
        %v2513 = vpop.f32.mrb[0].mxu0
        %v2514 = vadd.f32 0.0, %v2513
        %v2515 = vpop.f32.mrb[0].mxu0
        %2516 = vdwg.mxu0
        %2517 = vmatprep.subr.mxu0 0.0
        %2518 = vmatpush1.msra.mxu0 %v2323
        %2519 = vmatprep.subr.mxu0 0.0
        %2520 = vmatpush1.msra.mxu0 %v2324
        %2521 = vmatprep.subr.mxu0 0.0
        %2522 = vmatpush1.msra.mxu0 %v2325
        %2523 = vmatprep.subr.mxu0 0.0
        %2524 = vmatpush1.msra.mxu0 %v2326
        %2525 = vmatprep.subr.mxu0 0.0
        %2526 = vmatpush1.msra.mxu0 %v2327
        %2527 = vmatprep.subr.mxu0 0.0
        %2528 = vmatpush1.msra.mxu0 %v2328
        %2529 = vmatprep.subr.mxu0 0.0
        %2530 = vmatpush1.msra.mxu0 %v2329
        %2531 = vmatprep.subr.mxu0 0.0
        %2532 = vmatpush1.msra.mxu0 %v2330
        %2533 = vmatprep.subr.mxu0 0.0
        %2534 = vmatpush1.msra.mxu0 %v2331
        %2535 = vmatprep.subr.mxu0 0.0
        %2536 = vmatpush1.msra.mxu0 %v2332
        %2537 = vmatprep.subr.mxu0 0.0
        %2538 = vmatpush1.msra.mxu0 %v2333
        %2539 = vmatprep.subr.mxu0 0.0
        %2540 = vmatpush1.msra.mxu0 %v2334
        %2541 = vmatprep.subr.mxu0 0.0
        %2542 = vmatpush1.msra.mxu0 %v2335
        %2543 = vmatprep.subr.mxu0 0.0
        %2544 = vmatpush1.msra.mxu0 %v2336
        %2545 = vmatprep.subr.mxu0 0.0
        %2546 = vmatpush1.msra.mxu0 %v2337
        %2547 = vmatprep.subr.mxu0 0.0
        %2548 = vmatpush1.msra.mxu0 %v2338
        %2549 = vmatprep.subr.mxu0 0.0
        %2550 = vmatpush1.msra.mxu0 0.0
        %2551 = vmatprep.subr.mxu0 0.0
        %2552 = vmatpush1.msra.mxu0 0.0
        %2553 = vmatprep.subr.mxu0 0.0
        %2554 = vmatpush1.msra.mxu0 0.0
        %2555 = vmatprep.subr.mxu0 0.0
        %2556 = vmatpush1.msra.mxu0 0.0
        %2557 = vmatprep.subr.mxu0 0.0
        %2558 = vmatpush1.msra.mxu0 0.0
        %2559 = vmatprep.subr.mxu0 0.0
        %2560 = vmatpush1.msra.mxu0 0.0
        %2561 = vmatprep.subr.mxu0 0.0
        %2562 = vmatpush1.msra.mxu0 0.0
        %2563 = vmatprep.subr.mxu0 0.0
        %2564 = vmatpush1.msra.mxu0 0.0
        %2565 = vmatprep.subr.mxu0 0.0
        %2566 = vmatpush1.msra.mxu0 0.0
        %2567 = vmatprep.subr.mxu0 0.0
        %2568 = vmatpush1.msra.mxu0 0.0
        %2569 = vmatprep.subr.mxu0 0.0
        %2570 = vmatpush1.msra.mxu0 0.0
        %2571 = vmatprep.subr.mxu0 0.0
        %2572 = vmatpush1.msra.mxu0 0.0
        %2573 = vmatprep.subr.mxu0 0.0
        %2574 = vmatpush1.msra.mxu0 0.0
        %2575 = vmatprep.subr.mxu0 0.0
        %2576 = vmatpush1.msra.mxu0 0.0
        %2577 = vmatprep.subr.mxu0 0.0
        %2578 = vmatpush1.msra.mxu0 0.0
        %2579 = vmatprep.subr.mxu0 0.0
        %2580 = vmatpush1.msra.mxu0 0.0
        %2581 = vmatprep.mubr.f32.mxu0 0.0
        %2582 = vmatmul.mubr.f32.gmra.mrb[0].mxu0 %v2307
        %v2583 = vpop.f32.mrb[0].mxu0
        %v2584 = vadd.f32 %v2439, %v2583
        %v2585 = vpop.f32.mrb[0].mxu0
        %2586 = vmatprep.mubr.f32.mxu0 0.0
        %2587 = vmatmul.mubr.f32.gmra.mrb[0].mxu0 %v2308
        %v2588 = vpop.f32.mrb[0].mxu0
        %v2589 = vadd.f32 %v2444, %v2588
        %v2590 = vpop.f32.mrb[0].mxu0
        %2591 = vmatprep.mubr.f32.mxu0 0.0
        %2592 = vmatmul.mubr.f32.gmra.mrb[0].mxu0 %v2309
        %v2593 = vpop.f32.mrb[0].mxu0
        %v2594 = vadd.f32 %v2449, %v2593
        %v2595 = vpop.f32.mrb[0].mxu0
        %2596 = vmatprep.mubr.f32.mxu0 0.0
        %2597 = vmatmul.mubr.f32.gmra.mrb[0].mxu0 %v2310
        %v2598 = vpop.f32.mrb[0].mxu0
        %v2599 = vadd.f32 %v2454, %v2598
        %v2600 = vpop.f32.mrb[0].mxu0
        %2601 = vmatprep.mubr.f32.mxu0 0.0
        %2602 = vmatmul.mubr.f32.gmra.mrb[0].mxu0 %v2311
        %v2603 = vpop.f32.mrb[0].mxu0
        %v2604 = vadd.f32 %v2459, %v2603
        %v2605 = vpop.f32.mrb[0].mxu0
        %2606 = vmatprep.mubr.f32.mxu0 0.0
        %2607 = vmatmul.mubr.f32.gmra.mrb[0].mxu0 %v2312
        %v2608 = vpop.f32.mrb[0].mxu0
        %v2609 = vadd.f32 %v2464, %v2608
        %v2610 = vpop.f32.mrb[0].mxu0
        %2611 = vmatprep.mubr.f32.mxu0 0.0
        %2612 = vmatmul.mubr.f32.gmra.mrb[0].mxu0 %v2313
        %v2613 = vpop.f32.mrb[0].mxu0
        %v2614 = vadd.f32 %v2469, %v2613
        %v2615 = vpop.f32.mrb[0].mxu0
        %2616 = vmatprep.mubr.f32.mxu0 0.0
        %2617 = vmatmul.mubr.f32.gmra.mrb[0].mxu0 %v2314
        %v2618 = vpop.f32.mrb[0].mxu0
        %v2619 = vadd.f32 %v2474, %v2618
        %v2620 = vpop.f32.mrb[0].mxu0
        %2621 = vmatprep.mubr.f32.mxu0 0.0
        %2622 = vmatmul.mubr.f32.gmra.mrb[0].mxu0 %v2315
        %v2623 = vpop.f32.mrb[0].mxu0
        %v2624 = vadd.f32 %v2479, %v2623
        %v2625 = vpop.f32.mrb[0].mxu0
        %2626 = vmatprep.mubr.f32.mxu0 0.0
        %2627 = vmatmul.mubr.f32.gmra.mrb[0].mxu0 %v2316
        %v2628 = vpop.f32.mrb[0].mxu0
        %v2629 = vadd.f32 %v2484, %v2628
        %v2630 = vpop.f32.mrb[0].mxu0
        %2631 = vmatprep.mubr.f32.mxu0 0.0
        %2632 = vmatmul.mubr.f32.gmra.mrb[0].mxu0 %v2317
        %v2633 = vpop.f32.mrb[0].mxu0
        %v2634 = vadd.f32 %v2489, %v2633
        %v2635 = vpop.f32.mrb[0].mxu0
        %2636 = vmatprep.mubr.f32.mxu0 0.0
        %2637 = vmatmul.mubr.f32.gmra.mrb[0].mxu0 %v2318
        %v2638 = vpop.f32.mrb[0].mxu0
        %v2639 = vadd.f32 %v2494, %v2638
        %v2640 = vpop.f32.mrb[0].mxu0
        %2641 = vmatprep.mubr.f32.mxu0 0.0
        %2642 = vmatmul.mubr.f32.gmra.mrb[0].mxu0 %v2319
        %v2643 = vpop.f32.mrb[0].mxu0
        %v2644 = vadd.f32 %v2499, %v2643
        %v2645 = vpop.f32.mrb[0].mxu0
        %2646 = vmatprep.mubr.f32.mxu0 0.0
        %2647 = vmatmul.mubr.f32.gmra.mrb[0].mxu0 %v2320
        %v2648 = vpop.f32.mrb[0].mxu0
        %v2649 = vadd.f32 %v2504, %v2648
        %v2650 = vpop.f32.mrb[0].mxu0
        %2651 = vmatprep.mubr.f32.mxu0 0.0
        %2652 = vmatmul.mubr.f32.gmra.mrb[0].mxu0 %v2321
        %v2653 = vpop.f32.mrb[0].mxu0
        %v2654 = vadd.f32 %v2509, %v2653
        %v2655 = vpop.f32.mrb[0].mxu0
        %2656 = vmatprep.mubr.f32.mxu0 0.0
        %2657 = vmatmul.mubr.f32.gmra.mrb[0].mxu0 %v2322
        %v2658 = vpop.f32.mrb[0].mxu0
        %v2659 = vadd.f32 %v2514, %v2658
        %v2660 = vpop.f32.mrb[0].mxu0
        %2661 = vdwg.mxu0
        %v2662 = vld [vmem:[#allocation2 + $0x2] sm:$0xff]
        %v2663 = vld [vmem:[#allocation2 + $0x12] sm:$0xff]
        %v2664 = vld [vmem:[#allocation2 + $0x22] sm:$0xff]
        %v2665 = vld [vmem:[#allocation2 + $0x32] sm:$0xff]
        %v2666 = vld [vmem:[#allocation2 + $0x42] sm:$0xff]
        %v2667 = vld [vmem:[#allocation2 + $0x52] sm:$0xff]
        %v2668 = vld [vmem:[#allocation2 + $0x62] sm:$0xff]
        %v2669 = vld [vmem:[#allocation2 + $0x72] sm:$0xff]
        %v2670 = vld [vmem:[#allocation2 + $0xa2] sm:$0xff]
        %v2671 = vld [vmem:[#allocation2 + $0xb2] sm:$0xff]
        %v2672 = vld [vmem:[#allocation2 + $0xc2] sm:$0xff]
        %v2673 = vld [vmem:[#allocation2 + $0xd2] sm:$0xff]
        %v2674 = vld [vmem:[#allocation2 + $0xe2] sm:$0xff]
        %v2675 = vld [vmem:[#allocation2 + $0xf2] sm:$0xff]
        %v2676 = vld [vmem:[#allocation2 + $0x102] sm:$0xff]
        %v2677 = vld [vmem:[#allocation2 + $0x112] sm:$0xff]
        %s2678 = scalar_lea.vmem [#allocation11], 256
        %v2679 = vld [vmem:[%s2678] sm:$0xff]
        %v2680 = vld [vmem:[%s2678 + $0x8] sm:$0xff]
        %v2681 = vld [vmem:[%s2678 + $0x10] sm:$0xff]
        %v2682 = vld [vmem:[%s2678 + $0x18] sm:$0xff]
        %v2683 = vld [vmem:[%s2678 + $0x20] sm:$0xff]
        %v2684 = vld [vmem:[%s2678 + $0x28] sm:$0xff]
        %v2685 = vld [vmem:[%s2678 + $0x30] sm:$0xff]
        %v2686 = vld [vmem:[%s2678 + $0x38] sm:$0xff]
        %v2687 = vld [vmem:[%s2678 + $0x40] sm:$0xff]
        %v2688 = vld [vmem:[%s2678 + $0x48] sm:$0xff]
        %v2689 = vld [vmem:[%s2678 + $0x50] sm:$0xff]
        %v2690 = vld [vmem:[%s2678 + $0x58] sm:$0xff]
        %v2691 = vld [vmem:[%s2678 + $0x60] sm:$0xff]
        %v2692 = vld [vmem:[%s2678 + $0x68] sm:$0xff]
        %v2693 = vld [vmem:[%s2678 + $0x70] sm:$0xff]
        %v2694 = vld [vmem:[%s2678 + $0x78] sm:$0xff]
        %2695 = vmatprep.subr.mxu0 0.0
        %2696 = vmatpush1.msra.mxu0 %v2679
        %2697 = vmatprep.subr.mxu0 0.0
        %2698 = vmatpush1.msra.mxu0 %v2680
        %2699 = vmatprep.subr.mxu0 0.0
        %2700 = vmatpush1.msra.mxu0 %v2681
        %2701 = vmatprep.subr.mxu0 0.0
        %2702 = vmatpush1.msra.mxu0 %v2682
        %2703 = vmatprep.subr.mxu0 0.0
        %2704 = vmatpush1.msra.mxu0 %v2683
        %2705 = vmatprep.subr.mxu0 0.0
        %2706 = vmatpush1.msra.mxu0 %v2684
        %2707 = vmatprep.subr.mxu0 0.0
        %2708 = vmatpush1.msra.mxu0 %v2685
        %2709 = vmatprep.subr.mxu0 0.0
        %2710 = vmatpush1.msra.mxu0 %v2686
        %2711 = vmatprep.subr.mxu0 0.0
        %2712 = vmatpush1.msra.mxu0 %v2687
        %2713 = vmatprep.subr.mxu0 0.0
        %2714 = vmatpush1.msra.mxu0 %v2688
        %2715 = vmatprep.subr.mxu0 0.0
        %2716 = vmatpush1.msra.mxu0 %v2689
        %2717 = vmatprep.subr.mxu0 0.0
        %2718 = vmatpush1.msra.mxu0 %v2690
        %2719 = vmatprep.subr.mxu0 0.0
        %2720 = vmatpush1.msra.mxu0 %v2691
        %2721 = vmatprep.subr.mxu0 0.0
        %2722 = vmatpush1.msra.mxu0 %v2692
        %2723 = vmatprep.subr.mxu0 0.0
        %2724 = vmatpush1.msra.mxu0 %v2693
        %2725 = vmatprep.subr.mxu0 0.0
        %2726 = vmatpush1.msra.mxu0 %v2694
        %2727 = vmatprep.subr.mxu0 0.0
        %2728 = vmatpush1.msra.mxu0 0.0
        %2729 = vmatprep.subr.mxu0 0.0
        %2730 = vmatpush1.msra.mxu0 0.0
        %2731 = vmatprep.subr.mxu0 0.0
        %2732 = vmatpush1.msra.mxu0 0.0
        %2733 = vmatprep.subr.mxu0 0.0
        %2734 = vmatpush1.msra.mxu0 0.0
        %2735 = vmatprep.subr.mxu0 0.0
        %2736 = vmatpush1.msra.mxu0 0.0
        %2737 = vmatprep.subr.mxu0 0.0
        %2738 = vmatpush1.msra.mxu0 0.0
        %2739 = vmatprep.subr.mxu0 0.0
        %2740 = vmatpush1.msra.mxu0 0.0
        %2741 = vmatprep.subr.mxu0 0.0
        %2742 = vmatpush1.msra.mxu0 0.0
        %2743 = vmatprep.subr.mxu0 0.0
        %2744 = vmatpush1.msra.mxu0 0.0
        %2745 = vmatprep.subr.mxu0 0.0
        %2746 = vmatpush1.msra.mxu0 0.0
        %2747 = vmatprep.subr.mxu0 0.0
        %2748 = vmatpush1.msra.mxu0 0.0
        %2749 = vmatprep.subr.mxu0 0.0
        %2750 = vmatpush1.msra.mxu0 0.0
        %2751 = vmatprep.subr.mxu0 0.0
        %2752 = vmatpush1.msra.mxu0 0.0
        %2753 = vmatprep.subr.mxu0 0.0
        %2754 = vmatpush1.msra.mxu0 0.0
        %2755 = vmatprep.subr.mxu0 0.0
        %2756 = vmatpush1.msra.mxu0 0.0
        %2757 = vmatprep.subr.mxu0 0.0
        %2758 = vmatpush1.msra.mxu0 0.0
        %2759 = vmatprep.mubr.f32.mxu0 0.0
        %2760 = vmatmul.mubr.f32.gmra.mrb[0].mxu0 %v2662
        %v2761 = vpop.f32.mrb[0].mxu0
        %v2762 = vadd.f32 0.0, %v2761
        %v2763 = vpop.f32.mrb[0].mxu0
        %2764 = vmatprep.mubr.f32.mxu0 0.0
        %2765 = vmatmul.mubr.f32.gmra.mrb[0].mxu0 %v2663
        %v2766 = vpop.f32.mrb[0].mxu0
        %v2767 = vadd.f32 0.0, %v2766
        %v2768 = vpop.f32.mrb[0].mxu0
        %2769 = vmatprep.mubr.f32.mxu0 0.0
        %2770 = vmatmul.mubr.f32.gmra.mrb[0].mxu0 %v2664
        %v2771 = vpop.f32.mrb[0].mxu0
        %v2772 = vadd.f32 0.0, %v2771
        %v2773 = vpop.f32.mrb[0].mxu0
        %2774 = vmatprep.mubr.f32.mxu0 0.0
        %2775 = vmatmul.mubr.f32.gmra.mrb[0].mxu0 %v2665
        %v2776 = vpop.f32.mrb[0].mxu0
        %v2777 = vadd.f32 0.0, %v2776
        %v2778 = vpop.f32.mrb[0].mxu0
        %2779 = vmatprep.mubr.f32.mxu0 0.0
        %2780 = vmatmul.mubr.f32.gmra.mrb[0].mxu0 %v2666
        %v2781 = vpop.f32.mrb[0].mxu0
        %v2782 = vadd.f32 0.0, %v2781
        %v2783 = vpop.f32.mrb[0].mxu0
        %2784 = vmatprep.mubr.f32.mxu0 0.0
        %2785 = vmatmul.mubr.f32.gmra.mrb[0].mxu0 %v2667
        %v2786 = vpop.f32.mrb[0].mxu0
        %v2787 = vadd.f32 0.0, %v2786
        %v2788 = vpop.f32.mrb[0].mxu0
        %2789 = vmatprep.mubr.f32.mxu0 0.0
        %2790 = vmatmul.mubr.f32.gmra.mrb[0].mxu0 %v2668
        %v2791 = vpop.f32.mrb[0].mxu0
        %v2792 = vadd.f32 0.0, %v2791
        %v2793 = vpop.f32.mrb[0].mxu0
        %2794 = vmatprep.mubr.f32.mxu0 0.0
        %2795 = vmatmul.mubr.f32.gmra.mrb[0].mxu0 %v2669
        %v2796 = vpop.f32.mrb[0].mxu0
        %v2797 = vadd.f32 0.0, %v2796
        %v2798 = vpop.f32.mrb[0].mxu0
        %2799 = vmatprep.mubr.f32.mxu0 0.0
        %2800 = vmatmul.mubr.f32.gmra.mrb[0].mxu0 %v2670
        %v2801 = vpop.f32.mrb[0].mxu0
        %v2802 = vadd.f32 0.0, %v2801
        %v2803 = vpop.f32.mrb[0].mxu0
        %2804 = vmatprep.mubr.f32.mxu0 0.0
        %2805 = vmatmul.mubr.f32.gmra.mrb[0].mxu0 %v2671
        %v2806 = vpop.f32.mrb[0].mxu0
        %v2807 = vadd.f32 0.0, %v2806
        %v2808 = vpop.f32.mrb[0].mxu0
        %2809 = vmatprep.mubr.f32.mxu0 0.0
        %2810 = vmatmul.mubr.f32.gmra.mrb[0].mxu0 %v2672
        %v2811 = vpop.f32.mrb[0].mxu0
        %v2812 = vadd.f32 0.0, %v2811
        %v2813 = vpop.f32.mrb[0].mxu0
        %2814 = vmatprep.mubr.f32.mxu0 0.0
        %2815 = vmatmul.mubr.f32.gmra.mrb[0].mxu0 %v2673
        %v2816 = vpop.f32.mrb[0].mxu0
        %v2817 = vadd.f32 0.0, %v2816
        %v2818 = vpop.f32.mrb[0].mxu0
        %2819 = vmatprep.mubr.f32.mxu0 0.0
        %2820 = vmatmul.mubr.f32.gmra.mrb[0].mxu0 %v2674
        %v2821 = vpop.f32.mrb[0].mxu0
        %v2822 = vadd.f32 0.0, %v2821
        %v2823 = vpop.f32.mrb[0].mxu0
        %2824 = vmatprep.mubr.f32.mxu0 0.0
        %2825 = vmatmul.mubr.f32.gmra.mrb[0].mxu0 %v2675
        %v2826 = vpop.f32.mrb[0].mxu0
        %v2827 = vadd.f32 0.0, %v2826
        %v2828 = vpop.f32.mrb[0].mxu0
        %2829 = vmatprep.mubr.f32.mxu0 0.0
        %2830 = vmatmul.mubr.f32.gmra.mrb[0].mxu0 %v2676
        %v2831 = vpop.f32.mrb[0].mxu0
        %v2832 = vadd.f32 0.0, %v2831
        %v2833 = vpop.f32.mrb[0].mxu0
        %2834 = vmatprep.mubr.f32.mxu0 0.0
        %2835 = vmatmul.mubr.f32.gmra.mrb[0].mxu0 %v2677
        %v2836 = vpop.f32.mrb[0].mxu0
        %v2837 = vadd.f32 0.0, %v2836
        %v2838 = vpop.f32.mrb[0].mxu0
        %2839 = vdwg.mxu0
        %v2840 = vadd.f32 %v2584, %v2762
        %v2841 = vadd.f32 %v2589, %v2767
        %v2842 = vadd.f32 %v2594, %v2772
        %v2843 = vadd.f32 %v2599, %v2777
        %v2844 = vadd.f32 %v2604, %v2782
        %v2845 = vadd.f32 %v2609, %v2787
        %v2846 = vadd.f32 %v2614, %v2792
        %v2847 = vadd.f32 %v2619, %v2797
        %v2848 = vadd.f32 %v2624, %v2802
        %v2849 = vadd.f32 %v2629, %v2807
        %v2850 = vadd.f32 %v2634, %v2812
        %v2851 = vadd.f32 %v2639, %v2817
        %v2852 = vadd.f32 %v2644, %v2822
        %v2853 = vadd.f32 %v2649, %v2827
        %v2854 = vadd.f32 %v2654, %v2832
        %v2855 = vadd.f32 %v2659, %v2837
        %v2856 = vld [vmem:[%s2290] sm:$0xff]
        %v2857 = vld [vmem:[%s2290 + $0x10] sm:$0xff]
        %v2858 = vld [vmem:[%s2290 + $0x20] sm:$0xff]
        %v2859 = vld [vmem:[%s2290 + $0x30] sm:$0xff]
        %v2860 = vld [vmem:[%s2290 + $0x40] sm:$0xff]
        %v2861 = vld [vmem:[%s2290 + $0x50] sm:$0xff]
        %v2862 = vld [vmem:[%s2290 + $0x60] sm:$0xff]
        %v2863 = vld [vmem:[%s2290 + $0x70] sm:$0xff]
        %v2864 = vld [vmem:[%s2290 + $0xa0] sm:$0xff]
        %v2865 = vld [vmem:[%s2290 + $0xb0] sm:$0xff]
        %v2866 = vld [vmem:[%s2290 + $0xc0] sm:$0xff]
        %v2867 = vld [vmem:[%s2290 + $0xd0] sm:$0xff]
        %v2868 = vld [vmem:[%s2290 + $0xe0] sm:$0xff]
        %v2869 = vld [vmem:[%s2290 + $0xf0] sm:$0xff]
        %v2870 = vld [vmem:[%s2290 + $0x100] sm:$0xff]
        %v2871 = vld [vmem:[%s2290 + $0x110] sm:$0xff]
        %s2872 = scalar_lea.vmem [#allocation11], 384
        %v2873 = vld [vmem:[%s2872] sm:$0xff]
        %v2874 = vld [vmem:[%s2872 + $0x8] sm:$0xff]
        %v2875 = vld [vmem:[%s2872 + $0x10] sm:$0xff]
        %v2876 = vld [vmem:[%s2872 + $0x18] sm:$0xff]
        %v2877 = vld [vmem:[%s2872 + $0x20] sm:$0xff]
        %v2878 = vld [vmem:[%s2872 + $0x28] sm:$0xff]
        %v2879 = vld [vmem:[%s2872 + $0x30] sm:$0xff]
        %v2880 = vld [vmem:[%s2872 + $0x38] sm:$0xff]
        %v2881 = vld [vmem:[%s2872 + $0x40] sm:$0xff]
        %v2882 = vld [vmem:[%s2872 + $0x48] sm:$0xff]
        %v2883 = vld [vmem:[%s2872 + $0x50] sm:$0xff]
        %v2884 = vld [vmem:[%s2872 + $0x58] sm:$0xff]
        %v2885 = vld [vmem:[%s2872 + $0x60] sm:$0xff]
        %v2886 = vld [vmem:[%s2872 + $0x68] sm:$0xff]
        %v2887 = vld [vmem:[%s2872 + $0x70] sm:$0xff]
        %v2888 = vld [vmem:[%s2872 + $0x78] sm:$0xff]
        %2889 = vmatprep.subr.mxu0 0.0
        %2890 = vmatpush1.msra.mxu0 %v2873
        %2891 = vmatprep.subr.mxu0 0.0
        %2892 = vmatpush1.msra.mxu0 %v2874
        %2893 = vmatprep.subr.mxu0 0.0
        %2894 = vmatpush1.msra.mxu0 %v2875
        %2895 = vmatprep.subr.mxu0 0.0
        %2896 = vmatpush1.msra.mxu0 %v2876
        %2897 = vmatprep.subr.mxu0 0.0
        %2898 = vmatpush1.msra.mxu0 %v2877
        %2899 = vmatprep.subr.mxu0 0.0
        %2900 = vmatpush1.msra.mxu0 %v2878
        %2901 = vmatprep.subr.mxu0 0.0
        %2902 = vmatpush1.msra.mxu0 %v2879
        %2903 = vmatprep.subr.mxu0 0.0
        %2904 = vmatpush1.msra.mxu0 %v2880
        %2905 = vmatprep.subr.mxu0 0.0
        %2906 = vmatpush1.msra.mxu0 %v2881
        %2907 = vmatprep.subr.mxu0 0.0
        %2908 = vmatpush1.msra.mxu0 %v2882
        %2909 = vmatprep.subr.mxu0 0.0
        %2910 = vmatpush1.msra.mxu0 %v2883
        %2911 = vmatprep.subr.mxu0 0.0
        %2912 = vmatpush1.msra.mxu0 %v2884
        %2913 = vmatprep.subr.mxu0 0.0
        %2914 = vmatpush1.msra.mxu0 %v2885
        %2915 = vmatprep.subr.mxu0 0.0
        %2916 = vmatpush1.msra.mxu0 %v2886
        %2917 = vmatprep.subr.mxu0 0.0
        %2918 = vmatpush1.msra.mxu0 %v2887
        %2919 = vmatprep.subr.mxu0 0.0
        %2920 = vmatpush1.msra.mxu0 %v2888
        %2921 = vmatprep.subr.mxu0 0.0
        %2922 = vmatpush1.msra.mxu0 0.0
        %2923 = vmatprep.subr.mxu0 0.0
        %2924 = vmatpush1.msra.mxu0 0.0
        %2925 = vmatprep.subr.mxu0 0.0
        %2926 = vmatpush1.msra.mxu0 0.0
        %2927 = vmatprep.subr.mxu0 0.0
        %2928 = vmatpush1.msra.mxu0 0.0
        %2929 = vmatprep.subr.mxu0 0.0
        %2930 = vmatpush1.msra.mxu0 0.0
        %2931 = vmatprep.subr.mxu0 0.0
        %2932 = vmatpush1.msra.mxu0 0.0
        %2933 = vmatprep.subr.mxu0 0.0
        %2934 = vmatpush1.msra.mxu0 0.0
        %2935 = vmatprep.subr.mxu0 0.0
        %2936 = vmatpush1.msra.mxu0 0.0
        %2937 = vmatprep.subr.mxu0 0.0
        %2938 = vmatpush1.msra.mxu0 0.0
        %2939 = vmatprep.subr.mxu0 0.0
        %2940 = vmatpush1.msra.mxu0 0.0
        %2941 = vmatprep.subr.mxu0 0.0
        %2942 = vmatpush1.msra.mxu0 0.0
        %2943 = vmatprep.subr.mxu0 0.0
        %2944 = vmatpush1.msra.mxu0 0.0
        %2945 = vmatprep.subr.mxu0 0.0
        %2946 = vmatpush1.msra.mxu0 0.0
        %2947 = vmatprep.subr.mxu0 0.0
        %2948 = vmatpush1.msra.mxu0 0.0
        %2949 = vmatprep.subr.mxu0 0.0
        %2950 = vmatpush1.msra.mxu0 0.0
        %2951 = vmatprep.subr.mxu0 0.0
        %2952 = vmatpush1.msra.mxu0 0.0
        %2953 = vmatprep.mubr.f32.mxu0 0.0
        %2954 = vmatmul.mubr.f32.gmra.mrb[0].mxu0 %v2856
        %v2955 = vpop.f32.mrb[0].mxu0
        %v2956 = vadd.f32 0.0, %v2955
        %v2957 = vpop.f32.mrb[0].mxu0
        %2958 = vmatprep.mubr.f32.mxu0 0.0
        %2959 = vmatmul.mubr.f32.gmra.mrb[0].mxu0 %v2857
        %v2960 = vpop.f32.mrb[0].mxu0
        %v2961 = vadd.f32 0.0, %v2960
        %v2962 = vpop.f32.mrb[0].mxu0
        %2963 = vmatprep.mubr.f32.mxu0 0.0
        %2964 = vmatmul.mubr.f32.gmra.mrb[0].mxu0 %v2858
        %v2965 = vpop.f32.mrb[0].mxu0
        %v2966 = vadd.f32 0.0, %v2965
        %v2967 = vpop.f32.mrb[0].mxu0
        %2968 = vmatprep.mubr.f32.mxu0 0.0
        %2969 = vmatmul.mubr.f32.gmra.mrb[0].mxu0 %v2859
        %v2970 = vpop.f32.mrb[0].mxu0
        %v2971 = vadd.f32 0.0, %v2970
        %v2972 = vpop.f32.mrb[0].mxu0
        %2973 = vmatprep.mubr.f32.mxu0 0.0
        %2974 = vmatmul.mubr.f32.gmra.mrb[0].mxu0 %v2860
        %v2975 = vpop.f32.mrb[0].mxu0
        %v2976 = vadd.f32 0.0, %v2975
        %v2977 = vpop.f32.mrb[0].mxu0
        %2978 = vmatprep.mubr.f32.mxu0 0.0
        %2979 = vmatmul.mubr.f32.gmra.mrb[0].mxu0 %v2861
        %v2980 = vpop.f32.mrb[0].mxu0
        %v2981 = vadd.f32 0.0, %v2980
        %v2982 = vpop.f32.mrb[0].mxu0
        %2983 = vmatprep.mubr.f32.mxu0 0.0
        %2984 = vmatmul.mubr.f32.gmra.mrb[0].mxu0 %v2862
        %v2985 = vpop.f32.mrb[0].mxu0
        %v2986 = vadd.f32 0.0, %v2985
        %v2987 = vpop.f32.mrb[0].mxu0
        %2988 = vmatprep.mubr.f32.mxu0 0.0
        %2989 = vmatmul.mubr.f32.gmra.mrb[0].mxu0 %v2863
        %v2990 = vpop.f32.mrb[0].mxu0
        %v2991 = vadd.f32 0.0, %v2990
        %v2992 = vpop.f32.mrb[0].mxu0
        %2993 = vmatprep.mubr.f32.mxu0 0.0
        %2994 = vmatmul.mubr.f32.gmra.mrb[0].mxu0 %v2864
        %v2995 = vpop.f32.mrb[0].mxu0
        %v2996 = vadd.f32 0.0, %v2995
        %v2997 = vpop.f32.mrb[0].mxu0
        %2998 = vmatprep.mubr.f32.mxu0 0.0
        %2999 = vmatmul.mubr.f32.gmra.mrb[0].mxu0 %v2865
        %v3000 = vpop.f32.mrb[0].mxu0
        %v3001 = vadd.f32 0.0, %v3000
        %v3002 = vpop.f32.mrb[0].mxu0
        %3003 = vmatprep.mubr.f32.mxu0 0.0
        %3004 = vmatmul.mubr.f32.gmra.mrb[0].mxu0 %v2866
        %v3005 = vpop.f32.mrb[0].mxu0
        %v3006 = vadd.f32 0.0, %v3005
        %v3007 = vpop.f32.mrb[0].mxu0
        %3008 = vmatprep.mubr.f32.mxu0 0.0
        %3009 = vmatmul.mubr.f32.gmra.mrb[0].mxu0 %v2867
        %v3010 = vpop.f32.mrb[0].mxu0
        %v3011 = vadd.f32 0.0, %v3010
        %v3012 = vpop.f32.mrb[0].mxu0
        %3013 = vmatprep.mubr.f32.mxu0 0.0
        %3014 = vmatmul.mubr.f32.gmra.mrb[0].mxu0 %v2868
        %v3015 = vpop.f32.mrb[0].mxu0
        %v3016 = vadd.f32 0.0, %v3015
        %v3017 = vpop.f32.mrb[0].mxu0
        %3018 = vmatprep.mubr.f32.mxu0 0.0
        %3019 = vmatmul.mubr.f32.gmra.mrb[0].mxu0 %v2869
        %v3020 = vpop.f32.mrb[0].mxu0
        %v3021 = vadd.f32 0.0, %v3020
        %v3022 = vpop.f32.mrb[0].mxu0
        %3023 = vmatprep.mubr.f32.mxu0 0.0
        %3024 = vmatmul.mubr.f32.gmra.mrb[0].mxu0 %v2870
        %v3025 = vpop.f32.mrb[0].mxu0
        %v3026 = vadd.f32 0.0, %v3025
        %v3027 = vpop.f32.mrb[0].mxu0
        %3028 = vmatprep.mubr.f32.mxu0 0.0
        %3029 = vmatmul.mubr.f32.gmra.mrb[0].mxu0 %v2871
        %v3030 = vpop.f32.mrb[0].mxu0
        %v3031 = vadd.f32 0.0, %v3030
        %v3032 = vpop.f32.mrb[0].mxu0
        %3033 = vdwg.mxu0
        %v3034 = vadd.f32 %v2840, %v2956
        %v3035 = vadd.f32 %v2841, %v2961
        %v3036 = vadd.f32 %v2842, %v2966
        %v3037 = vadd.f32 %v2843, %v2971
        %v3038 = vadd.f32 %v2844, %v2976
        %v3039 = vadd.f32 %v2845, %v2981
        %v3040 = vadd.f32 %v2846, %v2986
        %v3041 = vadd.f32 %v2847, %v2991
        %v3042 = vadd.f32 %v2848, %v2996
        %v3043 = vadd.f32 %v2849, %v3001
        %v3044 = vadd.f32 %v2850, %v3006
        %v3045 = vadd.f32 %v2851, %v3011
        %v3046 = vadd.f32 %v2852, %v3016
        %v3047 = vadd.f32 %v2853, %v3021
        %v3048 = vadd.f32 %v2854, %v3026
        %v3049 = vadd.f32 %v2855, %v3031
        %v3050 = vld [vmem:[%s2290 + $0x1] sm:$0xff]
        %v3051 = vld [vmem:[%s2290 + $0x11] sm:$0xff]
        %v3052 = vld [vmem:[%s2290 + $0x21] sm:$0xff]
        %v3053 = vld [vmem:[%s2290 + $0x31] sm:$0xff]
        %v3054 = vld [vmem:[%s2290 + $0x41] sm:$0xff]
        %v3055 = vld [vmem:[%s2290 + $0x51] sm:$0xff]
        %v3056 = vld [vmem:[%s2290 + $0x61] sm:$0xff]
        %v3057 = vld [vmem:[%s2290 + $0x71] sm:$0xff]
        %v3058 = vld [vmem:[%s2290 + $0xa1] sm:$0xff]
        %v3059 = vld [vmem:[%s2290 + $0xb1] sm:$0xff]
        %v3060 = vld [vmem:[%s2290 + $0xc1] sm:$0xff]
        %v3061 = vld [vmem:[%s2290 + $0xd1] sm:$0xff]
        %v3062 = vld [vmem:[%s2290 + $0xe1] sm:$0xff]
        %v3063 = vld [vmem:[%s2290 + $0xf1] sm:$0xff]
        %v3064 = vld [vmem:[%s2290 + $0x101] sm:$0xff]
        %v3065 = vld [vmem:[%s2290 + $0x111] sm:$0xff]
        %s3066 = scalar_lea.vmem [#allocation11], 512
        %v3067 = vld [vmem:[%s3066] sm:$0xff]
        %v3068 = vld [vmem:[%s3066 + $0x8] sm:$0xff]
        %v3069 = vld [vmem:[%s3066 + $0x10] sm:$0xff]
        %v3070 = vld [vmem:[%s3066 + $0x18] sm:$0xff]
        %v3071 = vld [vmem:[%s3066 + $0x20] sm:$0xff]
        %v3072 = vld [vmem:[%s3066 + $0x28] sm:$0xff]
        %v3073 = vld [vmem:[%s3066 + $0x30] sm:$0xff]
        %v3074 = vld [vmem:[%s3066 + $0x38] sm:$0xff]
        %v3075 = vld [vmem:[%s3066 + $0x40] sm:$0xff]
        %v3076 = vld [vmem:[%s3066 + $0x48] sm:$0xff]
        %v3077 = vld [vmem:[%s3066 + $0x50] sm:$0xff]
        %v3078 = vld [vmem:[%s3066 + $0x58] sm:$0xff]
        %v3079 = vld [vmem:[%s3066 + $0x60] sm:$0xff]
        %v3080 = vld [vmem:[%s3066 + $0x68] sm:$0xff]
        %v3081 = vld [vmem:[%s3066 + $0x70] sm:$0xff]
        %v3082 = vld [vmem:[%s3066 + $0x78] sm:$0xff]
        %3083 = vmatprep.subr.mxu0 0.0
        %3084 = vmatpush1.msra.mxu0 %v3067
        %3085 = vmatprep.subr.mxu0 0.0
        %3086 = vmatpush1.msra.mxu0 %v3068
        %3087 = vmatprep.subr.mxu0 0.0
        %3088 = vmatpush1.msra.mxu0 %v3069
        %3089 = vmatprep.subr.mxu0 0.0
        %3090 = vmatpush1.msra.mxu0 %v3070
        %3091 = vmatprep.subr.mxu0 0.0
        %3092 = vmatpush1.msra.mxu0 %v3071
        %3093 = vmatprep.subr.mxu0 0.0
        %3094 = vmatpush1.msra.mxu0 %v3072
        %3095 = vmatprep.subr.mxu0 0.0
        %3096 = vmatpush1.msra.mxu0 %v3073
        %3097 = vmatprep.subr.mxu0 0.0
        %3098 = vmatpush1.msra.mxu0 %v3074
        %3099 = vmatprep.subr.mxu0 0.0
        %3100 = vmatpush1.msra.mxu0 %v3075
        %3101 = vmatprep.subr.mxu0 0.0
        %3102 = vmatpush1.msra.mxu0 %v3076
        %3103 = vmatprep.subr.mxu0 0.0
        %3104 = vmatpush1.msra.mxu0 %v3077
        %3105 = vmatprep.subr.mxu0 0.0
        %3106 = vmatpush1.msra.mxu0 %v3078
        %3107 = vmatprep.subr.mxu0 0.0
        %3108 = vmatpush1.msra.mxu0 %v3079
        %3109 = vmatprep.subr.mxu0 0.0
        %3110 = vmatpush1.msra.mxu0 %v3080
        %3111 = vmatprep.subr.mxu0 0.0
        %3112 = vmatpush1.msra.mxu0 %v3081
        %3113 = vmatprep.subr.mxu0 0.0
        %3114 = vmatpush1.msra.mxu0 %v3082
        %3115 = vmatprep.subr.mxu0 0.0
        %3116 = vmatpush1.msra.mxu0 0.0
        %3117 = vmatprep.subr.mxu0 0.0
        %3118 = vmatpush1.msra.mxu0 0.0
        %3119 = vmatprep.subr.mxu0 0.0
        %3120 = vmatpush1.msra.mxu0 0.0
        %3121 = vmatprep.subr.mxu0 0.0
        %3122 = vmatpush1.msra.mxu0 0.0
        %3123 = vmatprep.subr.mxu0 0.0
        %3124 = vmatpush1.msra.mxu0 0.0
        %3125 = vmatprep.subr.mxu0 0.0
        %3126 = vmatpush1.msra.mxu0 0.0
        %3127 = vmatprep.subr.mxu0 0.0
        %3128 = vmatpush1.msra.mxu0 0.0
        %3129 = vmatprep.subr.mxu0 0.0
        %3130 = vmatpush1.msra.mxu0 0.0
        %3131 = vmatprep.subr.mxu0 0.0
        %3132 = vmatpush1.msra.mxu0 0.0
        %3133 = vmatprep.subr.mxu0 0.0
        %3134 = vmatpush1.msra.mxu0 0.0
        %3135 = vmatprep.subr.mxu0 0.0
        %3136 = vmatpush1.msra.mxu0 0.0
        %3137 = vmatprep.subr.mxu0 0.0
        %3138 = vmatpush1.msra.mxu0 0.0
        %3139 = vmatprep.subr.mxu0 0.0
        %3140 = vmatpush1.msra.mxu0 0.0
        %3141 = vmatprep.subr.mxu0 0.0
        %3142 = vmatpush1.msra.mxu0 0.0
        %3143 = vmatprep.subr.mxu0 0.0
        %3144 = vmatpush1.msra.mxu0 0.0
        %3145 = vmatprep.subr.mxu0 0.0
        %3146 = vmatpush1.msra.mxu0 0.0
        %3147 = vmatprep.mubr.f32.mxu0 0.0
        %3148 = vmatmul.mubr.f32.gmra.mrb[0].mxu0 %v3050
        %v3149 = vpop.f32.mrb[0].mxu0
        %v3150 = vadd.f32 0.0, %v3149
        %v3151 = vpop.f32.mrb[0].mxu0
        %3152 = vmatprep.mubr.f32.mxu0 0.0
        %3153 = vmatmul.mubr.f32.gmra.mrb[0].mxu0 %v3051
        %v3154 = vpop.f32.mrb[0].mxu0
        %v3155 = vadd.f32 0.0, %v3154
        %v3156 = vpop.f32.mrb[0].mxu0
        %3157 = vmatprep.mubr.f32.mxu0 0.0
        %3158 = vmatmul.mubr.f32.gmra.mrb[0].mxu0 %v3052
        %v3159 = vpop.f32.mrb[0].mxu0
        %v3160 = vadd.f32 0.0, %v3159
        %v3161 = vpop.f32.mrb[0].mxu0
        %3162 = vmatprep.mubr.f32.mxu0 0.0
        %3163 = vmatmul.mubr.f32.gmra.mrb[0].mxu0 %v3053
        %v3164 = vpop.f32.mrb[0].mxu0
        %v3165 = vadd.f32 0.0, %v3164
        %v3166 = vpop.f32.mrb[0].mxu0
        %3167 = vmatprep.mubr.f32.mxu0 0.0
        %3168 = vmatmul.mubr.f32.gmra.mrb[0].mxu0 %v3054
        %v3169 = vpop.f32.mrb[0].mxu0
        %v3170 = vadd.f32 0.0, %v3169
        %v3171 = vpop.f32.mrb[0].mxu0
        %3172 = vmatprep.mubr.f32.mxu0 0.0
        %3173 = vmatmul.mubr.f32.gmra.mrb[0].mxu0 %v3055
        %v3174 = vpop.f32.mrb[0].mxu0
        %v3175 = vadd.f32 0.0, %v3174
        %v3176 = vpop.f32.mrb[0].mxu0
        %3177 = vmatprep.mubr.f32.mxu0 0.0
        %3178 = vmatmul.mubr.f32.gmra.mrb[0].mxu0 %v3056
        %v3179 = vpop.f32.mrb[0].mxu0
        %v3180 = vadd.f32 0.0, %v3179
        %v3181 = vpop.f32.mrb[0].mxu0
        %3182 = vmatprep.mubr.f32.mxu0 0.0
        %3183 = vmatmul.mubr.f32.gmra.mrb[0].mxu0 %v3057
        %v3184 = vpop.f32.mrb[0].mxu0
        %v3185 = vadd.f32 0.0, %v3184
        %v3186 = vpop.f32.mrb[0].mxu0
        %3187 = vmatprep.mubr.f32.mxu0 0.0
        %3188 = vmatmul.mubr.f32.gmra.mrb[0].mxu0 %v3058
        %v3189 = vpop.f32.mrb[0].mxu0
        %v3190 = vadd.f32 0.0, %v3189
        %v3191 = vpop.f32.mrb[0].mxu0
        %3192 = vmatprep.mubr.f32.mxu0 0.0
        %3193 = vmatmul.mubr.f32.gmra.mrb[0].mxu0 %v3059
        %v3194 = vpop.f32.mrb[0].mxu0
        %v3195 = vadd.f32 0.0, %v3194
        %v3196 = vpop.f32.mrb[0].mxu0
        %3197 = vmatprep.mubr.f32.mxu0 0.0
        %3198 = vmatmul.mubr.f32.gmra.mrb[0].mxu0 %v3060
        %v3199 = vpop.f32.mrb[0].mxu0
        %v3200 = vadd.f32 0.0, %v3199
        %v3201 = vpop.f32.mrb[0].mxu0
        %3202 = vmatprep.mubr.f32.mxu0 0.0
        %3203 = vmatmul.mubr.f32.gmra.mrb[0].mxu0 %v3061
        %v3204 = vpop.f32.mrb[0].mxu0
        %v3205 = vadd.f32 0.0, %v3204
        %v3206 = vpop.f32.mrb[0].mxu0
        %3207 = vmatprep.mubr.f32.mxu0 0.0
        %3208 = vmatmul.mubr.f32.gmra.mrb[0].mxu0 %v3062
        %v3209 = vpop.f32.mrb[0].mxu0
        %v3210 = vadd.f32 0.0, %v3209
        %v3211 = vpop.f32.mrb[0].mxu0
        %3212 = vmatprep.mubr.f32.mxu0 0.0
        %3213 = vmatmul.mubr.f32.gmra.mrb[0].mxu0 %v3063
        %v3214 = vpop.f32.mrb[0].mxu0
        %v3215 = vadd.f32 0.0, %v3214
        %v3216 = vpop.f32.mrb[0].mxu0
        %3217 = vmatprep.mubr.f32.mxu0 0.0
        %3218 = vmatmul.mubr.f32.gmra.mrb[0].mxu0 %v3064
        %v3219 = vpop.f32.mrb[0].mxu0
        %v3220 = vadd.f32 0.0, %v3219
        %v3221 = vpop.f32.mrb[0].mxu0
        %3222 = vmatprep.mubr.f32.mxu0 0.0
        %3223 = vmatmul.mubr.f32.gmra.mrb[0].mxu0 %v3065
        %v3224 = vpop.f32.mrb[0].mxu0
        %v3225 = vadd.f32 0.0, %v3224
        %v3226 = vpop.f32.mrb[0].mxu0
        %3227 = vdwg.mxu0
        %v3228 = vadd.f32 %v3034, %v3150
        %v3229 = vadd.f32 %v3035, %v3155
        %v3230 = vadd.f32 %v3036, %v3160
        %v3231 = vadd.f32 %v3037, %v3165
        %v3232 = vadd.f32 %v3038, %v3170
        %v3233 = vadd.f32 %v3039, %v3175
        %v3234 = vadd.f32 %v3040, %v3180
        %v3235 = vadd.f32 %v3041, %v3185
        %v3236 = vadd.f32 %v3042, %v3190
        %v3237 = vadd.f32 %v3043, %v3195
        %v3238 = vadd.f32 %v3044, %v3200
        %v3239 = vadd.f32 %v3045, %v3205
        %v3240 = vadd.f32 %v3046, %v3210
        %v3241 = vadd.f32 %v3047, %v3215
        %v3242 = vadd.f32 %v3048, %v3220
        %v3243 = vadd.f32 %v3049, %v3225
        %v3244 = vld [vmem:[%s2290 + $0x2] sm:$0xff]
        %v3245 = vld [vmem:[%s2290 + $0x12] sm:$0xff]
        %v3246 = vld [vmem:[%s2290 + $0x22] sm:$0xff]
        %v3247 = vld [vmem:[%s2290 + $0x32] sm:$0xff]
        %v3248 = vld [vmem:[%s2290 + $0x42] sm:$0xff]
        %v3249 = vld [vmem:[%s2290 + $0x52] sm:$0xff]
        %v3250 = vld [vmem:[%s2290 + $0x62] sm:$0xff]
        %v3251 = vld [vmem:[%s2290 + $0x72] sm:$0xff]
        %v3252 = vld [vmem:[%s2290 + $0xa2] sm:$0xff]
        %v3253 = vld [vmem:[%s2290 + $0xb2] sm:$0xff]
        %v3254 = vld [vmem:[%s2290 + $0xc2] sm:$0xff]
        %v3255 = vld [vmem:[%s2290 + $0xd2] sm:$0xff]
        %v3256 = vld [vmem:[%s2290 + $0xe2] sm:$0xff]
        %v3257 = vld [vmem:[%s2290 + $0xf2] sm:$0xff]
        %v3258 = vld [vmem:[%s2290 + $0x102] sm:$0xff]
        %v3259 = vld [vmem:[%s2290 + $0x112] sm:$0xff]
        %s3260 = scalar_lea.vmem [#allocation11], 640
        %v3261 = vld [vmem:[%s3260] sm:$0xff]
        %v3262 = vld [vmem:[%s3260 + $0x8] sm:$0xff]
        %v3263 = vld [vmem:[%s3260 + $0x10] sm:$0xff]
        %v3264 = vld [vmem:[%s3260 + $0x18] sm:$0xff]
        %v3265 = vld [vmem:[%s3260 + $0x20] sm:$0xff]
        %v3266 = vld [vmem:[%s3260 + $0x28] sm:$0xff]
        %v3267 = vld [vmem:[%s3260 + $0x30] sm:$0xff]
        %v3268 = vld [vmem:[%s3260 + $0x38] sm:$0xff]
        %v3269 = vld [vmem:[%s3260 + $0x40] sm:$0xff]
        %v3270 = vld [vmem:[%s3260 + $0x48] sm:$0xff]
        %v3271 = vld [vmem:[%s3260 + $0x50] sm:$0xff]
        %v3272 = vld [vmem:[%s3260 + $0x58] sm:$0xff]
        %v3273 = vld [vmem:[%s3260 + $0x60] sm:$0xff]
        %v3274 = vld [vmem:[%s3260 + $0x68] sm:$0xff]
        %v3275 = vld [vmem:[%s3260 + $0x70] sm:$0xff]
        %v3276 = vld [vmem:[%s3260 + $0x78] sm:$0xff]
        %3277 = vmatprep.subr.mxu0 0.0
        %3278 = vmatpush1.msra.mxu0 %v3261
        %3279 = vmatprep.subr.mxu0 0.0
        %3280 = vmatpush1.msra.mxu0 %v3262
        %3281 = vmatprep.subr.mxu0 0.0
        %3282 = vmatpush1.msra.mxu0 %v3263
        %3283 = vmatprep.subr.mxu0 0.0
        %3284 = vmatpush1.msra.mxu0 %v3264
        %3285 = vmatprep.subr.mxu0 0.0
        %3286 = vmatpush1.msra.mxu0 %v3265
        %3287 = vmatprep.subr.mxu0 0.0
        %3288 = vmatpush1.msra.mxu0 %v3266
        %3289 = vmatprep.subr.mxu0 0.0
        %3290 = vmatpush1.msra.mxu0 %v3267
        %3291 = vmatprep.subr.mxu0 0.0
        %3292 = vmatpush1.msra.mxu0 %v3268
        %3293 = vmatprep.subr.mxu0 0.0
        %3294 = vmatpush1.msra.mxu0 %v3269
        %3295 = vmatprep.subr.mxu0 0.0
        %3296 = vmatpush1.msra.mxu0 %v3270
        %3297 = vmatprep.subr.mxu0 0.0
        %3298 = vmatpush1.msra.mxu0 %v3271
        %3299 = vmatprep.subr.mxu0 0.0
        %3300 = vmatpush1.msra.mxu0 %v3272
        %3301 = vmatprep.subr.mxu0 0.0
        %3302 = vmatpush1.msra.mxu0 %v3273
        %3303 = vmatprep.subr.mxu0 0.0
        %3304 = vmatpush1.msra.mxu0 %v3274
        %3305 = vmatprep.subr.mxu0 0.0
        %3306 = vmatpush1.msra.mxu0 %v3275
        %3307 = vmatprep.subr.mxu0 0.0
        %3308 = vmatpush1.msra.mxu0 %v3276
        %3309 = vmatprep.subr.mxu0 0.0
        %3310 = vmatpush1.msra.mxu0 0.0
        %3311 = vmatprep.subr.mxu0 0.0
        %3312 = vmatpush1.msra.mxu0 0.0
        %3313 = vmatprep.subr.mxu0 0.0
        %3314 = vmatpush1.msra.mxu0 0.0
        %3315 = vmatprep.subr.mxu0 0.0
        %3316 = vmatpush1.msra.mxu0 0.0
        %3317 = vmatprep.subr.mxu0 0.0
        %3318 = vmatpush1.msra.mxu0 0.0
        %3319 = vmatprep.subr.mxu0 0.0
        %3320 = vmatpush1.msra.mxu0 0.0
        %3321 = vmatprep.subr.mxu0 0.0
        %3322 = vmatpush1.msra.mxu0 0.0
        %3323 = vmatprep.subr.mxu0 0.0
        %3324 = vmatpush1.msra.mxu0 0.0
        %3325 = vmatprep.subr.mxu0 0.0
        %3326 = vmatpush1.msra.mxu0 0.0
        %3327 = vmatprep.subr.mxu0 0.0
        %3328 = vmatpush1.msra.mxu0 0.0
        %3329 = vmatprep.subr.mxu0 0.0
        %3330 = vmatpush1.msra.mxu0 0.0
        %3331 = vmatprep.subr.mxu0 0.0
        %3332 = vmatpush1.msra.mxu0 0.0
        %3333 = vmatprep.subr.mxu0 0.0
        %3334 = vmatpush1.msra.mxu0 0.0
        %3335 = vmatprep.subr.mxu0 0.0
        %3336 = vmatpush1.msra.mxu0 0.0
        %3337 = vmatprep.subr.mxu0 0.0
        %3338 = vmatpush1.msra.mxu0 0.0
        %3339 = vmatprep.subr.mxu0 0.0
        %3340 = vmatpush1.msra.mxu0 0.0
        %3341 = vmatprep.mubr.f32.mxu0 0.0
        %3342 = vmatmul.mubr.f32.gmra.mrb[0].mxu0 %v3244
        %v3343 = vpop.f32.mrb[0].mxu0
        %v3344 = vadd.f32 0.0, %v3343
        %v3345 = vpop.f32.mrb[0].mxu0
        %3346 = vmatprep.mubr.f32.mxu0 0.0
        %3347 = vmatmul.mubr.f32.gmra.mrb[0].mxu0 %v3245
        %v3348 = vpop.f32.mrb[0].mxu0
        %v3349 = vadd.f32 0.0, %v3348
        %v3350 = vpop.f32.mrb[0].mxu0
        %3351 = vmatprep.mubr.f32.mxu0 0.0
        %3352 = vmatmul.mubr.f32.gmra.mrb[0].mxu0 %v3246
        %v3353 = vpop.f32.mrb[0].mxu0
        %v3354 = vadd.f32 0.0, %v3353
        %v3355 = vpop.f32.mrb[0].mxu0
        %3356 = vmatprep.mubr.f32.mxu0 0.0
        %3357 = vmatmul.mubr.f32.gmra.mrb[0].mxu0 %v3247
        %v3358 = vpop.f32.mrb[0].mxu0
        %v3359 = vadd.f32 0.0, %v3358
        %v3360 = vpop.f32.mrb[0].mxu0
        %3361 = vmatprep.mubr.f32.mxu0 0.0
        %3362 = vmatmul.mubr.f32.gmra.mrb[0].mxu0 %v3248
        %v3363 = vpop.f32.mrb[0].mxu0
        %v3364 = vadd.f32 0.0, %v3363
        %v3365 = vpop.f32.mrb[0].mxu0
        %3366 = vmatprep.mubr.f32.mxu0 0.0
        %3367 = vmatmul.mubr.f32.gmra.mrb[0].mxu0 %v3249
        %v3368 = vpop.f32.mrb[0].mxu0
        %v3369 = vadd.f32 0.0, %v3368
        %v3370 = vpop.f32.mrb[0].mxu0
        %3371 = vmatprep.mubr.f32.mxu0 0.0
        %3372 = vmatmul.mubr.f32.gmra.mrb[0].mxu0 %v3250
        %v3373 = vpop.f32.mrb[0].mxu0
        %v3374 = vadd.f32 0.0, %v3373
        %v3375 = vpop.f32.mrb[0].mxu0
        %3376 = vmatprep.mubr.f32.mxu0 0.0
        %3377 = vmatmul.mubr.f32.gmra.mrb[0].mxu0 %v3251
        %v3378 = vpop.f32.mrb[0].mxu0
        %v3379 = vadd.f32 0.0, %v3378
        %v3380 = vpop.f32.mrb[0].mxu0
        %3381 = vmatprep.mubr.f32.mxu0 0.0
        %3382 = vmatmul.mubr.f32.gmra.mrb[0].mxu0 %v3252
        %v3383 = vpop.f32.mrb[0].mxu0
        %v3384 = vadd.f32 0.0, %v3383
        %v3385 = vpop.f32.mrb[0].mxu0
        %3386 = vmatprep.mubr.f32.mxu0 0.0
        %3387 = vmatmul.mubr.f32.gmra.mrb[0].mxu0 %v3253
        %v3388 = vpop.f32.mrb[0].mxu0
        %v3389 = vadd.f32 0.0, %v3388
        %v3390 = vpop.f32.mrb[0].mxu0
        %3391 = vmatprep.mubr.f32.mxu0 0.0
        %3392 = vmatmul.mubr.f32.gmra.mrb[0].mxu0 %v3254
        %v3393 = vpop.f32.mrb[0].mxu0
        %v3394 = vadd.f32 0.0, %v3393
        %v3395 = vpop.f32.mrb[0].mxu0
        %3396 = vmatprep.mubr.f32.mxu0 0.0
        %3397 = vmatmul.mubr.f32.gmra.mrb[0].mxu0 %v3255
        %v3398 = vpop.f32.mrb[0].mxu0
        %v3399 = vadd.f32 0.0, %v3398
        %v3400 = vpop.f32.mrb[0].mxu0
        %3401 = vmatprep.mubr.f32.mxu0 0.0
        %3402 = vmatmul.mubr.f32.gmra.mrb[0].mxu0 %v3256
        %v3403 = vpop.f32.mrb[0].mxu0
        %v3404 = vadd.f32 0.0, %v3403
        %v3405 = vpop.f32.mrb[0].mxu0
        %3406 = vmatprep.mubr.f32.mxu0 0.0
        %3407 = vmatmul.mubr.f32.gmra.mrb[0].mxu0 %v3257
        %v3408 = vpop.f32.mrb[0].mxu0
        %v3409 = vadd.f32 0.0, %v3408
        %v3410 = vpop.f32.mrb[0].mxu0
        %3411 = vmatprep.mubr.f32.mxu0 0.0
        %3412 = vmatmul.mubr.f32.gmra.mrb[0].mxu0 %v3258
        %v3413 = vpop.f32.mrb[0].mxu0
        %v3414 = vadd.f32 0.0, %v3413
        %v3415 = vpop.f32.mrb[0].mxu0
        %3416 = vmatprep.mubr.f32.mxu0 0.0
        %3417 = vmatmul.mubr.f32.gmra.mrb[0].mxu0 %v3259
        %v3418 = vpop.f32.mrb[0].mxu0
        %v3419 = vadd.f32 0.0, %v3418
        %v3420 = vpop.f32.mrb[0].mxu0
        %3421 = vdwg.mxu0
        %v3422 = vadd.f32 %v3228, %v3344
        %v3423 = vadd.f32 %v3229, %v3349
        %v3424 = vadd.f32 %v3230, %v3354
        %v3425 = vadd.f32 %v3231, %v3359
        %v3426 = vadd.f32 %v3232, %v3364
        %v3427 = vadd.f32 %v3233, %v3369
        %v3428 = vadd.f32 %v3234, %v3374
        %v3429 = vadd.f32 %v3235, %v3379
        %v3430 = vadd.f32 %v3236, %v3384
        %v3431 = vadd.f32 %v3237, %v3389
        %v3432 = vadd.f32 %v3238, %v3394
        %v3433 = vadd.f32 %v3239, %v3399
        %v3434 = vadd.f32 %v3240, %v3404
        %v3435 = vadd.f32 %v3241, %v3409
        %v3436 = vadd.f32 %v3242, %v3414
        %v3437 = vadd.f32 %v3243, %v3419
        %s3438 = scalar_lea.vmem [#allocation2], 32
        %v3439 = vld [vmem:[%s3438] sm:$0xff]
        %v3440 = vld [vmem:[%s3438 + $0x10] sm:$0xff]
        %v3441 = vld [vmem:[%s3438 + $0x20] sm:$0xff]
        %v3442 = vld [vmem:[%s3438 + $0x30] sm:$0xff]
        %v3443 = vld [vmem:[%s3438 + $0x40] sm:$0xff]
        %v3444 = vld [vmem:[%s3438 + $0x50] sm:$0xff]
        %v3445 = vld [vmem:[%s3438 + $0x60] sm:$0xff]
        %v3446 = vld [vmem:[%s3438 + $0x70] sm:$0xff]
        %v3447 = vld [vmem:[%s3438 + $0xa0] sm:$0xff]
        %v3448 = vld [vmem:[%s3438 + $0xb0] sm:$0xff]
        %v3449 = vld [vmem:[%s3438 + $0xc0] sm:$0xff]
        %v3450 = vld [vmem:[%s3438 + $0xd0] sm:$0xff]
        %v3451 = vld [vmem:[%s3438 + $0xe0] sm:$0xff]
        %v3452 = vld [vmem:[%s3438 + $0xf0] sm:$0xff]
        %v3453 = vld [vmem:[%s3438 + $0x100] sm:$0xff]
        %v3454 = vld [vmem:[%s3438 + $0x110] sm:$0xff]
        %s3455 = scalar_lea.vmem [#allocation11], 768
        %v3456 = vld [vmem:[%s3455] sm:$0xff]
        %v3457 = vld [vmem:[%s3455 + $0x8] sm:$0xff]
        %v3458 = vld [vmem:[%s3455 + $0x10] sm:$0xff]
        %v3459 = vld [vmem:[%s3455 + $0x18] sm:$0xff]
        %v3460 = vld [vmem:[%s3455 + $0x20] sm:$0xff]
        %v3461 = vld [vmem:[%s3455 + $0x28] sm:$0xff]
        %v3462 = vld [vmem:[%s3455 + $0x30] sm:$0xff]
        %v3463 = vld [vmem:[%s3455 + $0x38] sm:$0xff]
        %v3464 = vld [vmem:[%s3455 + $0x40] sm:$0xff]
        %v3465 = vld [vmem:[%s3455 + $0x48] sm:$0xff]
        %v3466 = vld [vmem:[%s3455 + $0x50] sm:$0xff]
        %v3467 = vld [vmem:[%s3455 + $0x58] sm:$0xff]
        %v3468 = vld [vmem:[%s3455 + $0x60] sm:$0xff]
        %v3469 = vld [vmem:[%s3455 + $0x68] sm:$0xff]
        %v3470 = vld [vmem:[%s3455 + $0x70] sm:$0xff]
        %v3471 = vld [vmem:[%s3455 + $0x78] sm:$0xff]
        %3472 = vmatprep.subr.mxu0 0.0
        %3473 = vmatpush1.msra.mxu0 %v3456
        %3474 = vmatprep.subr.mxu0 0.0
        %3475 = vmatpush1.msra.mxu0 %v3457
        %3476 = vmatprep.subr.mxu0 0.0
        %3477 = vmatpush1.msra.mxu0 %v3458
        %3478 = vmatprep.subr.mxu0 0.0
        %3479 = vmatpush1.msra.mxu0 %v3459
        %3480 = vmatprep.subr.mxu0 0.0
        %3481 = vmatpush1.msra.mxu0 %v3460
        %3482 = vmatprep.subr.mxu0 0.0
        %3483 = vmatpush1.msra.mxu0 %v3461
        %3484 = vmatprep.subr.mxu0 0.0
        %3485 = vmatpush1.msra.mxu0 %v3462
        %3486 = vmatprep.subr.mxu0 0.0
        %3487 = vmatpush1.msra.mxu0 %v3463
        %3488 = vmatprep.subr.mxu0 0.0
        %3489 = vmatpush1.msra.mxu0 %v3464
        %3490 = vmatprep.subr.mxu0 0.0
        %3491 = vmatpush1.msra.mxu0 %v3465
        %3492 = vmatprep.subr.mxu0 0.0
        %3493 = vmatpush1.msra.mxu0 %v3466
        %3494 = vmatprep.subr.mxu0 0.0
        %3495 = vmatpush1.msra.mxu0 %v3467
        %3496 = vmatprep.subr.mxu0 0.0
        %3497 = vmatpush1.msra.mxu0 %v3468
        %3498 = vmatprep.subr.mxu0 0.0
        %3499 = vmatpush1.msra.mxu0 %v3469
        %3500 = vmatprep.subr.mxu0 0.0
        %3501 = vmatpush1.msra.mxu0 %v3470
        %3502 = vmatprep.subr.mxu0 0.0
        %3503 = vmatpush1.msra.mxu0 %v3471
        %3504 = vmatprep.subr.mxu0 0.0
        %3505 = vmatpush1.msra.mxu0 0.0
        %3506 = vmatprep.subr.mxu0 0.0
        %3507 = vmatpush1.msra.mxu0 0.0
        %3508 = vmatprep.subr.mxu0 0.0
        %3509 = vmatpush1.msra.mxu0 0.0
        %3510 = vmatprep.subr.mxu0 0.0
        %3511 = vmatpush1.msra.mxu0 0.0
        %3512 = vmatprep.subr.mxu0 0.0
        %3513 = vmatpush1.msra.mxu0 0.0
        %3514 = vmatprep.subr.mxu0 0.0
        %3515 = vmatpush1.msra.mxu0 0.0
        %3516 = vmatprep.subr.mxu0 0.0
        %3517 = vmatpush1.msra.mxu0 0.0
        %3518 = vmatprep.subr.mxu0 0.0
        %3519 = vmatpush1.msra.mxu0 0.0
        %3520 = vmatprep.subr.mxu0 0.0
        %3521 = vmatpush1.msra.mxu0 0.0
        %3522 = vmatprep.subr.mxu0 0.0
        %3523 = vmatpush1.msra.mxu0 0.0
        %3524 = vmatprep.subr.mxu0 0.0
        %3525 = vmatpush1.msra.mxu0 0.0
        %3526 = vmatprep.subr.mxu0 0.0
        %3527 = vmatpush1.msra.mxu0 0.0
        %3528 = vmatprep.subr.mxu0 0.0
        %3529 = vmatpush1.msra.mxu0 0.0
        %3530 = vmatprep.subr.mxu0 0.0
        %3531 = vmatpush1.msra.mxu0 0.0
        %3532 = vmatprep.subr.mxu0 0.0
        %3533 = vmatpush1.msra.mxu0 0.0
        %3534 = vmatprep.subr.mxu0 0.0
        %3535 = vmatpush1.msra.mxu0 0.0
        %3536 = vmatprep.mubr.f32.mxu0 0.0
        %3537 = vmatmul.mubr.f32.gmra.mrb[0].mxu0 %v3439
        %v3538 = vpop.f32.mrb[0].mxu0
        %v3539 = vadd.f32 0.0, %v3538
        %v3540 = vpop.f32.mrb[0].mxu0
        %3541 = vmatprep.mubr.f32.mxu0 0.0
        %3542 = vmatmul.mubr.f32.gmra.mrb[0].mxu0 %v3440
        %v3543 = vpop.f32.mrb[0].mxu0
        %v3544 = vadd.f32 0.0, %v3543
        %v3545 = vpop.f32.mrb[0].mxu0
        %3546 = vmatprep.mubr.f32.mxu0 0.0
        %3547 = vmatmul.mubr.f32.gmra.mrb[0].mxu0 %v3441
        %v3548 = vpop.f32.mrb[0].mxu0
        %v3549 = vadd.f32 0.0, %v3548
        %v3550 = vpop.f32.mrb[0].mxu0
        %3551 = vmatprep.mubr.f32.mxu0 0.0
        %3552 = vmatmul.mubr.f32.gmra.mrb[0].mxu0 %v3442
        %v3553 = vpop.f32.mrb[0].mxu0
        %v3554 = vadd.f32 0.0, %v3553
        %v3555 = vpop.f32.mrb[0].mxu0
        %3556 = vmatprep.mubr.f32.mxu0 0.0
        %3557 = vmatmul.mubr.f32.gmra.mrb[0].mxu0 %v3443
        %v3558 = vpop.f32.mrb[0].mxu0
        %v3559 = vadd.f32 0.0, %v3558
        %v3560 = vpop.f32.mrb[0].mxu0
        %3561 = vmatprep.mubr.f32.mxu0 0.0
        %3562 = vmatmul.mubr.f32.gmra.mrb[0].mxu0 %v3444
        %v3563 = vpop.f32.mrb[0].mxu0
        %v3564 = vadd.f32 0.0, %v3563
        %v3565 = vpop.f32.mrb[0].mxu0
        %3566 = vmatprep.mubr.f32.mxu0 0.0
        %3567 = vmatmul.mubr.f32.gmra.mrb[0].mxu0 %v3445
        %v3568 = vpop.f32.mrb[0].mxu0
        %v3569 = vadd.f32 0.0, %v3568
        %v3570 = vpop.f32.mrb[0].mxu0
        %3571 = vmatprep.mubr.f32.mxu0 0.0
        %3572 = vmatmul.mubr.f32.gmra.mrb[0].mxu0 %v3446
        %v3573 = vpop.f32.mrb[0].mxu0
        %v3574 = vadd.f32 0.0, %v3573
        %v3575 = vpop.f32.mrb[0].mxu0
        %3576 = vmatprep.mubr.f32.mxu0 0.0
        %3577 = vmatmul.mubr.f32.gmra.mrb[0].mxu0 %v3447
        %v3578 = vpop.f32.mrb[0].mxu0
        %v3579 = vadd.f32 0.0, %v3578
        %v3580 = vpop.f32.mrb[0].mxu0
        %3581 = vmatprep.mubr.f32.mxu0 0.0
        %3582 = vmatmul.mubr.f32.gmra.mrb[0].mxu0 %v3448
        %v3583 = vpop.f32.mrb[0].mxu0
        %v3584 = vadd.f32 0.0, %v3583
        %v3585 = vpop.f32.mrb[0].mxu0
        %3586 = vmatprep.mubr.f32.mxu0 0.0
        %3587 = vmatmul.mubr.f32.gmra.mrb[0].mxu0 %v3449
        %v3588 = vpop.f32.mrb[0].mxu0
        %v3589 = vadd.f32 0.0, %v3588
        %v3590 = vpop.f32.mrb[0].mxu0
        %3591 = vmatprep.mubr.f32.mxu0 0.0
        %3592 = vmatmul.mubr.f32.gmra.mrb[0].mxu0 %v3450
        %v3593 = vpop.f32.mrb[0].mxu0
        %v3594 = vadd.f32 0.0, %v3593
        %v3595 = vpop.f32.mrb[0].mxu0
        %3596 = vmatprep.mubr.f32.mxu0 0.0
        %3597 = vmatmul.mubr.f32.gmra.mrb[0].mxu0 %v3451
        %v3598 = vpop.f32.mrb[0].mxu0
        %v3599 = vadd.f32 0.0, %v3598
        %v3600 = vpop.f32.mrb[0].mxu0
        %3601 = vmatprep.mubr.f32.mxu0 0.0
        %3602 = vmatmul.mubr.f32.gmra.mrb[0].mxu0 %v3452
        %v3603 = vpop.f32.mrb[0].mxu0
        %v3604 = vadd.f32 0.0, %v3603
        %v3605 = vpop.f32.mrb[0].mxu0
        %3606 = vmatprep.mubr.f32.mxu0 0.0
        %3607 = vmatmul.mubr.f32.gmra.mrb[0].mxu0 %v3453
        %v3608 = vpop.f32.mrb[0].mxu0
        %v3609 = vadd.f32 0.0, %v3608
        %v3610 = vpop.f32.mrb[0].mxu0
        %3611 = vmatprep.mubr.f32.mxu0 0.0
        %3612 = vmatmul.mubr.f32.gmra.mrb[0].mxu0 %v3454
        %v3613 = vpop.f32.mrb[0].mxu0
        %v3614 = vadd.f32 0.0, %v3613
        %v3615 = vpop.f32.mrb[0].mxu0
        %3616 = vdwg.mxu0
        %v3617 = vadd.f32 %v3422, %v3539
        %v3618 = vadd.f32 %v3423, %v3544
        %v3619 = vadd.f32 %v3424, %v3549
        %v3620 = vadd.f32 %v3425, %v3554
        %v3621 = vadd.f32 %v3426, %v3559
        %v3622 = vadd.f32 %v3427, %v3564
        %v3623 = vadd.f32 %v3428, %v3569
        %v3624 = vadd.f32 %v3429, %v3574
        %v3625 = vadd.f32 %v3430, %v3579
        %v3626 = vadd.f32 %v3431, %v3584
        %v3627 = vadd.f32 %v3432, %v3589
        %v3628 = vadd.f32 %v3433, %v3594
        %v3629 = vadd.f32 %v3434, %v3599
        %v3630 = vadd.f32 %v3435, %v3604
        %v3631 = vadd.f32 %v3436, %v3609
        %v3632 = vadd.f32 %v3437, %v3614
        %v3633 = vld [vmem:[%s3438 + $0x1] sm:$0xff]
        %v3634 = vld [vmem:[%s3438 + $0x11] sm:$0xff]
        %v3635 = vld [vmem:[%s3438 + $0x21] sm:$0xff]
        %v3636 = vld [vmem:[%s3438 + $0x31] sm:$0xff]
        %v3637 = vld [vmem:[%s3438 + $0x41] sm:$0xff]
        %v3638 = vld [vmem:[%s3438 + $0x51] sm:$0xff]
        %v3639 = vld [vmem:[%s3438 + $0x61] sm:$0xff]
        %v3640 = vld [vmem:[%s3438 + $0x71] sm:$0xff]
        %v3641 = vld [vmem:[%s3438 + $0xa1] sm:$0xff]
        %v3642 = vld [vmem:[%s3438 + $0xb1] sm:$0xff]
        %v3643 = vld [vmem:[%s3438 + $0xc1] sm:$0xff]
        %v3644 = vld [vmem:[%s3438 + $0xd1] sm:$0xff]
        %v3645 = vld [vmem:[%s3438 + $0xe1] sm:$0xff]
        %v3646 = vld [vmem:[%s3438 + $0xf1] sm:$0xff]
        %v3647 = vld [vmem:[%s3438 + $0x101] sm:$0xff]
        %v3648 = vld [vmem:[%s3438 + $0x111] sm:$0xff]
        %s3649 = scalar_lea.vmem [#allocation11], 896
        %v3650 = vld [vmem:[%s3649] sm:$0xff]
        %v3651 = vld [vmem:[%s3649 + $0x8] sm:$0xff]
        %v3652 = vld [vmem:[%s3649 + $0x10] sm:$0xff]
        %v3653 = vld [vmem:[%s3649 + $0x18] sm:$0xff]
        %v3654 = vld [vmem:[%s3649 + $0x20] sm:$0xff]
        %v3655 = vld [vmem:[%s3649 + $0x28] sm:$0xff]
        %v3656 = vld [vmem:[%s3649 + $0x30] sm:$0xff]
        %v3657 = vld [vmem:[%s3649 + $0x38] sm:$0xff]
        %v3658 = vld [vmem:[%s3649 + $0x40] sm:$0xff]
        %v3659 = vld [vmem:[%s3649 + $0x48] sm:$0xff]
        %v3660 = vld [vmem:[%s3649 + $0x50] sm:$0xff]
        %v3661 = vld [vmem:[%s3649 + $0x58] sm:$0xff]
        %v3662 = vld [vmem:[%s3649 + $0x60] sm:$0xff]
        %v3663 = vld [vmem:[%s3649 + $0x68] sm:$0xff]
        %v3664 = vld [vmem:[%s3649 + $0x70] sm:$0xff]
        %v3665 = vld [vmem:[%s3649 + $0x78] sm:$0xff]
        %3666 = vmatprep.subr.mxu0 0.0
        %3667 = vmatpush1.msra.mxu0 %v3650
        %3668 = vmatprep.subr.mxu0 0.0
        %3669 = vmatpush1.msra.mxu0 %v3651
        %3670 = vmatprep.subr.mxu0 0.0
        %3671 = vmatpush1.msra.mxu0 %v3652
        %3672 = vmatprep.subr.mxu0 0.0
        %3673 = vmatpush1.msra.mxu0 %v3653
        %3674 = vmatprep.subr.mxu0 0.0
        %3675 = vmatpush1.msra.mxu0 %v3654
        %3676 = vmatprep.subr.mxu0 0.0
        %3677 = vmatpush1.msra.mxu0 %v3655
        %3678 = vmatprep.subr.mxu0 0.0
        %3679 = vmatpush1.msra.mxu0 %v3656
        %3680 = vmatprep.subr.mxu0 0.0
        %3681 = vmatpush1.msra.mxu0 %v3657
        %3682 = vmatprep.subr.mxu0 0.0
        %3683 = vmatpush1.msra.mxu0 %v3658
        %3684 = vmatprep.subr.mxu0 0.0
        %3685 = vmatpush1.msra.mxu0 %v3659
        %3686 = vmatprep.subr.mxu0 0.0
        %3687 = vmatpush1.msra.mxu0 %v3660
        %3688 = vmatprep.subr.mxu0 0.0
        %3689 = vmatpush1.msra.mxu0 %v3661
        %3690 = vmatprep.subr.mxu0 0.0
        %3691 = vmatpush1.msra.mxu0 %v3662
        %3692 = vmatprep.subr.mxu0 0.0
        %3693 = vmatpush1.msra.mxu0 %v3663
        %3694 = vmatprep.subr.mxu0 0.0
        %3695 = vmatpush1.msra.mxu0 %v3664
        %3696 = vmatprep.subr.mxu0 0.0
        %3697 = vmatpush1.msra.mxu0 %v3665
        %3698 = vmatprep.subr.mxu0 0.0
        %3699 = vmatpush1.msra.mxu0 0.0
        %3700 = vmatprep.subr.mxu0 0.0
        %3701 = vmatpush1.msra.mxu0 0.0
        %3702 = vmatprep.subr.mxu0 0.0
        %3703 = vmatpush1.msra.mxu0 0.0
        %3704 = vmatprep.subr.mxu0 0.0
        %3705 = vmatpush1.msra.mxu0 0.0
        %3706 = vmatprep.subr.mxu0 0.0
        %3707 = vmatpush1.msra.mxu0 0.0
        %3708 = vmatprep.subr.mxu0 0.0
        %3709 = vmatpush1.msra.mxu0 0.0
        %3710 = vmatprep.subr.mxu0 0.0
        %3711 = vmatpush1.msra.mxu0 0.0
        %3712 = vmatprep.subr.mxu0 0.0
        %3713 = vmatpush1.msra.mxu0 0.0
        %3714 = vmatprep.subr.mxu0 0.0
        %3715 = vmatpush1.msra.mxu0 0.0
        %3716 = vmatprep.subr.mxu0 0.0
        %3717 = vmatpush1.msra.mxu0 0.0
        %3718 = vmatprep.subr.mxu0 0.0
        %3719 = vmatpush1.msra.mxu0 0.0
        %3720 = vmatprep.subr.mxu0 0.0
        %3721 = vmatpush1.msra.mxu0 0.0
        %3722 = vmatprep.subr.mxu0 0.0
        %3723 = vmatpush1.msra.mxu0 0.0
        %3724 = vmatprep.subr.mxu0 0.0
        %3725 = vmatpush1.msra.mxu0 0.0
        %3726 = vmatprep.subr.mxu0 0.0
        %3727 = vmatpush1.msra.mxu0 0.0
        %3728 = vmatprep.subr.mxu0 0.0
        %3729 = vmatpush1.msra.mxu0 0.0
        %3730 = vmatprep.mubr.f32.mxu0 0.0
        %3731 = vmatmul.mubr.f32.gmra.mrb[0].mxu0 %v3633
        %v3732 = vpop.f32.mrb[0].mxu0
        %v3733 = vadd.f32 0.0, %v3732
        %v3734 = vpop.f32.mrb[0].mxu0
        %3735 = vmatprep.mubr.f32.mxu0 0.0
        %3736 = vmatmul.mubr.f32.gmra.mrb[0].mxu0 %v3634
        %v3737 = vpop.f32.mrb[0].mxu0
        %v3738 = vadd.f32 0.0, %v3737
        %v3739 = vpop.f32.mrb[0].mxu0
        %3740 = vmatprep.mubr.f32.mxu0 0.0
        %3741 = vmatmul.mubr.f32.gmra.mrb[0].mxu0 %v3635
        %v3742 = vpop.f32.mrb[0].mxu0
        %v3743 = vadd.f32 0.0, %v3742
        %v3744 = vpop.f32.mrb[0].mxu0
        %3745 = vmatprep.mubr.f32.mxu0 0.0
        %3746 = vmatmul.mubr.f32.gmra.mrb[0].mxu0 %v3636
        %v3747 = vpop.f32.mrb[0].mxu0
        %v3748 = vadd.f32 0.0, %v3747
        %v3749 = vpop.f32.mrb[0].mxu0
        %3750 = vmatprep.mubr.f32.mxu0 0.0
        %3751 = vmatmul.mubr.f32.gmra.mrb[0].mxu0 %v3637
        %v3752 = vpop.f32.mrb[0].mxu0
        %v3753 = vadd.f32 0.0, %v3752
        %v3754 = vpop.f32.mrb[0].mxu0
        %3755 = vmatprep.mubr.f32.mxu0 0.0
        %3756 = vmatmul.mubr.f32.gmra.mrb[0].mxu0 %v3638
        %v3757 = vpop.f32.mrb[0].mxu0
        %v3758 = vadd.f32 0.0, %v3757
        %v3759 = vpop.f32.mrb[0].mxu0
        %3760 = vmatprep.mubr.f32.mxu0 0.0
        %3761 = vmatmul.mubr.f32.gmra.mrb[0].mxu0 %v3639
        %v3762 = vpop.f32.mrb[0].mxu0
        %v3763 = vadd.f32 0.0, %v3762
        %v3764 = vpop.f32.mrb[0].mxu0
        %3765 = vmatprep.mubr.f32.mxu0 0.0
        %3766 = vmatmul.mubr.f32.gmra.mrb[0].mxu0 %v3640
        %v3767 = vpop.f32.mrb[0].mxu0
        %v3768 = vadd.f32 0.0, %v3767
        %v3769 = vpop.f32.mrb[0].mxu0
        %3770 = vmatprep.mubr.f32.mxu0 0.0
        %3771 = vmatmul.mubr.f32.gmra.mrb[0].mxu0 %v3641
        %v3772 = vpop.f32.mrb[0].mxu0
        %v3773 = vadd.f32 0.0, %v3772
        %v3774 = vpop.f32.mrb[0].mxu0
        %3775 = vmatprep.mubr.f32.mxu0 0.0
        %3776 = vmatmul.mubr.f32.gmra.mrb[0].mxu0 %v3642
        %v3777 = vpop.f32.mrb[0].mxu0
        %v3778 = vadd.f32 0.0, %v3777
        %v3779 = vpop.f32.mrb[0].mxu0
        %3780 = vmatprep.mubr.f32.mxu0 0.0
        %3781 = vmatmul.mubr.f32.gmra.mrb[0].mxu0 %v3643
        %v3782 = vpop.f32.mrb[0].mxu0
        %v3783 = vadd.f32 0.0, %v3782
        %v3784 = vpop.f32.mrb[0].mxu0
        %3785 = vmatprep.mubr.f32.mxu0 0.0
        %3786 = vmatmul.mubr.f32.gmra.mrb[0].mxu0 %v3644
        %v3787 = vpop.f32.mrb[0].mxu0
        %v3788 = vadd.f32 0.0, %v3787
        %v3789 = vpop.f32.mrb[0].mxu0
        %3790 = vmatprep.mubr.f32.mxu0 0.0
        %3791 = vmatmul.mubr.f32.gmra.mrb[0].mxu0 %v3645
        %v3792 = vpop.f32.mrb[0].mxu0
        %v3793 = vadd.f32 0.0, %v3792
        %v3794 = vpop.f32.mrb[0].mxu0
        %3795 = vmatprep.mubr.f32.mxu0 0.0
        %3796 = vmatmul.mubr.f32.gmra.mrb[0].mxu0 %v3646
        %v3797 = vpop.f32.mrb[0].mxu0
        %v3798 = vadd.f32 0.0, %v3797
        %v3799 = vpop.f32.mrb[0].mxu0
        %3800 = vmatprep.mubr.f32.mxu0 0.0
        %3801 = vmatmul.mubr.f32.gmra.mrb[0].mxu0 %v3647
        %v3802 = vpop.f32.mrb[0].mxu0
        %v3803 = vadd.f32 0.0, %v3802
        %v3804 = vpop.f32.mrb[0].mxu0
        %3805 = vmatprep.mubr.f32.mxu0 0.0
        %3806 = vmatmul.mubr.f32.gmra.mrb[0].mxu0 %v3648
        %v3807 = vpop.f32.mrb[0].mxu0
        %v3808 = vadd.f32 0.0, %v3807
        %v3809 = vpop.f32.mrb[0].mxu0
        %3810 = vdwg.mxu0
        %v3811 = vadd.f32 %v3617, %v3733
        %v3812 = vadd.f32 %v3618, %v3738
        %v3813 = vadd.f32 %v3619, %v3743
        %v3814 = vadd.f32 %v3620, %v3748
        %v3815 = vadd.f32 %v3621, %v3753
        %v3816 = vadd.f32 %v3622, %v3758
        %v3817 = vadd.f32 %v3623, %v3763
        %v3818 = vadd.f32 %v3624, %v3768
        %v3819 = vadd.f32 %v3625, %v3773
        %v3820 = vadd.f32 %v3626, %v3778
        %v3821 = vadd.f32 %v3627, %v3783
        %v3822 = vadd.f32 %v3628, %v3788
        %v3823 = vadd.f32 %v3629, %v3793
        %v3824 = vadd.f32 %v3630, %v3798
        %v3825 = vadd.f32 %v3631, %v3803
        %v3826 = vadd.f32 %v3632, %v3808
        %v3827 = vld [vmem:[%s3438 + $0x2] sm:$0xff]
        %v3828 = vld [vmem:[%s3438 + $0x12] sm:$0xff]
        %v3829 = vld [vmem:[%s3438 + $0x22] sm:$0xff]
        %v3830 = vld [vmem:[%s3438 + $0x32] sm:$0xff]
        %v3831 = vld [vmem:[%s3438 + $0x42] sm:$0xff]
        %v3832 = vld [vmem:[%s3438 + $0x52] sm:$0xff]
        %v3833 = vld [vmem:[%s3438 + $0x62] sm:$0xff]
        %v3834 = vld [vmem:[%s3438 + $0x72] sm:$0xff]
        %v3835 = vld [vmem:[%s3438 + $0xa2] sm:$0xff]
        %v3836 = vld [vmem:[%s3438 + $0xb2] sm:$0xff]
        %v3837 = vld [vmem:[%s3438 + $0xc2] sm:$0xff]
        %v3838 = vld [vmem:[%s3438 + $0xd2] sm:$0xff]
        %v3839 = vld [vmem:[%s3438 + $0xe2] sm:$0xff]
        %v3840 = vld [vmem:[%s3438 + $0xf2] sm:$0xff]
        %v3841 = vld [vmem:[%s3438 + $0x102] sm:$0xff]
        %v3842 = vld [vmem:[%s3438 + $0x112] sm:$0xff]
        %s3843 = scalar_lea.vmem [#allocation11], 1024
        %v3844 = vld [vmem:[%s3843] sm:$0xff]
        %v3845 = vld [vmem:[%s3843 + $0x8] sm:$0xff]
        %v3846 = vld [vmem:[%s3843 + $0x10] sm:$0xff]
        %v3847 = vld [vmem:[%s3843 + $0x18] sm:$0xff]
        %v3848 = vld [vmem:[%s3843 + $0x20] sm:$0xff]
        %v3849 = vld [vmem:[%s3843 + $0x28] sm:$0xff]
        %v3850 = vld [vmem:[%s3843 + $0x30] sm:$0xff]
        %v3851 = vld [vmem:[%s3843 + $0x38] sm:$0xff]
        %v3852 = vld [vmem:[%s3843 + $0x40] sm:$0xff]
        %v3853 = vld [vmem:[%s3843 + $0x48] sm:$0xff]
        %v3854 = vld [vmem:[%s3843 + $0x50] sm:$0xff]
        %v3855 = vld [vmem:[%s3843 + $0x58] sm:$0xff]
        %v3856 = vld [vmem:[%s3843 + $0x60] sm:$0xff]
        %v3857 = vld [vmem:[%s3843 + $0x68] sm:$0xff]
        %v3858 = vld [vmem:[%s3843 + $0x70] sm:$0xff]
        %v3859 = vld [vmem:[%s3843 + $0x78] sm:$0xff]
        %3860 = vmatprep.subr.mxu0 0.0
        %3861 = vmatpush1.msra.mxu0 %v3844
        %3862 = vmatprep.subr.mxu0 0.0
        %3863 = vmatpush1.msra.mxu0 %v3845
        %3864 = vmatprep.subr.mxu0 0.0
        %3865 = vmatpush1.msra.mxu0 %v3846
        %3866 = vmatprep.subr.mxu0 0.0
        %3867 = vmatpush1.msra.mxu0 %v3847
        %3868 = vmatprep.subr.mxu0 0.0
        %3869 = vmatpush1.msra.mxu0 %v3848
        %3870 = vmatprep.subr.mxu0 0.0
        %3871 = vmatpush1.msra.mxu0 %v3849
        %3872 = vmatprep.subr.mxu0 0.0
        %3873 = vmatpush1.msra.mxu0 %v3850
        %3874 = vmatprep.subr.mxu0 0.0
        %3875 = vmatpush1.msra.mxu0 %v3851
        %3876 = vmatprep.subr.mxu0 0.0
        %3877 = vmatpush1.msra.mxu0 %v3852
        %3878 = vmatprep.subr.mxu0 0.0
        %3879 = vmatpush1.msra.mxu0 %v3853
        %3880 = vmatprep.subr.mxu0 0.0
        %3881 = vmatpush1.msra.mxu0 %v3854
        %3882 = vmatprep.subr.mxu0 0.0
        %3883 = vmatpush1.msra.mxu0 %v3855
        %3884 = vmatprep.subr.mxu0 0.0
        %3885 = vmatpush1.msra.mxu0 %v3856
        %3886 = vmatprep.subr.mxu0 0.0
        %3887 = vmatpush1.msra.mxu0 %v3857
        %3888 = vmatprep.subr.mxu0 0.0
        %3889 = vmatpush1.msra.mxu0 %v3858
        %3890 = vmatprep.subr.mxu0 0.0
        %3891 = vmatpush1.msra.mxu0 %v3859
        %3892 = vmatprep.subr.mxu0 0.0
        %3893 = vmatpush1.msra.mxu0 0.0
        %3894 = vmatprep.subr.mxu0 0.0
        %3895 = vmatpush1.msra.mxu0 0.0
        %3896 = vmatprep.subr.mxu0 0.0
        %3897 = vmatpush1.msra.mxu0 0.0
        %3898 = vmatprep.subr.mxu0 0.0
        %3899 = vmatpush1.msra.mxu0 0.0
        %3900 = vmatprep.subr.mxu0 0.0
        %3901 = vmatpush1.msra.mxu0 0.0
        %3902 = vmatprep.subr.mxu0 0.0
        %3903 = vmatpush1.msra.mxu0 0.0
        %3904 = vmatprep.subr.mxu0 0.0
        %3905 = vmatpush1.msra.mxu0 0.0
        %3906 = vmatprep.subr.mxu0 0.0
        %3907 = vmatpush1.msra.mxu0 0.0
        %3908 = vmatprep.subr.mxu0 0.0
        %3909 = vmatpush1.msra.mxu0 0.0
        %3910 = vmatprep.subr.mxu0 0.0
        %3911 = vmatpush1.msra.mxu0 0.0
        %3912 = vmatprep.subr.mxu0 0.0
        %3913 = vmatpush1.msra.mxu0 0.0
        %3914 = vmatprep.subr.mxu0 0.0
        %3915 = vmatpush1.msra.mxu0 0.0
        %3916 = vmatprep.subr.mxu0 0.0
        %3917 = vmatpush1.msra.mxu0 0.0
        %3918 = vmatprep.subr.mxu0 0.0
        %3919 = vmatpush1.msra.mxu0 0.0
        %3920 = vmatprep.subr.mxu0 0.0
        %3921 = vmatpush1.msra.mxu0 0.0
        %3922 = vmatprep.subr.mxu0 0.0
        %3923 = vmatpush1.msra.mxu0 0.0
        %3924 = vmatprep.mubr.f32.mxu0 0.0
        %3925 = vmatmul.mubr.f32.gmra.mrb[0].mxu0 %v3827
        %v3926 = vpop.f32.mrb[0].mxu0
        %v3927 = vadd.f32 0.0, %v3926
        %v3928 = vpop.f32.mrb[0].mxu0
        %3929 = vmatprep.mubr.f32.mxu0 0.0
        %3930 = vmatmul.mubr.f32.gmra.mrb[0].mxu0 %v3828
        %v3931 = vpop.f32.mrb[0].mxu0
        %v3932 = vadd.f32 0.0, %v3931
        %v3933 = vpop.f32.mrb[0].mxu0
        %3934 = vmatprep.mubr.f32.mxu0 0.0
        %3935 = vmatmul.mubr.f32.gmra.mrb[0].mxu0 %v3829
        %v3936 = vpop.f32.mrb[0].mxu0
        %v3937 = vadd.f32 0.0, %v3936
        %v3938 = vpop.f32.mrb[0].mxu0
        %3939 = vmatprep.mubr.f32.mxu0 0.0
        %3940 = vmatmul.mubr.f32.gmra.mrb[0].mxu0 %v3830
        %v3941 = vpop.f32.mrb[0].mxu0
        %v3942 = vadd.f32 0.0, %v3941
        %v3943 = vpop.f32.mrb[0].mxu0
        %3944 = vmatprep.mubr.f32.mxu0 0.0
        %3945 = vmatmul.mubr.f32.gmra.mrb[0].mxu0 %v3831
        %v3946 = vpop.f32.mrb[0].mxu0
        %v3947 = vadd.f32 0.0, %v3946
        %v3948 = vpop.f32.mrb[0].mxu0
        %3949 = vmatprep.mubr.f32.mxu0 0.0
        %3950 = vmatmul.mubr.f32.gmra.mrb[0].mxu0 %v3832
        %v3951 = vpop.f32.mrb[0].mxu0
        %v3952 = vadd.f32 0.0, %v3951
        %v3953 = vpop.f32.mrb[0].mxu0
        %3954 = vmatprep.mubr.f32.mxu0 0.0
        %3955 = vmatmul.mubr.f32.gmra.mrb[0].mxu0 %v3833
        %v3956 = vpop.f32.mrb[0].mxu0
        %v3957 = vadd.f32 0.0, %v3956
        %v3958 = vpop.f32.mrb[0].mxu0
        %3959 = vmatprep.mubr.f32.mxu0 0.0
        %3960 = vmatmul.mubr.f32.gmra.mrb[0].mxu0 %v3834
        %v3961 = vpop.f32.mrb[0].mxu0
        %v3962 = vadd.f32 0.0, %v3961
        %v3963 = vpop.f32.mrb[0].mxu0
        %3964 = vmatprep.mubr.f32.mxu0 0.0
        %3965 = vmatmul.mubr.f32.gmra.mrb[0].mxu0 %v3835
        %v3966 = vpop.f32.mrb[0].mxu0
        %v3967 = vadd.f32 0.0, %v3966
        %v3968 = vpop.f32.mrb[0].mxu0
        %3969 = vmatprep.mubr.f32.mxu0 0.0
        %3970 = vmatmul.mubr.f32.gmra.mrb[0].mxu0 %v3836
        %v3971 = vpop.f32.mrb[0].mxu0
        %v3972 = vadd.f32 0.0, %v3971
        %v3973 = vpop.f32.mrb[0].mxu0
        %3974 = vmatprep.mubr.f32.mxu0 0.0
        %3975 = vmatmul.mubr.f32.gmra.mrb[0].mxu0 %v3837
        %v3976 = vpop.f32.mrb[0].mxu0
        %v3977 = vadd.f32 0.0, %v3976
        %v3978 = vpop.f32.mrb[0].mxu0
        %3979 = vmatprep.mubr.f32.mxu0 0.0
        %3980 = vmatmul.mubr.f32.gmra.mrb[0].mxu0 %v3838
        %v3981 = vpop.f32.mrb[0].mxu0
        %v3982 = vadd.f32 0.0, %v3981
        %v3983 = vpop.f32.mrb[0].mxu0
        %3984 = vmatprep.mubr.f32.mxu0 0.0
        %3985 = vmatmul.mubr.f32.gmra.mrb[0].mxu0 %v3839
        %v3986 = vpop.f32.mrb[0].mxu0
        %v3987 = vadd.f32 0.0, %v3986
        %v3988 = vpop.f32.mrb[0].mxu0
        %3989 = vmatprep.mubr.f32.mxu0 0.0
        %3990 = vmatmul.mubr.f32.gmra.mrb[0].mxu0 %v3840
        %v3991 = vpop.f32.mrb[0].mxu0
        %v3992 = vadd.f32 0.0, %v3991
        %v3993 = vpop.f32.mrb[0].mxu0
        %3994 = vmatprep.mubr.f32.mxu0 0.0
        %3995 = vmatmul.mubr.f32.gmra.mrb[0].mxu0 %v3841
        %v3996 = vpop.f32.mrb[0].mxu0
        %v3997 = vadd.f32 0.0, %v3996
        %v3998 = vpop.f32.mrb[0].mxu0
        %3999 = vmatprep.mubr.f32.mxu0 0.0
        %4000 = vmatmul.mubr.f32.gmra.mrb[0].mxu0 %v3842
        %v4001 = vpop.f32.mrb[0].mxu0
        %v4002 = vadd.f32 0.0, %v4001
        %v4003 = vpop.f32.mrb[0].mxu0
        %4004 = vdwg.mxu0
        %v4005 = vadd.f32 %v3811, %v3927
        %v4006 = vadd.f32 %v3812, %v3932
        %v4007 = vadd.f32 %v3813, %v3937
        %v4008 = vadd.f32 %v3814, %v3942
        %v4009 = vadd.f32 %v3815, %v3947
        %v4010 = vadd.f32 %v3816, %v3952
        %v4011 = vadd.f32 %v3817, %v3957
        %v4012 = vadd.f32 %v3818, %v3962
        %v4013 = vadd.f32 %v3819, %v3967
        %v4014 = vadd.f32 %v3820, %v3972
        %v4015 = vadd.f32 %v3821, %v3977
        %v4016 = vadd.f32 %v3822, %v3982
        %v4017 = vadd.f32 %v3823, %v3987
        %v4018 = vadd.f32 %v3824, %v3992
        %v4019 = vadd.f32 %v3825, %v3997
        %v4020 = vadd.f32 %v3826, %v4002
        %v4022 = vlaneseq
        %v4023 = vshrl.u32 %v4022, 7
        %v4024 = vsub.s32 0, %v4023
        %v4025 = vrot.slane %v513, %v4024
        %v4027 = vmul.f32 %v4005, %v4025
        %v4028 = vmul.f32 %v4006, %v4025
        %v4029 = vmul.f32 %v4007, %v4025
        %v4030 = vmul.f32 %v4008, %v4025
        %v4031 = vmul.f32 %v4009, %v4025
        %v4032 = vmul.f32 %v4010, %v4025
        %v4033 = vmul.f32 %v4011, %v4025
        %v4034 = vmul.f32 %v4012, %v4025
        %v4035 = vmul.f32 %v4013, %v4025
        %v4036 = vmul.f32 %v4014, %v4025
        %v4037 = vmul.f32 %v4015, %v4025
        %v4038 = vmul.f32 %v4016, %v4025
        %v4039 = vmul.f32 %v4017, %v4025
        %v4040 = vmul.f32 %v4018, %v4025
        %v4041 = vmul.f32 %v4019, %v4025
        %v4042 = vmul.f32 %v4020, %v4025
        %v4044 = vlaneseq
        %v4045 = vshrl.u32 %v4044, 7
        %v4046 = vsub.s32 0, %v4045
        %v4047 = vrot.slane %v514, %v4046
        %v4049 = vadd.f32 %v4027, %v4047
        %v4050 = vadd.f32 %v4028, %v4047
        %v4051 = vadd.f32 %v4029, %v4047
        %v4052 = vadd.f32 %v4030, %v4047
        %v4053 = vadd.f32 %v4031, %v4047
        %v4054 = vadd.f32 %v4032, %v4047
        %v4055 = vadd.f32 %v4033, %v4047
        %v4056 = vadd.f32 %v4034, %v4047
        %v4057 = vadd.f32 %v4035, %v4047
        %v4058 = vadd.f32 %v4036, %v4047
        %v4059 = vadd.f32 %v4037, %v4047
        %v4060 = vadd.f32 %v4038, %v4047
        %v4061 = vadd.f32 %v4039, %v4047
        %v4062 = vadd.f32 %v4040, %v4047
        %v4063 = vadd.f32 %v4041, %v4047
        %v4064 = vadd.f32 %v4042, %v4047
        %v4065 = vadd.f32 %v4049, %v4050
        %v4066 = vadd.f32 %v4065, %v4051
        %v4067 = vadd.f32 %v4066, %v4052
        %v4068 = vadd.f32 %v4067, %v4053
        %v4069 = vadd.f32 %v4068, %v4054
        %v4070 = vadd.f32 %v4069, %v4055
        %v4071 = vadd.f32 %v4070, %v4056
        %v4072 = vrot.slane %v4071, 4
        %v4073 = vadd.f32 %v4071, %v4072
        %v4074 = vrot.slane %v4073, 2
        %v4075 = vadd.f32 %v4073, %v4074
        %v4076 = vrot.slane %v4075, 1
        %v4077 = vadd.f32 %v4075, %v4076
        %v4078 = vadd.f32 %v4057, %v4058
        %v4079 = vadd.f32 %v4078, %v4059
        %v4080 = vadd.f32 %v4079, %v4060
        %v4081 = vadd.f32 %v4080, %v4061
        %v4082 = vadd.f32 %v4081, %v4062
        %v4083 = vadd.f32 %v4082, %v4063
        %v4084 = vadd.f32 %v4083, %v4064
        %v4085 = vrot.slane %v4084, 4
        %v4086 = vadd.f32 %v4084, %v4085
        %v4087 = vrot.slane %v4086, 2
        %v4088 = vadd.f32 %v4086, %v4087
        %v4089 = vrot.slane %v4088, 1
        %v4090 = vadd.f32 %v4088, %v4089
        %v4091 = vmul.f32 %v4077, 0.015625
        %v4092 = vmul.f32 %v4090, 0.015625
        %v4093 = vld [vmem:[#allocation15] sm:$0xff]
        %v4094 = vld [vmem:[#allocation15 + $0x8] sm:$0xff]
        %v4095 = vld [vmem:[#allocation15 + $0x10] sm:$0xff]
        %v4096 = vld [vmem:[#allocation15 + $0x18] sm:$0xff]
        %v4097 = vld [vmem:[#allocation15 + $0x20] sm:$0xff]
        %v4098 = vld [vmem:[#allocation15 + $0x28] sm:$0xff]
        %v4099 = vld [vmem:[#allocation15 + $0x30] sm:$0xff]
        %v4100 = vld [vmem:[#allocation15 + $0x38] sm:$0xff]
        %v4101 = vld [vmem:[#allocation15 + $0x40] sm:$0xff]
        %v4102 = vld [vmem:[#allocation15 + $0x48] sm:$0xff]
        %v4103 = vld [vmem:[#allocation15 + $0x50] sm:$0xff]
        %v4104 = vld [vmem:[#allocation15 + $0x58] sm:$0xff]
        %v4105 = vld [vmem:[#allocation15 + $0x60] sm:$0xff]
        %v4106 = vld [vmem:[#allocation15 + $0x68] sm:$0xff]
        %v4107 = vld [vmem:[#allocation15 + $0x70] sm:$0xff]
        %v4108 = vld [vmem:[#allocation15 + $0x78] sm:$0xff]
        %vm4111 = vcmask 1041409
        %v4112 = vsel %vm4111, %v4092, %v4091
        %4114 = vmatprep.subr.mxu0 0.0
        %4115 = vmatpush1.msra.mxu0 %v4093
        %4116 = vmatprep.subr.mxu0 0.0
        %4117 = vmatpush1.msra.mxu0 %v4094
        %4118 = vmatprep.subr.mxu0 0.0
        %4119 = vmatpush1.msra.mxu0 %v4095
        %4120 = vmatprep.subr.mxu0 0.0
        %4121 = vmatpush1.msra.mxu0 %v4096
        %4122 = vmatprep.subr.mxu0 0.0
        %4123 = vmatpush1.msra.mxu0 %v4097
        %4124 = vmatprep.subr.mxu0 0.0
        %4125 = vmatpush1.msra.mxu0 %v4098
        %4126 = vmatprep.subr.mxu0 0.0
        %4127 = vmatpush1.msra.mxu0 %v4099
        %4128 = vmatprep.subr.mxu0 0.0
        %4129 = vmatpush1.msra.mxu0 %v4100
        %4130 = vmatprep.subr.mxu0 0.0
        %4131 = vmatpush1.msra.mxu0 %v4101
        %4132 = vmatprep.subr.mxu0 0.0
        %4133 = vmatpush1.msra.mxu0 %v4102
        %4134 = vmatprep.subr.mxu0 0.0
        %4135 = vmatpush1.msra.mxu0 %v4103
        %4136 = vmatprep.subr.mxu0 0.0
        %4137 = vmatpush1.msra.mxu0 %v4104
        %4138 = vmatprep.subr.mxu0 0.0
        %4139 = vmatpush1.msra.mxu0 %v4105
        %4140 = vmatprep.subr.mxu0 0.0
        %4141 = vmatpush1.msra.mxu0 %v4106
        %4142 = vmatprep.subr.mxu0 0.0
        %4143 = vmatpush1.msra.mxu0 %v4107
        %4144 = vmatprep.subr.mxu0 0.0
        %4145 = vmatpush1.msra.mxu0 %v4108
        %4146 = vmatprep.subr.mxu0 0.0
        %4147 = vmatpush1.msra.mxu0 0.0
        %4148 = vmatprep.subr.mxu0 0.0
        %4149 = vmatpush1.msra.mxu0 0.0
        %4150 = vmatprep.subr.mxu0 0.0
        %4151 = vmatpush1.msra.mxu0 0.0
        %4152 = vmatprep.subr.mxu0 0.0
        %4153 = vmatpush1.msra.mxu0 0.0
        %4154 = vmatprep.subr.mxu0 0.0
        %4155 = vmatpush1.msra.mxu0 0.0
        %4156 = vmatprep.subr.mxu0 0.0
        %4157 = vmatpush1.msra.mxu0 0.0
        %4158 = vmatprep.subr.mxu0 0.0
        %4159 = vmatpush1.msra.mxu0 0.0
        %4160 = vmatprep.subr.mxu0 0.0
        %4161 = vmatpush1.msra.mxu0 0.0
        %4162 = vmatprep.subr.mxu0 0.0
        %4163 = vmatpush1.msra.mxu0 0.0
        %4164 = vmatprep.subr.mxu0 0.0
        %4165 = vmatpush1.msra.mxu0 0.0
        %4166 = vmatprep.subr.mxu0 0.0
        %4167 = vmatpush1.msra.mxu0 0.0
        %4168 = vmatprep.subr.mxu0 0.0
        %4169 = vmatpush1.msra.mxu0 0.0
        %4170 = vmatprep.subr.mxu0 0.0
        %4171 = vmatpush1.msra.mxu0 0.0
        %4172 = vmatprep.subr.mxu0 0.0
        %4173 = vmatpush1.msra.mxu0 0.0
        %4174 = vmatprep.subr.mxu0 0.0
        %4175 = vmatpush1.msra.mxu0 0.0
        %4176 = vmatprep.subr.mxu0 0.0
        %4177 = vmatpush1.msra.mxu0 0.0
        %4178 = vmatprep.mubr.f32.mxu0 0.0
        %4179 = vmatmul.mubr.f32.gmra.mrb[0].mxu0 %v4112
        %v4180 = vpop.f32.mrb[0].mxu0
        %v4181 = vadd.f32 0.0, %v4180
        %v4182 = vpop.f32.mrb[0].mxu0
        %4183 = vdwg.mxu0
        %v4184 = vmax.f32 %v4181, 0.0
        %v4185 = vld [vmem:[#allocation17] sm:$0xff]
        %v4186 = vld [vmem:[#allocation17 + $0x8] sm:$0xff]
        %v4187 = vld [vmem:[#allocation17 + $0x10] sm:$0xff]
        %v4188 = vld [vmem:[#allocation17 + $0x18] sm:$0xff]
        %v4189 = vld [vmem:[#allocation17 + $0x20] sm:$0xff]
        %v4190 = vld [vmem:[#allocation17 + $0x28] sm:$0xff]
        %v4191 = vld [vmem:[#allocation17 + $0x30] sm:$0xff]
        %v4192 = vld [vmem:[#allocation17 + $0x38] sm:$0xff]
        %v4193 = vld [vmem:[#allocation17 + $0x40] sm:$0xff]
        %v4194 = vld [vmem:[#allocation17 + $0x48] sm:$0xff]
        %v4195 = vld [vmem:[#allocation17 + $0x50] sm:$0xff]
        %v4196 = vld [vmem:[#allocation17 + $0x58] sm:$0xff]
        %v4197 = vld [vmem:[#allocation17 + $0x60] sm:$0xff]
        %v4198 = vld [vmem:[#allocation17 + $0x68] sm:$0xff]
        %v4199 = vld [vmem:[#allocation17 + $0x70] sm:$0xff]
        %v4200 = vld [vmem:[#allocation17 + $0x78] sm:$0xff]
        %4201 = vmatprep.subr.mxu0 0.0
        %4202 = vmatpush1.msra.mxu0 %v4185
        %4203 = vmatprep.subr.mxu0 0.0
        %4204 = vmatpush1.msra.mxu0 %v4186
        %4205 = vmatprep.subr.mxu0 0.0
        %4206 = vmatpush1.msra.mxu0 %v4187
        %4207 = vmatprep.subr.mxu0 0.0
        %4208 = vmatpush1.msra.mxu0 %v4188
        %4209 = vmatprep.subr.mxu0 0.0
        %4210 = vmatpush1.msra.mxu0 %v4189
        %4211 = vmatprep.subr.mxu0 0.0
        %4212 = vmatpush1.msra.mxu0 %v4190
        %4213 = vmatprep.subr.mxu0 0.0
        %4214 = vmatpush1.msra.mxu0 %v4191
        %4215 = vmatprep.subr.mxu0 0.0
        %4216 = vmatpush1.msra.mxu0 %v4192
        %4217 = vmatprep.subr.mxu0 0.0
        %4218 = vmatpush1.msra.mxu0 %v4193
        %4219 = vmatprep.subr.mxu0 0.0
        %4220 = vmatpush1.msra.mxu0 %v4194
        %4221 = vmatprep.subr.mxu0 0.0
        %4222 = vmatpush1.msra.mxu0 %v4195
        %4223 = vmatprep.subr.mxu0 0.0
        %4224 = vmatpush1.msra.mxu0 %v4196
        %4225 = vmatprep.subr.mxu0 0.0
        %4226 = vmatpush1.msra.mxu0 %v4197
        %4227 = vmatprep.subr.mxu0 0.0
        %4228 = vmatpush1.msra.mxu0 %v4198
        %4229 = vmatprep.subr.mxu0 0.0
        %4230 = vmatpush1.msra.mxu0 %v4199
        %4231 = vmatprep.subr.mxu0 0.0
        %4232 = vmatpush1.msra.mxu0 %v4200
        %4233 = vmatprep.subr.mxu0 0.0
        %4234 = vmatpush1.msra.mxu0 0.0
        %4235 = vmatprep.subr.mxu0 0.0
        %4236 = vmatpush1.msra.mxu0 0.0
        %4237 = vmatprep.subr.mxu0 0.0
        %4238 = vmatpush1.msra.mxu0 0.0
        %4239 = vmatprep.subr.mxu0 0.0
        %4240 = vmatpush1.msra.mxu0 0.0
        %4241 = vmatprep.subr.mxu0 0.0
        %4242 = vmatpush1.msra.mxu0 0.0
        %4243 = vmatprep.subr.mxu0 0.0
        %4244 = vmatpush1.msra.mxu0 0.0
        %4245 = vmatprep.subr.mxu0 0.0
        %4246 = vmatpush1.msra.mxu0 0.0
        %4247 = vmatprep.subr.mxu0 0.0
        %4248 = vmatpush1.msra.mxu0 0.0
        %4249 = vmatprep.subr.mxu0 0.0
        %4250 = vmatpush1.msra.mxu0 0.0
        %4251 = vmatprep.subr.mxu0 0.0
        %4252 = vmatpush1.msra.mxu0 0.0
        %4253 = vmatprep.subr.mxu0 0.0
        %4254 = vmatpush1.msra.mxu0 0.0
        %4255 = vmatprep.subr.mxu0 0.0
        %4256 = vmatpush1.msra.mxu0 0.0
        %4257 = vmatprep.subr.mxu0 0.0
        %4258 = vmatpush1.msra.mxu0 0.0
        %4259 = vmatprep.subr.mxu0 0.0
        %4260 = vmatpush1.msra.mxu0 0.0
        %4261 = vmatprep.subr.mxu0 0.0
        %4262 = vmatpush1.msra.mxu0 0.0
        %4263 = vmatprep.subr.mxu0 0.0
        %4264 = vmatpush1.msra.mxu0 0.0
        %4265 = vmatprep.mubr.f32.mxu0 0.0
        %4266 = vmatmul.mubr.f32.gmra.mrb[0].mxu0 %v4184
        %v4267 = vpop.f32.mrb[0].mxu0
        %v4268 = vadd.f32 0.0, %v4267
        %v4269 = vpop.f32.mrb[0].mxu0
        %4270 = vdwg.mxu0
        %v4271 = vxor.u32 %v4268, 2147483648
        %v4272 = vmul.f32 %v4271, 1.442695
        %v4273 = vpow.pop %v4272
        %v4274 = vadd.f32 %v4273, 1.0
        %v4275 = vrcp.pop %v4274
        %v4276 = vmul.f32 1.0, %v4275
        %v4277 = vld [vmem:[%s1064 + $0x1] sm:$0xff]
        %v4278 = vld [vmem:[%s1064 + $0x11] sm:$0xff]
        %v4279 = vld [vmem:[%s1064 + $0x21] sm:$0xff]
        %v4280 = vld [vmem:[%s1064 + $0x31] sm:$0xff]
        %v4281 = vld [vmem:[%s1064 + $0x41] sm:$0xff]
        %v4282 = vld [vmem:[%s1064 + $0x51] sm:$0xff]
        %v4283 = vld [vmem:[%s1064 + $0x61] sm:$0xff]
        %v4284 = vld [vmem:[%s1064 + $0x71] sm:$0xff]
        %v4285 = vld [vmem:[%s1064 + $0xa1] sm:$0xff]
        %v4286 = vld [vmem:[%s1064 + $0xb1] sm:$0xff]
        %v4287 = vld [vmem:[%s1064 + $0xc1] sm:$0xff]
        %v4288 = vld [vmem:[%s1064 + $0xd1] sm:$0xff]
        %v4289 = vld [vmem:[%s1064 + $0xe1] sm:$0xff]
        %v4290 = vld [vmem:[%s1064 + $0xf1] sm:$0xff]
        %v4291 = vld [vmem:[%s1064 + $0x101] sm:$0xff]
        %v4292 = vld [vmem:[%s1064 + $0x111] sm:$0xff]
        %v4295 = vunpack.c.l.s4 1966171168
        %v4296 = vunpack.c.0.s8 %v4295
        %v4297 = vlaneseq
        %v4298 = vshrl.u32 %v4297, 7
        %v4299 = vsub.s32 %v4296, %v4298
        %v4300 = vrot.slane %v4276, %v4299
        %v4301 = vcombine.high %v4300, %v4300
        %v4303 = vunpack.c.l.s4 1966171168
        %v4304 = vunpack.c.0.s8 %v4303
        %v4305 = vlaneseq
        %v4306 = vshrl.u32 %v4305, 7
        %v4307 = vsub.s32 %v4304, %v4306
        %v4308 = vrot.slane %v4300, %v4307
        %v4310 = vunpack.c.l.s4 1966171168
        %v4311 = vunpack.c.0.s8 %v4310
        %v4312 = vlaneseq
        %v4313 = vshrl.u32 %v4312, 7
        %v4314 = vsub.s32 %v4311, %v4313
        %v4315 = vrot.slane %v4301, %v4314
        %v4316 = vlaneseq
        %v4317 = vshrl.u32 %v4316, 7
        %v4318 = vsub.s32 0, %v4317
        %v4319 = vrot.slane %v4308, %v4318
        %v4320 = vlaneseq
        %v4321 = vshrl.u32 %v4320, 7
        %v4322 = vsub.s32 0, %v4321
        %v4323 = vrot.slane %v4315, %v4322
        %v4326 = vmul.f32 %v4049, %v4319
        %v4327 = vmul.f32 %v4050, %v4319
        %v4328 = vmul.f32 %v4051, %v4319
        %v4329 = vmul.f32 %v4052, %v4319
        %v4330 = vmul.f32 %v4053, %v4319
        %v4331 = vmul.f32 %v4054, %v4319
        %v4332 = vmul.f32 %v4055, %v4319
        %v4333 = vmul.f32 %v4056, %v4319
        %v4334 = vmul.f32 %v4057, %v4323
        %v4335 = vmul.f32 %v4058, %v4323
        %v4336 = vmul.f32 %v4059, %v4323
        %v4337 = vmul.f32 %v4060, %v4323
        %v4338 = vmul.f32 %v4061, %v4323
        %v4339 = vmul.f32 %v4062, %v4323
        %v4340 = vmul.f32 %v4063, %v4323
        %v4341 = vmul.f32 %v4064, %v4323
        %v4342 = vadd.f32 %v4326, %v4277
        %v4343 = vadd.f32 %v4327, %v4278
        %v4344 = vadd.f32 %v4328, %v4279
        %v4345 = vadd.f32 %v4329, %v4280
        %v4346 = vadd.f32 %v4330, %v4281
        %v4347 = vadd.f32 %v4331, %v4282
        %v4348 = vadd.f32 %v4332, %v4283
        %v4349 = vadd.f32 %v4333, %v4284
        %v4350 = vadd.f32 %v4334, %v4285
        %v4351 = vadd.f32 %v4335, %v4286
        %v4352 = vadd.f32 %v4336, %v4287
        %v4353 = vadd.f32 %v4337, %v4288
        %v4354 = vadd.f32 %v4338, %v4289
        %v4355 = vadd.f32 %v4339, %v4290
        %v4356 = vadd.f32 %v4340, %v4291
        %v4357 = vadd.f32 %v4341, %v4292
        %v4358 = vmax.f32 %v4342, 0.0
        %v4359 = vmax.f32 %v4343, 0.0
        %v4360 = vmax.f32 %v4344, 0.0
        %v4361 = vmax.f32 %v4345, 0.0
        %v4362 = vmax.f32 %v4346, 0.0
        %v4363 = vmax.f32 %v4347, 0.0
        %v4364 = vmax.f32 %v4348, 0.0
        %v4365 = vmax.f32 %v4349, 0.0
        %v4366 = vmax.f32 %v4350, 0.0
        %v4367 = vmax.f32 %v4351, 0.0
        %v4368 = vmax.f32 %v4352, 0.0
        %v4369 = vmax.f32 %v4353, 0.0
        %v4370 = vmax.f32 %v4354, 0.0
        %v4371 = vmax.f32 %v4355, 0.0
        %v4372 = vmax.f32 %v4356, 0.0
        %v4373 = vmax.f32 %v4357, 0.0
        %4374 = vst [vmem:[%s459] sm:$0xff] %v4358
        %4375 = vst [vmem:[%s459 + $0x8] sm:$0xff] %v4359
        %4376 = vst [vmem:[%s459 + $0x10] sm:$0xff] %v4360
        %4377 = vst [vmem:[%s459 + $0x18] sm:$0xff] %v4361
        %4378 = vst [vmem:[%s459 + $0x20] sm:$0xff] %v4362
        %4379 = vst [vmem:[%s459 + $0x28] sm:$0xff] %v4363
        %4380 = vst [vmem:[%s459 + $0x30] sm:$0xff] %v4364
        %4381 = vst [vmem:[%s459 + $0x38] sm:$0xff] %v4365
        %4382 = vst [vmem:[%s459 + $0x40] sm:$0xff] %v4366
        %4383 = vst [vmem:[%s459 + $0x48] sm:$0xff] %v4367
        %4384 = vst [vmem:[%s459 + $0x50] sm:$0xff] %v4368
        %4385 = vst [vmem:[%s459 + $0x58] sm:$0xff] %v4369
        %4386 = vst [vmem:[%s459 + $0x60] sm:$0xff] %v4370
        %4387 = vst [vmem:[%s459 + $0x68] sm:$0xff] %v4371
        %4388 = vst [vmem:[%s459 + $0x70] sm:$0xff] %v4372
        %4389 = vst [vmem:[%s459 + $0x78] sm:$0xff] %v4373
        %s4390 = sand.u32 %s232, 1
        %s4391 = scalar_lea.sflag [#allocation5], %s4390
        %s4392 = sand.u32 %s232, 1
        %s4393 = smul.addr %s4392, 128
        %s4394 = scalar_lea.vmem [#allocation18], %s4393
        // Predicated region
        $region93: #{tpu_custom_call.1} parent=55 // pred_check
          %p4395 = pneg %p242
        $region94: #{tpu_custom_call.1} parent=55 // pred_check_branch
          %4397 = sbr.rel (%p4395) target = $region96
        $region95: #{tpu_custom_call.1} parent=55 // pred_region
          %s4398 = smul.u32 2, %s30
          %s4400 = ssub.s32 2048, 2048
          %4401 = vsyncadd %s4391, %s4400
          %s4402 = smul.addr %s4398, 8
          %s4403 = smul.addr %s4402, 128
          %s4404 = scalar_lea.hbm %s9, %s4403
          %s4405 = sshll.u32 %s4394, 4
          %s4406 = int_to_ptr.vmem [resolvable:$true] %s4405
          %4411 = dma.vmem_to_hbm [thread:$0]  %s4406, 2048, %s4404, %s4391, 128, 128, 8
        $region96: #{tpu_custom_call.1} parent=55 // pred_fallthru
          _
      $region56: #{tpu_custom_call.1} parent=5 // pred_fallthru
        _
      %p4412 = scmp.le.s32.totalorder 2, %s25
      // Predicated region
      $region97: #{tpu_custom_call.1} parent=5 // pred_check
        %p4413 = pneg %p4412
      $region98: #{tpu_custom_call.1} parent=5 // pred_check_branch
        %4415 = sbr.rel (%p4413) target = $region100
      $region99: #{tpu_custom_call.1} parent=5 // pred_region
        %s4416 = ssub.s32 %s25, 2
        // Predicated region
        $region101: #{tpu_custom_call.1} parent=99 // pred_check
          %p4417 = pneg %p248
        $region102: #{tpu_custom_call.1} parent=99 // pred_check_branch
          %4419 = sbr.rel (%p4417) target = $region104
        $region103: #{tpu_custom_call.1} parent=99 // pred_region
          %s4420 = sand.u32 %s233, 1
          %s4421 = scalar_lea.sflag [#allocation5], %s4420
          %s4422 = sand.u32 %s233, 1
          %s4423 = smul.addr %s4422, 128
          %s4424 = scalar_lea.vmem [#allocation18], %s4423
          %4425 = dma.done %s4421, 2048
        $region104: #{tpu_custom_call.1} parent=99 // pred_fallthru
          _
      $region100: #{tpu_custom_call.1} parent=5 // pred_fallthru
        _
    $region6: #{tpu_custom_call.1} parent=1 // loop_footer
      %s29 = sadd.s32 1, %s25
    $region7: #{tpu_custom_call.1} parent=1 // loop_footer_branch
      %24 = sbr.rel target = $region3
    $region8: #{tpu_custom_call.1} parent=1 // loop_exit
      _
    %4426 = vsyncpa [#allocation4], 1
    %s4427 = scalar_lea.sflag [#allocation4], 1
    %4428 = vsyncpa %s4427, 1
    %4429 = vsyncpa [#allocation7], 1
    %4430 = vsyncpa [#allocation10], 1
    %4431 = vsyncpa [#allocation13], 1
    %4432 = vsyncpa [#allocation16], 1
    %4433 = vsyncpa [#allocation5], 1
    %s4434 = scalar_lea.sflag [#allocation5], 1
    %4435 = vsyncpa %s4434, 1

</llo_original>
